<compile_context>
chip_gen: v7x
topology: tpu7x:2x2x1
jax: 0.10.0
libtpu: 0.0.40
codegen_flags: <defaults>
</compile_context>

<pallas_src>
import functools

import jax
import jax.numpy as jnp
from jax.experimental import pallas as pl
from jax.experimental.pallas import tpu as pltpu


def _round_up(x, m):
    return (x + m - 1) // m * m


# ---------------------------------------------------------------------------
# Kernel
# ---------------------------------------------------------------------------
def onnx_net_kernel(x_ref, w1, w234, b1234, w5, w67a, b567a, wb, out_ref):
    x = x_ref[...]                      # (TB, 4) f32
    tb = x.shape[0]
    half = tb // 2                      # TB is a multiple of 32 (wrapper)
    xa, xb = x[:half], x[half:]

    def mxu(h, w_val):
        # bf16 x bf16 -> f32 accumulation on the MXU.
        return jnp.dot(h.astype(jnp.bfloat16), w_val,
                       preferred_element_type=jnp.float32)

    # ---- layer 1: 4 -> 256 ------------------------------------------------
    w1v = w1[...]
    bb = jnp.broadcast_to(b1234[0], (half, 256))        # hoisted, reused
    ha = jnp.maximum(mxu(xa, w1v) + bb, 0.0)
    hb = jnp.maximum(mxu(xb, w1v) + bb, 0.0)

    # ---- layers 2-4: 256 -> 256 (interleave the two independent halves) ---
    for j in range(3):
        wv = w234[j]                                     # (256, 256)
        bb = jnp.broadcast_to(b1234[j + 1], (half, 256))
        ha = jnp.maximum(mxu(ha, wv) + bb, 0.0)
        hb = jnp.maximum(mxu(hb, wv) + bb, 0.0)

    # ---- layer 5: 256 -> 16 ------------------------------------------------
    w5v = w5[...]
    bb = jnp.broadcast_to(b567a[0], (half, 16))
    ha = jnp.maximum(mxu(ha, w5v) + bb, 0.0)
    hb = jnp.maximum(mxu(hb, w5v) + bb, 0.0)

    # ---- layers 6,7: zero-padded to 16 lanes (padding contributes exact 0) -
    for j in range(2):
        wv = w67a[j]                                     # (16, 16), zero-padded
        bb = jnp.broadcast_to(b567a[j + 1], (half, 16))
        ha = jnp.maximum(mxu(ha, wv) + bb, 0.0)
        hb = jnp.maximum(mxu(hb, wv) + bb, 0.0)

    # ---- folded linear tail: out = h7 @ W_a + x @ W_b + b_a ----------------
    # Only lanes 0..1 are meaningful; lanes 2..15 are exactly zero (padding).
    wav = w67a[2]                                        # (16, 16) padded W_a
    wbv = wb[...]                                        # (4, 16)  padded W_b
    bab = jnp.broadcast_to(b567a[3], (half, 16))         # padded b_a
    out_ref[:half, :] = mxu(ha, wav) + mxu(xa, wbv) + bab
    out_ref[half:, :] = mxu(hb, wav) + mxu(xb, wbv) + bab


# ---------------------------------------------------------------------------
# Wrapper
# ---------------------------------------------------------------------------
@functools.partial(jax.jit, static_argnames=("block_b",))
def onnx_net_forward(x, w1, w234, b1234, w5, w67a, b567a, wb, *, block_b=None):
    B = x.shape[0]
    if block_b is None:
        # Default: one batch tile -> grid=(1,) (right choice on v5e/v6e).
        # On v7x pass block_b=_round_up(pl.cdiv(B, 2), 32) to get grid=(2,)
        # so both TensorCores get one tile each.
        block_b = B
    tb = _round_up(max(1, min(block_b, B)), 32)   # halves stay 16-row aligned
    tb = min(tb, 1024)                            # v5e 16 MiB scoped-VMEM headroom
    b_pad = _round_up(B, tb)
    if b_pad != B:
        x = jnp.pad(x, ((0, b_pad - B), (0, 0)))

    grid = (b_pad // tb,)

    x_spec = pl.BlockSpec((tb, 4), lambda i: (i, 0))
    # Full-array, constant-index weight blocks: DMA'd once, VMEM-resident.
    w_specs = [
        pl.BlockSpec((4, 256), lambda i: (0, 0)),           # w1
        pl.BlockSpec((3, 256, 256), lambda i: (0, 0, 0)),    # w2,w3,w4 stacked
        pl.BlockSpec((4, 256), lambda i: (0, 0)),            # b1..b4 stacked
        pl.BlockSpec((256, 16), lambda i: (0, 0)),           # w5
        pl.BlockSpec((3, 16, 16), lambda i: (0, 0, 0)),      # w6,w7,W_a padded
        pl.BlockSpec((4, 16), lambda i: (0, 0)),             # b5,b6,b7,b_a padded
        pl.BlockSpec((4, 16), lambda i: (0, 0)),             # W_b padded
    ]
    out_spec = pl.BlockSpec((tb, 16), lambda i: (i, 0))

    out = pl.pallas_call(
        onnx_net_kernel,
        out_shape=jax.ShapeDtypeStruct((b_pad, 16), jnp.float32),
        grid_spec=pltpu.PrefetchScalarGridSpec(
            num_scalar_prefetch=0,
            grid=grid,
            in_specs=[x_spec] + w_specs,
            out_specs=out_spec,
        ),
        compiler_params=pltpu.CompilerParams(
            dimension_semantics=("parallel",)),
    )(x, w1, w234, b1234, w5, w67a, b567a, wb)
    return out[:B, :2]


# ---------------------------------------------------------------------------
# Parameters (PyTorch-Linear shapes, stored transposed as (in, out))
# ---------------------------------------------------------------------------
def make_params(key):
    dims = [(4, 256), (256, 256), (256, 256), (256, 256),
            (256, 16), (16, 8), (8, 8), (8, 2)]
    params = []
    for fan_in, fan_out in dims:
        key, kw, kb = jax.random.split(key, 3)
        bound = 1.0 / (fan_in ** 0.5)
        w = jax.random.uniform(kw, (fan_in, fan_out), jnp.float32, -bound, bound)
        b = jax.random.uniform(kb, (1, fan_out), jnp.float32, -bound, bound)
        params += [w, b]
    key, kc, klw, klc = jax.random.split(key, 4)
    wc = jax.random.uniform(kc, (2, 1), jnp.float32, -0.5, 0.5)    # controller
    wlw = jax.random.uniform(klw, (2, 1), jnp.float32, -0.5, 0.5)  # linear_weight
    wlc = jax.random.uniform(klc, (2, 2), jnp.float32, -0.5, 0.5)  # linear_constraint
    return params + [wc, wlw, wlc]


def fold_params(params):
    """Fold the linear tail into W_a/b_a/W_b, pack/pad operands, cast to bf16."""
    hi = jax.lax.Precision.HIGHEST
    ws = params[:16]
    wc, wlw, wlc = params[16], params[17], params[18]
    w8, b8 = ws[14], ws[15]

    proj_a = jnp.dot(wc, wlc[0:1, :], precision=hi)          # (2, 2)
    w_a = jnp.dot(w8, proj_a, precision=hi)                  # (8, 2)
    b_a = jnp.dot(b8, proj_a, precision=hi)                  # (1, 2)
    w_b_small = jnp.dot(wlw, wlc[1:2, :], precision=hi)      # (2, 2), applies to x[:,2:4]

    def bf16(a):
        return a.astype(jnp.bfloat16)

    def pad16(w):   # (r, c) -> (16, 16), zero padded
        r, c = w.shape
        return jnp.zeros((16, 16), jnp.float32).at[:r, :c].set(w)

    def padb16(b):  # (1, c) -> (16,), zero padded
        return jnp.zeros((16,), jnp.float32).at[:b.shape[1]].set(b[0])

    w1 = bf16(ws[0])                                          # (4, 256)
    w234 = bf16(jnp.stack([ws[2], ws[4], ws[6]]))             # (3, 256, 256)
    b1234 = jnp.concatenate([ws[1], ws[3], ws[5], ws[7]], 0)  # (4, 256) f32
    w5 = bf16(ws[8])                                          # (256, 16)
    w67a = bf16(jnp.stack([pad16(ws[10]), pad16(ws[12]), pad16(w_a)]))   # (3,16,16)
    b567a = jnp.stack([padb16(ws[9]), padb16(ws[11]),
                       padb16(ws[13]), padb16(b_a)])          # (4, 16) f32
    wb = bf16(jnp.zeros((4, 16), jnp.float32).at[2:, :2].set(w_b_small))  # (4, 16)
    return (w1, w234, b1234, w5, w67a, b567a, wb)


# ---------------------------------------------------------------------------
# References
# ---------------------------------------------------------------------------
def reference_forward_bf16(x, params):
    """Original (unfolded) structure with the same bf16 MXU-input discipline
    as the kernel -> validates kernel structure + tail folding tightly."""
    ws = params[:16]
    wc, wlw, wlc = params[16], params[17], params[18]

    def dot_bf16(a, w):
        return jnp.dot(a.astype(jnp.bfloat16), w.astype(jnp.bfloat16),
                       preferred_element_type=jnp.float32)

    h = x
    for i in range(8):
        h = dot_bf16(h, ws[2 * i]) + ws[2 * i + 1]
        if i < 7:
            h = jnp.maximum(h, 0.0)
    o1 = dot_bf16(h, wc)
    o2 = dot_bf16(x[:, 2:4], wlw)
    cat = jnp.concatenate([o1, o2], axis=1)
    return dot_bf16(cat, wlc)


def reference_forward_f32(x, params):
    """Pure f32 original semantics (exact)."""
    hi = jax.lax.Precision.HIGHEST
    ws = params[:16]
    wc, wlw, wlc = params[16], params[17], params[18]
    h = x
    for i in range(8):
        h = jnp.dot(h, ws[2 * i], precision=hi) + ws[2 * i + 1]
        if i < 7:
            h = jnp.maximum(h, 0.0)
    o1 = jnp.dot(h, wc, precision=hi)
    o2 = jnp.dot(x[:, 2:4], wlw, precision=hi)
    cat = jnp.concatenate([o1, o2], axis=1)
    return jnp.dot(cat, wlc, precision=hi)


# ---------------------------------------------------------------------------
if __name__ == "__main__":
    key = jax.random.PRNGKey(0)
    key, kx = jax.random.split(key)

    B = 256
    x = jax.random.normal(kx, (B, 4), jnp.float32)

    params = make_params(key)
    kparams = fold_params(params)

    # Default block_b -> single batch tile, grid=(1,): one tile per TensorCore
    # on v5e/v6e.  (On v7x pass block_b=_round_up(pl.cdiv(B, 2), 32).)
    out = onnx_net_forward(x, *kparams)
    out = jax.block_until_ready(out)
    assert out.shape == (B, 2), out.shape

    # Tight check: same dtype discipline, original (unfolded) math.
    ref_bf16 = reference_forward_bf16(x, params)
    assert jnp.allclose(out, ref_bf16, atol=1e-2, rtol=1e-2), (
        float(jnp.max(jnp.abs(out - ref_bf16))))

    # Loose check: full-precision original semantics (bounds bf16 degradation).
    ref_f32 = reference_forward_f32(x, params)
    assert jnp.allclose(out, ref_f32, atol=1e-1, rtol=1e-1), (
        float(jnp.max(jnp.abs(out - ref_f32))))

    print("KERNEL_OK")
</pallas_src>

<mosaic_0001>
module attributes {stable_mosaic.version = 11 : i64} {
  func.func @onnx_net_kernel(%arg0: i32, %arg1: memref<256x4xf32, #tpu.memory_space<vmem>>, %arg2: memref<4x256xbf16, #tpu.memory_space<vmem>>, %arg3: memref<3x256x256xbf16, #tpu.memory_space<vmem>>, %arg4: memref<4x256xf32, #tpu.memory_space<vmem>>, %arg5: memref<256x16xbf16, #tpu.memory_space<vmem>>, %arg6: memref<3x16x16xbf16, #tpu.memory_space<vmem>>, %arg7: memref<4x16xf32, #tpu.memory_space<vmem>>, %arg8: memref<4x16xbf16, #tpu.memory_space<vmem>>, %arg9: memref<256x16xf32, #tpu.memory_space<vmem>>) attributes {dimension_semantics = [#tpu.dimension_semantics<parallel>], iteration_bounds = array<i64: 1>, scalar_prefetch = 0 : i64, scratch_operands = 0 : i64, tpu.core_type = #tpu.core_type<tc>, window_params = [{transform_indices = @transform_0, window_bounds = array<i64: 256, 4>}, {pipeline_mode = #tpu.pipeline_mode<synchronous>, transform_indices = @transform_1, window_bounds = array<i64: 4, 256>}, {pipeline_mode = #tpu.pipeline_mode<synchronous>, transform_indices = @transform_2, window_bounds = array<i64: 3, 256, 256>}, {pipeline_mode = #tpu.pipeline_mode<synchronous>, transform_indices = @transform_3, window_bounds = array<i64: 4, 256>}, {pipeline_mode = #tpu.pipeline_mode<synchronous>, transform_indices = @transform_4, window_bounds = array<i64: 256, 16>}, {pipeline_mode = #tpu.pipeline_mode<synchronous>, transform_indices = @transform_5, window_bounds = array<i64: 3, 16, 16>}, {pipeline_mode = #tpu.pipeline_mode<synchronous>, transform_indices = @transform_6, window_bounds = array<i64: 4, 16>}, {pipeline_mode = #tpu.pipeline_mode<synchronous>, transform_indices = @transform_7, window_bounds = array<i64: 4, 16>}, {transform_indices = @transform_8, window_bounds = array<i64: 256, 16>}]} {
    %c0 = arith.constant 0 : index
    %c0_0 = arith.constant 0 : index
    %0 = vector.load %arg1[%c0, %c0_0] : memref<256x4xf32, #tpu.memory_space<vmem>>, vector<256x4xf32>
    %1 = vector.extract_strided_slice %0 {offsets = [0, 0], sizes = [128, 4], strides = [1, 1]} : vector<256x4xf32> to vector<128x4xf32>
    %2 = vector.extract_strided_slice %0 {offsets = [128, 0], sizes = [128, 4], strides = [1, 1]} : vector<256x4xf32> to vector<128x4xf32>
    %c0_1 = arith.constant 0 : index
    %c0_2 = arith.constant 0 : index
    %3 = vector.load %arg2[%c0_1, %c0_2] : memref<4x256xbf16, #tpu.memory_space<vmem>>, vector<4x256xbf16>
    %c0_3 = arith.constant 0 : index
    %c0_4 = arith.constant 0 : index
    %4 = vector.load %arg4[%c0_3, %c0_4] : memref<4x256xf32, #tpu.memory_space<vmem>>, vector<1x256xf32>
    %5 = vector.shape_cast %4 : vector<1x256xf32> to vector<256xf32>
    %6 = vector.shape_cast %5 : vector<256xf32> to vector<1x256xf32>
    %7 = vector.broadcast %6 : vector<1x256xf32> to vector<128x256xf32>
    %8 = arith.truncf %1 : vector<128x4xf32> to vector<128x4xbf16>
    %cst = arith.constant dense<0.000000e+00> : vector<128x256xf32>
    %9 = tpu.matmul %8, %3, %cst {dimension_numbers = #tpu.dot_dimension_numbers<[1], [0], [0], [1], [0, 0, 1, 1], [], []>} : vector<128x4xbf16>, vector<4x256xbf16>, vector<128x256xf32> -> vector<128x256xf32>
    %10 = arith.addf %9, %7 : vector<128x256xf32>
    %cst_5 = arith.constant 0.000000e+00 : f32
    %11 = vector.broadcast %cst_5 : f32 to vector<128x256xf32>
    %12 = arith.maximumf %10, %11 : vector<128x256xf32>
    %13 = arith.truncf %2 : vector<128x4xf32> to vector<128x4xbf16>
    %cst_6 = arith.constant dense<0.000000e+00> : vector<128x256xf32>
    %14 = tpu.matmul %13, %3, %cst_6 {dimension_numbers = #tpu.dot_dimension_numbers<[1], [0], [0], [1], [0, 0, 1, 1], [], []>} : vector<128x4xbf16>, vector<4x256xbf16>, vector<128x256xf32> -> vector<128x256xf32>
    %15 = arith.addf %14, %7 : vector<128x256xf32>
    %cst_7 = arith.constant 0.000000e+00 : f32
    %16 = vector.broadcast %cst_7 : f32 to vector<128x256xf32>
    %17 = arith.maximumf %15, %16 : vector<128x256xf32>
    %c0_8 = arith.constant 0 : index
    %c0_9 = arith.constant 0 : index
    %c0_10 = arith.constant 0 : index
    %18 = vector.load %arg3[%c0_8, %c0_9, %c0_10] : memref<3x256x256xbf16, #tpu.memory_space<vmem>>, vector<1x256x256xbf16>
    %19 = vector.shape_cast %18 : vector<1x256x256xbf16> to vector<256x256xbf16>
    %c1 = arith.constant 1 : index
    %c0_11 = arith.constant 0 : index
    %20 = vector.load %arg4[%c1, %c0_11] : memref<4x256xf32, #tpu.memory_space<vmem>>, vector<1x256xf32>
    %21 = vector.shape_cast %20 : vector<1x256xf32> to vector<256xf32>
    %22 = vector.shape_cast %21 : vector<256xf32> to vector<1x256xf32>
    %23 = vector.broadcast %22 : vector<1x256xf32> to vector<128x256xf32>
    %24 = arith.truncf %12 : vector<128x256xf32> to vector<128x256xbf16>
    %cst_12 = arith.constant dense<0.000000e+00> : vector<128x256xf32>
    %25 = tpu.matmul %24, %19, %cst_12 {dimension_numbers = #tpu.dot_dimension_numbers<[1], [0], [0], [1], [0, 0, 1, 1], [], []>} : vector<128x256xbf16>, vector<256x256xbf16>, vector<128x256xf32> -> vector<128x256xf32>
    %26 = arith.addf %25, %23 : vector<128x256xf32>
    %cst_13 = arith.constant 0.000000e+00 : f32
    %27 = vector.broadcast %cst_13 : f32 to vector<128x256xf32>
    %28 = arith.maximumf %26, %27 : vector<128x256xf32>
    %29 = arith.truncf %17 : vector<128x256xf32> to vector<128x256xbf16>
    %cst_14 = arith.constant dense<0.000000e+00> : vector<128x256xf32>
    %30 = tpu.matmul %29, %19, %cst_14 {dimension_numbers = #tpu.dot_dimension_numbers<[1], [0], [0], [1], [0, 0, 1, 1], [], []>} : vector<128x256xbf16>, vector<256x256xbf16>, vector<128x256xf32> -> vector<128x256xf32>
    %31 = arith.addf %30, %23 : vector<128x256xf32>
    %cst_15 = arith.constant 0.000000e+00 : f32
    %32 = vector.broadcast %cst_15 : f32 to vector<128x256xf32>
    %33 = arith.maximumf %31, %32 : vector<128x256xf32>
    %c1_16 = arith.constant 1 : index
    %c0_17 = arith.constant 0 : index
    %c0_18 = arith.constant 0 : index
    %34 = vector.load %arg3[%c1_16, %c0_17, %c0_18] : memref<3x256x256xbf16, #tpu.memory_space<vmem>>, vector<1x256x256xbf16>
    %35 = vector.shape_cast %34 : vector<1x256x256xbf16> to vector<256x256xbf16>
    %c2 = arith.constant 2 : index
    %c0_19 = arith.constant 0 : index
    %36 = vector.load %arg4[%c2, %c0_19] : memref<4x256xf32, #tpu.memory_space<vmem>>, vector<1x256xf32>
    %37 = vector.shape_cast %36 : vector<1x256xf32> to vector<256xf32>
    %38 = vector.shape_cast %37 : vector<256xf32> to vector<1x256xf32>
    %39 = vector.broadcast %38 : vector<1x256xf32> to vector<128x256xf32>
    %40 = arith.truncf %28 : vector<128x256xf32> to vector<128x256xbf16>
    %cst_20 = arith.constant dense<0.000000e+00> : vector<128x256xf32>
    %41 = tpu.matmul %40, %35, %cst_20 {dimension_numbers = #tpu.dot_dimension_numbers<[1], [0], [0], [1], [0, 0, 1, 1], [], []>} : vector<128x256xbf16>, vector<256x256xbf16>, vector<128x256xf32> -> vector<128x256xf32>
    %42 = arith.addf %41, %39 : vector<128x256xf32>
    %cst_21 = arith.constant 0.000000e+00 : f32
    %43 = vector.broadcast %cst_21 : f32 to vector<128x256xf32>
    %44 = arith.maximumf %42, %43 : vector<128x256xf32>
    %45 = arith.truncf %33 : vector<128x256xf32> to vector<128x256xbf16>
    %cst_22 = arith.constant dense<0.000000e+00> : vector<128x256xf32>
    %46 = tpu.matmul %45, %35, %cst_22 {dimension_numbers = #tpu.dot_dimension_numbers<[1], [0], [0], [1], [0, 0, 1, 1], [], []>} : vector<128x256xbf16>, vector<256x256xbf16>, vector<128x256xf32> -> vector<128x256xf32>
    %47 = arith.addf %46, %39 : vector<128x256xf32>
    %cst_23 = arith.constant 0.000000e+00 : f32
    %48 = vector.broadcast %cst_23 : f32 to vector<128x256xf32>
    %49 = arith.maximumf %47, %48 : vector<128x256xf32>
    %c2_24 = arith.constant 2 : index
    %c0_25 = arith.constant 0 : index
    %c0_26 = arith.constant 0 : index
    %50 = vector.load %arg3[%c2_24, %c0_25, %c0_26] : memref<3x256x256xbf16, #tpu.memory_space<vmem>>, vector<1x256x256xbf16>
    %51 = vector.shape_cast %50 : vector<1x256x256xbf16> to vector<256x256xbf16>
    %c3 = arith.constant 3 : index
    %c0_27 = arith.constant 0 : index
    %52 = vector.load %arg4[%c3, %c0_27] : memref<4x256xf32, #tpu.memory_space<vmem>>, vector<1x256xf32>
    %53 = vector.shape_cast %52 : vector<1x256xf32> to vector<256xf32>
    %54 = vector.shape_cast %53 : vector<256xf32> to vector<1x256xf32>
    %55 = vector.broadcast %54 : vector<1x256xf32> to vector<128x256xf32>
    %56 = arith.truncf %44 : vector<128x256xf32> to vector<128x256xbf16>
    %cst_28 = arith.constant dense<0.000000e+00> : vector<128x256xf32>
    %57 = tpu.matmul %56, %51, %cst_28 {dimension_numbers = #tpu.dot_dimension_numbers<[1], [0], [0], [1], [0, 0, 1, 1], [], []>} : vector<128x256xbf16>, vector<256x256xbf16>, vector<128x256xf32> -> vector<128x256xf32>
    %58 = arith.addf %57, %55 : vector<128x256xf32>
    %cst_29 = arith.constant 0.000000e+00 : f32
    %59 = vector.broadcast %cst_29 : f32 to vector<128x256xf32>
    %60 = arith.maximumf %58, %59 : vector<128x256xf32>
    %61 = arith.truncf %49 : vector<128x256xf32> to vector<128x256xbf16>
    %cst_30 = arith.constant dense<0.000000e+00> : vector<128x256xf32>
    %62 = tpu.matmul %61, %51, %cst_30 {dimension_numbers = #tpu.dot_dimension_numbers<[1], [0], [0], [1], [0, 0, 1, 1], [], []>} : vector<128x256xbf16>, vector<256x256xbf16>, vector<128x256xf32> -> vector<128x256xf32>
    %63 = arith.addf %62, %55 : vector<128x256xf32>
    %cst_31 = arith.constant 0.000000e+00 : f32
    %64 = vector.broadcast %cst_31 : f32 to vector<128x256xf32>
    %65 = arith.maximumf %63, %64 : vector<128x256xf32>
    %c0_32 = arith.constant 0 : index
    %c0_33 = arith.constant 0 : index
    %66 = vector.load %arg5[%c0_32, %c0_33] : memref<256x16xbf16, #tpu.memory_space<vmem>>, vector<256x16xbf16>
    %c0_34 = arith.constant 0 : index
    %c0_35 = arith.constant 0 : index
    %67 = vector.load %arg7[%c0_34, %c0_35] : memref<4x16xf32, #tpu.memory_space<vmem>>, vector<1x16xf32>
    %68 = vector.shape_cast %67 : vector<1x16xf32> to vector<16xf32>
    %69 = vector.shape_cast %68 : vector<16xf32> to vector<1x16xf32>
    %70 = vector.broadcast %69 : vector<1x16xf32> to vector<128x16xf32>
    %71 = arith.truncf %60 : vector<128x256xf32> to vector<128x256xbf16>
    %cst_36 = arith.constant dense<0.000000e+00> : vector<128x16xf32>
    %72 = tpu.matmul %71, %66, %cst_36 {dimension_numbers = #tpu.dot_dimension_numbers<[1], [0], [0], [1], [0, 0, 1, 1], [], []>} : vector<128x256xbf16>, vector<256x16xbf16>, vector<128x16xf32> -> vector<128x16xf32>
    %73 = arith.addf %72, %70 : vector<128x16xf32>
    %cst_37 = arith.constant 0.000000e+00 : f32
    %74 = vector.broadcast %cst_37 : f32 to vector<128x16xf32>
    %75 = arith.maximumf %73, %74 : vector<128x16xf32>
    %76 = arith.truncf %65 : vector<128x256xf32> to vector<128x256xbf16>
    %cst_38 = arith.constant dense<0.000000e+00> : vector<128x16xf32>
    %77 = tpu.matmul %76, %66, %cst_38 {dimension_numbers = #tpu.dot_dimension_numbers<[1], [0], [0], [1], [0, 0, 1, 1], [], []>} : vector<128x256xbf16>, vector<256x16xbf16>, vector<128x16xf32> -> vector<128x16xf32>
    %78 = arith.addf %77, %70 : vector<128x16xf32>
    %cst_39 = arith.constant 0.000000e+00 : f32
    %79 = vector.broadcast %cst_39 : f32 to vector<128x16xf32>
    %80 = arith.maximumf %78, %79 : vector<128x16xf32>
    %c0_40 = arith.constant 0 : index
    %c0_41 = arith.constant 0 : index
    %c0_42 = arith.constant 0 : index
    %81 = vector.load %arg6[%c0_40, %c0_41, %c0_42] : memref<3x16x16xbf16, #tpu.memory_space<vmem>>, vector<1x16x16xbf16>
    %82 = vector.shape_cast %81 : vector<1x16x16xbf16> to vector<16x16xbf16>
    %c1_43 = arith.constant 1 : index
    %c0_44 = arith.constant 0 : index
    %83 = vector.load %arg7[%c1_43, %c0_44] : memref<4x16xf32, #tpu.memory_space<vmem>>, vector<1x16xf32>
    %84 = vector.shape_cast %83 : vector<1x16xf32> to vector<16xf32>
    %85 = vector.shape_cast %84 : vector<16xf32> to vector<1x16xf32>
    %86 = vector.broadcast %85 : vector<1x16xf32> to vector<128x16xf32>
    %87 = arith.truncf %75 : vector<128x16xf32> to vector<128x16xbf16>
    %cst_45 = arith.constant dense<0.000000e+00> : vector<128x16xf32>
    %88 = tpu.matmul %87, %82, %cst_45 {dimension_numbers = #tpu.dot_dimension_numbers<[1], [0], [0], [1], [0, 0, 1, 1], [], []>} : vector<128x16xbf16>, vector<16x16xbf16>, vector<128x16xf32> -> vector<128x16xf32>
    %89 = arith.addf %88, %86 : vector<128x16xf32>
    %cst_46 = arith.constant 0.000000e+00 : f32
    %90 = vector.broadcast %cst_46 : f32 to vector<128x16xf32>
    %91 = arith.maximumf %89, %90 : vector<128x16xf32>
    %92 = arith.truncf %80 : vector<128x16xf32> to vector<128x16xbf16>
    %cst_47 = arith.constant dense<0.000000e+00> : vector<128x16xf32>
    %93 = tpu.matmul %92, %82, %cst_47 {dimension_numbers = #tpu.dot_dimension_numbers<[1], [0], [0], [1], [0, 0, 1, 1], [], []>} : vector<128x16xbf16>, vector<16x16xbf16>, vector<128x16xf32> -> vector<128x16xf32>
    %94 = arith.addf %93, %86 : vector<128x16xf32>
    %cst_48 = arith.constant 0.000000e+00 : f32
    %95 = vector.broadcast %cst_48 : f32 to vector<128x16xf32>
    %96 = arith.maximumf %94, %95 : vector<128x16xf32>
    %c1_49 = arith.constant 1 : index
    %c0_50 = arith.constant 0 : index
    %c0_51 = arith.constant 0 : index
    %97 = vector.load %arg6[%c1_49, %c0_50, %c0_51] : memref<3x16x16xbf16, #tpu.memory_space<vmem>>, vector<1x16x16xbf16>
    %98 = vector.shape_cast %97 : vector<1x16x16xbf16> to vector<16x16xbf16>
    %c2_52 = arith.constant 2 : index
    %c0_53 = arith.constant 0 : index
    %99 = vector.load %arg7[%c2_52, %c0_53] : memref<4x16xf32, #tpu.memory_space<vmem>>, vector<1x16xf32>
    %100 = vector.shape_cast %99 : vector<1x16xf32> to vector<16xf32>
    %101 = vector.shape_cast %100 : vector<16xf32> to vector<1x16xf32>
    %102 = vector.broadcast %101 : vector<1x16xf32> to vector<128x16xf32>
    %103 = arith.truncf %91 : vector<128x16xf32> to vector<128x16xbf16>
    %cst_54 = arith.constant dense<0.000000e+00> : vector<128x16xf32>
    %104 = tpu.matmul %103, %98, %cst_54 {dimension_numbers = #tpu.dot_dimension_numbers<[1], [0], [0], [1], [0, 0, 1, 1], [], []>} : vector<128x16xbf16>, vector<16x16xbf16>, vector<128x16xf32> -> vector<128x16xf32>
    %105 = arith.addf %104, %102 : vector<128x16xf32>
    %cst_55 = arith.constant 0.000000e+00 : f32
    %106 = vector.broadcast %cst_55 : f32 to vector<128x16xf32>
    %107 = arith.maximumf %105, %106 : vector<128x16xf32>
    %108 = arith.truncf %96 : vector<128x16xf32> to vector<128x16xbf16>
    %cst_56 = arith.constant dense<0.000000e+00> : vector<128x16xf32>
    %109 = tpu.matmul %108, %98, %cst_56 {dimension_numbers = #tpu.dot_dimension_numbers<[1], [0], [0], [1], [0, 0, 1, 1], [], []>} : vector<128x16xbf16>, vector<16x16xbf16>, vector<128x16xf32> -> vector<128x16xf32>
    %110 = arith.addf %109, %102 : vector<128x16xf32>
    %cst_57 = arith.constant 0.000000e+00 : f32
    %111 = vector.broadcast %cst_57 : f32 to vector<128x16xf32>
    %112 = arith.maximumf %110, %111 : vector<128x16xf32>
    %c2_58 = arith.constant 2 : index
    %c0_59 = arith.constant 0 : index
    %c0_60 = arith.constant 0 : index
    %113 = vector.load %arg6[%c2_58, %c0_59, %c0_60] : memref<3x16x16xbf16, #tpu.memory_space<vmem>>, vector<1x16x16xbf16>
    %114 = vector.shape_cast %113 : vector<1x16x16xbf16> to vector<16x16xbf16>
    %c0_61 = arith.constant 0 : index
    %c0_62 = arith.constant 0 : index
    %115 = vector.load %arg8[%c0_61, %c0_62] : memref<4x16xbf16, #tpu.memory_space<vmem>>, vector<4x16xbf16>
    %c3_63 = arith.constant 3 : index
    %c0_64 = arith.constant 0 : index
    %116 = vector.load %arg7[%c3_63, %c0_64] : memref<4x16xf32, #tpu.memory_space<vmem>>, vector<1x16xf32>
    %117 = vector.shape_cast %116 : vector<1x16xf32> to vector<16xf32>
    %118 = vector.shape_cast %117 : vector<16xf32> to vector<1x16xf32>
    %119 = vector.broadcast %118 : vector<1x16xf32> to vector<128x16xf32>
    %120 = arith.truncf %107 : vector<128x16xf32> to vector<128x16xbf16>
    %cst_65 = arith.constant dense<0.000000e+00> : vector<128x16xf32>
    %121 = tpu.matmul %120, %114, %cst_65 {dimension_numbers = #tpu.dot_dimension_numbers<[1], [0], [0], [1], [0, 0, 1, 1], [], []>} : vector<128x16xbf16>, vector<16x16xbf16>, vector<128x16xf32> -> vector<128x16xf32>
    %122 = arith.truncf %1 : vector<128x4xf32> to vector<128x4xbf16>
    %cst_66 = arith.constant dense<0.000000e+00> : vector<128x16xf32>
    %123 = tpu.matmul %122, %115, %cst_66 {dimension_numbers = #tpu.dot_dimension_numbers<[1], [0], [0], [1], [0, 0, 1, 1], [], []>} : vector<128x4xbf16>, vector<4x16xbf16>, vector<128x16xf32> -> vector<128x16xf32>
    %124 = arith.addf %121, %123 : vector<128x16xf32>
    %125 = arith.addf %124, %119 : vector<128x16xf32>
    %c0_67 = arith.constant 0 : index
    %c0_68 = arith.constant 0 : index
    %126 = vector.load %arg9[%c0_67, %c0_68] : memref<256x16xf32, #tpu.memory_space<vmem>>, vector<128x16xf32>
    tpu.vector_store %arg9[%c0_67, %c0_68], %125 {strides = array<i32>} : memref<256x16xf32, #tpu.memory_space<vmem>>, vector<128x16xf32>,
    %127 = arith.truncf %112 : vector<128x16xf32> to vector<128x16xbf16>
    %cst_69 = arith.constant dense<0.000000e+00> : vector<128x16xf32>
    %128 = tpu.matmul %127, %114, %cst_69 {dimension_numbers = #tpu.dot_dimension_numbers<[1], [0], [0], [1], [0, 0, 1, 1], [], []>} : vector<128x16xbf16>, vector<16x16xbf16>, vector<128x16xf32> -> vector<128x16xf32>
    %129 = arith.truncf %2 : vector<128x4xf32> to vector<128x4xbf16>
    %cst_70 = arith.constant dense<0.000000e+00> : vector<128x16xf32>
    %130 = tpu.matmul %129, %115, %cst_70 {dimension_numbers = #tpu.dot_dimension_numbers<[1], [0], [0], [1], [0, 0, 1, 1], [], []>} : vector<128x4xbf16>, vector<4x16xbf16>, vector<128x16xf32> -> vector<128x16xf32>
    %131 = arith.addf %128, %130 : vector<128x16xf32>
    %132 = arith.addf %131, %119 : vector<128x16xf32>
    %c128 = arith.constant 128 : index
    %c0_71 = arith.constant 0 : index
    %133 = vector.load %arg9[%c128, %c0_71] : memref<256x16xf32, #tpu.memory_space<vmem>>, vector<128x16xf32>
    tpu.vector_store %arg9[%c128, %c0_71], %132 {strides = array<i32>} : memref<256x16xf32, #tpu.memory_space<vmem>>, vector<128x16xf32>,
    return
  }
  func.func @transform_0(%arg0: i32) -> (i32, i32) {
    %c0_i32 = arith.constant 0 : i32
    %c0_i32_0 = arith.constant 0 : i32
    return %arg0, %c0_i32 : i32, i32
  }
  func.func @transform_1(%arg0: i32) -> (i32, i32) {
    %c0_i32 = arith.constant 0 : i32
    %c0_i32_0 = arith.constant 0 : i32
    %c0_i32_1 = arith.constant 0 : i32
    return %c0_i32, %c0_i32_0 : i32, i32
  }
  func.func @transform_2(%arg0: i32) -> (i32, i32, i32) {
    %c0_i32 = arith.constant 0 : i32
    %c0_i32_0 = arith.constant 0 : i32
    %c0_i32_1 = arith.constant 0 : i32
    %c0_i32_2 = arith.constant 0 : i32
    return %c0_i32, %c0_i32_0, %c0_i32_1 : i32, i32, i32
  }
  func.func @transform_3(%arg0: i32) -> (i32, i32) {
    %c0_i32 = arith.constant 0 : i32
    %c0_i32_0 = arith.constant 0 : i32
    %c0_i32_1 = arith.constant 0 : i32
    return %c0_i32, %c0_i32_0 : i32, i32
  }
  func.func @transform_4(%arg0: i32) -> (i32, i32) {
    %c0_i32 = arith.constant 0 : i32
    %c0_i32_0 = arith.constant 0 : i32
    %c0_i32_1 = arith.constant 0 : i32
    return %c0_i32, %c0_i32_0 : i32, i32
  }
  func.func @transform_5(%arg0: i32) -> (i32, i32, i32) {
    %c0_i32 = arith.constant 0 : i32
    %c0_i32_0 = arith.constant 0 : i32
    %c0_i32_1 = arith.constant 0 : i32
    %c0_i32_2 = arith.constant 0 : i32
    return %c0_i32, %c0_i32_0, %c0_i32_1 : i32, i32, i32
  }
  func.func @transform_6(%arg0: i32) -> (i32, i32) {
    %c0_i32 = arith.constant 0 : i32
    %c0_i32_0 = arith.constant 0 : i32
    %c0_i32_1 = arith.constant 0 : i32
    return %c0_i32, %c0_i32_0 : i32, i32
  }
  func.func @transform_7(%arg0: i32) -> (i32, i32) {
    %c0_i32 = arith.constant 0 : i32
    %c0_i32_0 = arith.constant 0 : i32
    %c0_i32_1 = arith.constant 0 : i32
    return %c0_i32, %c0_i32_0 : i32, i32
  }
  func.func @transform_8(%arg0: i32) -> (i32, i32) {
    %c0_i32 = arith.constant 0 : i32
    %c0_i32_0 = arith.constant 0 : i32
    return %arg0, %c0_i32 : i32, i32
  }
}

</mosaic_0001>

<llo_original>
// kernel: onnx_net_forward.1
$region0: #{onnx_net_forward.1}
  #allocation0 [shape = 'u32[]', space=smem, size = 0x4, offset = 0x4, fixed_abs, tag = 'smem constant byte address 0x4 - core index']
  #allocation1 [shape = 'u32[144,128]{1,0:T(1,128)}', space=vmem, size = 0x12000, scoped, tag = 'internal scratch']
  %s0 = inlined_call_operand.vmem [shape: f32[256,4], index: 0, kind: input, shape index: {}]
  %s1 = inlined_call_operand.vmem [shape: bf16[4,256], index: 1, kind: input, shape index: {}]
  %s2 = inlined_call_operand.hbm [shape: bf16[3,256,256], index: 2, kind: input, shape index: {}]
  %s3 = inlined_call_operand.vmem [shape: f32[4,256], index: 3, kind: input, shape index: {}]
  %s4 = inlined_call_operand.vmem [shape: bf16[256,16], index: 4, kind: input, shape index: {}]
  %s5 = inlined_call_operand.vmem [shape: bf16[3,16,16], index: 5, kind: input, shape index: {}]
  %s6 = inlined_call_operand.vmem [shape: f32[4,16], index: 6, kind: input, shape index: {}]
  %s7 = inlined_call_operand.vmem [shape: bf16[4,16], index: 7, kind: input, shape index: {}]
  %s8 = inlined_call_operand.vmem [shape: f32[256,16], index: 8, kind: output, shape index: {}]
  %s9 = sld [smem:[#allocation0]]
  $region46: #{onnx_net_forward.1} parent=0
    _
  %s11 = ssub.s32 1, %s9
  %s12 = scalar_select 0, %s11, %s9
  $region1: #{onnx_net_forward.1} parent=0
    #allocation2 [shape = 'u8[393216]{0}', space=vmem, size = 0x60000, scoped, tag = 'input window, operand 2, single buffered']
    #allocation3 [shape = 's32[1]{0}', space=sflag, size = 0x4, scoped, tag = 'scoped memory for onnx_net_forward.1']
    %13 = vsyncpa [#allocation3], 0
    // Predicated region
    $region2: #{onnx_net_forward.1} parent=1 // pred_check
      _
    $region3: #{onnx_net_forward.1} parent=1 // pred_check_branch
      %15 = sbr.rel (0) target = $region5
    $region4: #{onnx_net_forward.1} parent=1 // pred_region
      _
    $region5: #{onnx_net_forward.1} parent=1 // pred_fallthru
      _
    // Predicated region
    $region6: #{onnx_net_forward.1} parent=1 // pred_check
      _
    $region7: #{onnx_net_forward.1} parent=1 // pred_check_branch
      %17 = sbr.rel (0) target = $region9
    $region8: #{onnx_net_forward.1} parent=1 // pred_region
      _
    $region9: #{onnx_net_forward.1} parent=1 // pred_fallthru
      _
    // Predicated region
    $region10: #{onnx_net_forward.1} parent=1 // pred_check
      _
    $region11: #{onnx_net_forward.1} parent=1 // pred_check_branch
      %19 = sbr.rel (0) target = $region13
    $region12: #{onnx_net_forward.1} parent=1 // pred_region
      %s21 = ssub.s32 12288, 12288
      %22 = vsyncadd [#allocation3], %s21
      %s23 = sshll.u32 [#allocation2], 4
      %s24 = int_to_ptr.vmem [resolvable:$true] %s23
      %29 = dma.hbm_to_vmem [thread:$0]  %s2, 12288, %s24, [#allocation3], 128, 128, 8
    $region13: #{onnx_net_forward.1} parent=1 // pred_fallthru
      _
    // Predicated region
    $region14: #{onnx_net_forward.1} parent=1 // pred_check
      _
    $region15: #{onnx_net_forward.1} parent=1 // pred_check_branch
      %31 = sbr.rel (0) target = $region17
    $region16: #{onnx_net_forward.1} parent=1 // pred_region
      _
    $region17: #{onnx_net_forward.1} parent=1 // pred_fallthru
      _
    // Predicated region
    $region18: #{onnx_net_forward.1} parent=1 // pred_check
      _
    $region19: #{onnx_net_forward.1} parent=1 // pred_check_branch
      %33 = sbr.rel (0) target = $region21
    $region20: #{onnx_net_forward.1} parent=1 // pred_region
      _
    $region21: #{onnx_net_forward.1} parent=1 // pred_fallthru
      _
    // Predicated region
    $region22: #{onnx_net_forward.1} parent=1 // pred_check
      _
    $region23: #{onnx_net_forward.1} parent=1 // pred_check_branch
      %35 = sbr.rel (0) target = $region25
    $region24: #{onnx_net_forward.1} parent=1 // pred_region
      _
    $region25: #{onnx_net_forward.1} parent=1 // pred_fallthru
      _
    // Predicated region
    $region26: #{onnx_net_forward.1} parent=1 // pred_check
      _
    $region27: #{onnx_net_forward.1} parent=1 // pred_check_branch
      %37 = sbr.rel (0) target = $region29
    $region28: #{onnx_net_forward.1} parent=1 // pred_region
      _
    $region29: #{onnx_net_forward.1} parent=1 // pred_fallthru
      _
    // Predicated region
    $region30: #{onnx_net_forward.1} parent=1 // pred_check
      _
    $region31: #{onnx_net_forward.1} parent=1 // pred_check_branch
      %39 = sbr.rel (0) target = $region33
    $region32: #{onnx_net_forward.1} parent=1 // pred_region
      _
    $region33: #{onnx_net_forward.1} parent=1 // pred_fallthru
      _
    // Predicated region
    $region34: #{onnx_net_forward.1} parent=1 // pred_check
      _
    $region35: #{onnx_net_forward.1} parent=1 // pred_check_branch
      %41 = sbr.rel (0) target = $region37
    $region36: #{onnx_net_forward.1} parent=1 // pred_region
      %42 = dma.done [#allocation3], 12288
    $region37: #{onnx_net_forward.1} parent=1 // pred_fallthru
      _
    %v44 = vld [vmem:[%s0] sm:$0xff]
    %v45 = vld [vmem:[%s0 + $0x8] sm:$0xff]
    %v46 = vld [vmem:[%s0 + $0x10] sm:$0xff]
    %v47 = vld [vmem:[%s0 + $0x18] sm:$0xff]
    %v48 = vld [vmem:[%s0 + $0x20] sm:$0xff]
    %v49 = vld [vmem:[%s0 + $0x28] sm:$0xff]
    %v50 = vld [vmem:[%s0 + $0x30] sm:$0xff]
    %v51 = vld [vmem:[%s0 + $0x38] sm:$0xff]
    %v52 = vld [vmem:[%s0 + $0x40] sm:$0xff]
    %v53 = vld [vmem:[%s0 + $0x48] sm:$0xff]
    %v54 = vld [vmem:[%s0 + $0x50] sm:$0xff]
    %v55 = vld [vmem:[%s0 + $0x58] sm:$0xff]
    %v56 = vld [vmem:[%s0 + $0x60] sm:$0xff]
    %v57 = vld [vmem:[%s0 + $0x68] sm:$0xff]
    %v58 = vld [vmem:[%s0 + $0x70] sm:$0xff]
    %v59 = vld [vmem:[%s0 + $0x78] sm:$0xff]
    %v60 = vld [vmem:[%s0 + $0x80] sm:$0xff]
    %v61 = vld [vmem:[%s0 + $0x88] sm:$0xff]
    %v62 = vld [vmem:[%s0 + $0x90] sm:$0xff]
    %v63 = vld [vmem:[%s0 + $0x98] sm:$0xff]
    %v64 = vld [vmem:[%s0 + $0xa0] sm:$0xff]
    %v65 = vld [vmem:[%s0 + $0xa8] sm:$0xff]
    %v66 = vld [vmem:[%s0 + $0xb0] sm:$0xff]
    %v67 = vld [vmem:[%s0 + $0xb8] sm:$0xff]
    %v68 = vld [vmem:[%s0 + $0xc0] sm:$0xff]
    %v69 = vld [vmem:[%s0 + $0xc8] sm:$0xff]
    %v70 = vld [vmem:[%s0 + $0xd0] sm:$0xff]
    %v71 = vld [vmem:[%s0 + $0xd8] sm:$0xff]
    %v72 = vld [vmem:[%s0 + $0xe0] sm:$0xff]
    %v73 = vld [vmem:[%s0 + $0xe8] sm:$0xff]
    %v74 = vld [vmem:[%s0 + $0xf0] sm:$0xff]
    %v75 = vld [vmem:[%s0 + $0xf8] sm:$0xff]
    %v76 = vld [vmem:[%s1] sm:$0xf]
    %v77 = vld [vmem:[%s3] ss:$4 sm:$0x3]
    %v79 = vlaneseq
    %v80 = vshrl.u32 %v79, 7
    %v81 = vsub.s32 0, %v80
    %v82 = vrot.slane %v77, %v81
    %v83 = vlaneseq
    %v84 = vshrl.u32 %v83, 7
    %v85 = vsub.s32 1, %v84
    %v86 = vrot.slane %v77, %v85
    %v89 = vpack.c.bf16 %v45, %v44
    %v90 = vpack.c.bf16 %v47, %v46
    %v91 = vpack.c.bf16 %v49, %v48
    %v92 = vpack.c.bf16 %v51, %v50
    %v93 = vpack.c.bf16 %v53, %v52
    %v94 = vpack.c.bf16 %v55, %v54
    %v95 = vpack.c.bf16 %v57, %v56
    %v96 = vpack.c.bf16 %v59, %v58
    %v99 = vunpack.c.l.s4 1983009808
    %v100 = vunpack.c.0.s8 %v99
    %v101 = vlaneseq
    %v102 = vshrl.u32 %v101, 7
    %v103 = vsub.s32 %v100, %v102
    %v104 = vrot.slane %v76, %v103
    %v105 = vcombine.high %v104, %v104
    %vm106 = vcmask 31744
    %v108 = vsel %vm106, %v89, 0
    %v111 = vsel %vm106, %v90, 0
    %v114 = vsel %vm106, %v91, 0
    %v117 = vsel %vm106, %v92, 0
    %v120 = vsel %vm106, %v93, 0
    %v123 = vsel %vm106, %v94, 0
    %v126 = vsel %vm106, %v95, 0
    %v129 = vsel %vm106, %v96, 0
    %vm131 = vcmask 1041408
    %v133 = vsel %vm131, %v104, 0
    %v136 = vsel %vm131, %v105, 0
    %138 = vmatprep.subr.bf16.mxu0 %v136
    %139 = vmatpush1.bf16.msra.mxu0 %v133
    %140 = vmatprep.subr.bf16.mxu0 0
    %141 = vmatpush1.bf16.msra.mxu0 0
    %142 = vmatprep.subr.bf16.mxu0 0
    %143 = vmatpush1.bf16.msra.mxu0 0
    %144 = vmatprep.subr.bf16.mxu0 0
    %145 = vmatpush1.bf16.msra.mxu0 0
    %146 = vmatprep.subr.bf16.mxu0 0
    %147 = vmatpush1.bf16.msra.mxu0 0
    %148 = vmatprep.subr.bf16.mxu0 0
    %149 = vmatpush1.bf16.msra.mxu0 0
    %150 = vmatprep.subr.bf16.mxu0 0
    %151 = vmatpush1.bf16.msra.mxu0 0
    %152 = vmatprep.subr.bf16.mxu0 0
    %153 = vmatpush1.bf16.msra.mxu0 0
    %154 = vmatprep.subr.bf16.mxu0 0
    %155 = vmatpush1.bf16.msra.mxu0 0
    %156 = vmatprep.subr.bf16.mxu0 0
    %157 = vmatpush1.bf16.msra.mxu0 0
    %158 = vmatprep.subr.bf16.mxu0 0
    %159 = vmatpush1.bf16.msra.mxu0 0
    %160 = vmatprep.subr.bf16.mxu0 0
    %161 = vmatpush1.bf16.msra.mxu0 0
    %162 = vmatprep.subr.bf16.mxu0 0
    %163 = vmatpush1.bf16.msra.mxu0 0
    %164 = vmatprep.subr.bf16.mxu0 0
    %165 = vmatpush1.bf16.msra.mxu0 0
    %166 = vmatprep.subr.bf16.mxu0 0
    %167 = vmatpush1.bf16.msra.mxu0 0
    %168 = vmatprep.subr.bf16.mxu0 0
    %169 = vmatpush1.bf16.msra.mxu0 0
    %170 = vmatprep.mubr.bf16.mxu0 0
    %171 = vmatmul.mubr.bf16.gmra.mrb[0].mxu0 %v108
    %v172 = vpop.f32.mrb[0].mxu0
    %v173 = vadd.f32 %v82, %v172
    %v174 = vpop.f32.mrb[0].mxu0
    %v175 = vadd.f32 %v86, %v174
    %v176 = vpop.f32.mrb[0].mxu0
    %v177 = vadd.f32 %v82, %v176
    %v178 = vpop.f32.mrb[0].mxu0
    %v179 = vadd.f32 %v86, %v178
    %180 = vmatprep.mubr.bf16.mxu0 0
    %181 = vmatmul.mubr.bf16.gmra.mrb[0].mxu0 %v111
    %v182 = vpop.f32.mrb[0].mxu0
    %v183 = vadd.f32 %v82, %v182
    %v184 = vpop.f32.mrb[0].mxu0
    %v185 = vadd.f32 %v86, %v184
    %v186 = vpop.f32.mrb[0].mxu0
    %v187 = vadd.f32 %v82, %v186
    %v188 = vpop.f32.mrb[0].mxu0
    %v189 = vadd.f32 %v86, %v188
    %190 = vmatprep.mubr.bf16.mxu0 0
    %191 = vmatmul.mubr.bf16.gmra.mrb[0].mxu0 %v114
    %v192 = vpop.f32.mrb[0].mxu0
    %v193 = vadd.f32 %v82, %v192
    %v194 = vpop.f32.mrb[0].mxu0
    %v195 = vadd.f32 %v86, %v194
    %v196 = vpop.f32.mrb[0].mxu0
    %v197 = vadd.f32 %v82, %v196
    %v198 = vpop.f32.mrb[0].mxu0
    %v199 = vadd.f32 %v86, %v198
    %200 = vmatprep.mubr.bf16.mxu0 0
    %201 = vmatmul.mubr.bf16.gmra.mrb[0].mxu0 %v117
    %v202 = vpop.f32.mrb[0].mxu0
    %v203 = vadd.f32 %v82, %v202
    %v204 = vpop.f32.mrb[0].mxu0
    %v205 = vadd.f32 %v86, %v204
    %v206 = vpop.f32.mrb[0].mxu0
    %v207 = vadd.f32 %v82, %v206
    %v208 = vpop.f32.mrb[0].mxu0
    %v209 = vadd.f32 %v86, %v208
    %210 = vmatprep.mubr.bf16.mxu0 0
    %211 = vmatmul.mubr.bf16.gmra.mrb[0].mxu0 %v120
    %v212 = vpop.f32.mrb[0].mxu0
    %v213 = vadd.f32 %v82, %v212
    %v214 = vpop.f32.mrb[0].mxu0
    %v215 = vadd.f32 %v86, %v214
    %v216 = vpop.f32.mrb[0].mxu0
    %v217 = vadd.f32 %v82, %v216
    %v218 = vpop.f32.mrb[0].mxu0
    %v219 = vadd.f32 %v86, %v218
    %220 = vmatprep.mubr.bf16.mxu0 0
    %221 = vmatmul.mubr.bf16.gmra.mrb[0].mxu0 %v123
    %v222 = vpop.f32.mrb[0].mxu0
    %v223 = vadd.f32 %v82, %v222
    %v224 = vpop.f32.mrb[0].mxu0
    %v225 = vadd.f32 %v86, %v224
    %v226 = vpop.f32.mrb[0].mxu0
    %v227 = vadd.f32 %v82, %v226
    %v228 = vpop.f32.mrb[0].mxu0
    %v229 = vadd.f32 %v86, %v228
    %230 = vmatprep.mubr.bf16.mxu0 0
    %231 = vmatmul.mubr.bf16.gmra.mrb[0].mxu0 %v126
    %v232 = vpop.f32.mrb[0].mxu0
    %v233 = vadd.f32 %v82, %v232
    %v234 = vpop.f32.mrb[0].mxu0
    %v235 = vadd.f32 %v86, %v234
    %v236 = vpop.f32.mrb[0].mxu0
    %v237 = vadd.f32 %v82, %v236
    %v238 = vpop.f32.mrb[0].mxu0
    %v239 = vadd.f32 %v86, %v238
    %240 = vmatprep.mubr.bf16.mxu0 0
    %241 = vmatmul.mubr.bf16.gmra.mrb[0].mxu0 %v129
    %v242 = vpop.f32.mrb[0].mxu0
    %v243 = vadd.f32 %v82, %v242
    %v244 = vpop.f32.mrb[0].mxu0
    %v245 = vadd.f32 %v86, %v244
    %v246 = vpop.f32.mrb[0].mxu0
    %v247 = vadd.f32 %v82, %v246
    %v248 = vpop.f32.mrb[0].mxu0
    %v249 = vadd.f32 %v86, %v248
    %250 = vdwg.mxu0
    %v251 = vmax.f32 %v173, 0.0
    %v252 = vmax.f32 %v175, 0.0
    %v253 = vmax.f32 %v177, 0.0
    %v254 = vmax.f32 %v179, 0.0
    %v255 = vmax.f32 %v183, 0.0
    %v256 = vmax.f32 %v185, 0.0
    %v257 = vmax.f32 %v187, 0.0
    %v258 = vmax.f32 %v189, 0.0
    %v259 = vmax.f32 %v193, 0.0
    %v260 = vmax.f32 %v195, 0.0
    %v261 = vmax.f32 %v197, 0.0
    %v262 = vmax.f32 %v199, 0.0
    %v263 = vmax.f32 %v203, 0.0
    %v264 = vmax.f32 %v205, 0.0
    %v265 = vmax.f32 %v207, 0.0
    %v266 = vmax.f32 %v209, 0.0
    %v267 = vmax.f32 %v213, 0.0
    %v268 = vmax.f32 %v215, 0.0
    %v269 = vmax.f32 %v217, 0.0
    %v270 = vmax.f32 %v219, 0.0
    %v271 = vmax.f32 %v223, 0.0
    %v272 = vmax.f32 %v225, 0.0
    %v273 = vmax.f32 %v227, 0.0
    %v274 = vmax.f32 %v229, 0.0
    %v275 = vmax.f32 %v233, 0.0
    %v276 = vmax.f32 %v235, 0.0
    %v277 = vmax.f32 %v237, 0.0
    %v278 = vmax.f32 %v239, 0.0
    %v279 = vmax.f32 %v243, 0.0
    %v280 = vmax.f32 %v245, 0.0
    %v281 = vmax.f32 %v247, 0.0
    %v282 = vmax.f32 %v249, 0.0
    %v283 = vpack.c.bf16 %v61, %v60
    %v284 = vpack.c.bf16 %v63, %v62
    %v285 = vpack.c.bf16 %v65, %v64
    %v286 = vpack.c.bf16 %v67, %v66
    %v287 = vpack.c.bf16 %v69, %v68
    %v288 = vpack.c.bf16 %v71, %v70
    %v289 = vpack.c.bf16 %v73, %v72
    %v290 = vpack.c.bf16 %v75, %v74
    %v292 = vsel %vm106, %v283, 0
    %v295 = vsel %vm106, %v284, 0
    %v298 = vsel %vm106, %v285, 0
    %v301 = vsel %vm106, %v286, 0
    %v304 = vsel %vm106, %v287, 0
    %v307 = vsel %vm106, %v288, 0
    %v310 = vsel %vm106, %v289, 0
    %v313 = vsel %vm106, %v290, 0
    %315 = vmatprep.subr.bf16.mxu0 %v136
    %316 = vmatpush1.bf16.msra.mxu0 %v133
    %317 = vmatprep.subr.bf16.mxu0 0
    %318 = vmatpush1.bf16.msra.mxu0 0
    %319 = vmatprep.subr.bf16.mxu0 0
    %320 = vmatpush1.bf16.msra.mxu0 0
    %321 = vmatprep.subr.bf16.mxu0 0
    %322 = vmatpush1.bf16.msra.mxu0 0
    %323 = vmatprep.subr.bf16.mxu0 0
    %324 = vmatpush1.bf16.msra.mxu0 0
    %325 = vmatprep.subr.bf16.mxu0 0
    %326 = vmatpush1.bf16.msra.mxu0 0
    %327 = vmatprep.subr.bf16.mxu0 0
    %328 = vmatpush1.bf16.msra.mxu0 0
    %329 = vmatprep.subr.bf16.mxu0 0
    %330 = vmatpush1.bf16.msra.mxu0 0
    %331 = vmatprep.subr.bf16.mxu0 0
    %332 = vmatpush1.bf16.msra.mxu0 0
    %333 = vmatprep.subr.bf16.mxu0 0
    %334 = vmatpush1.bf16.msra.mxu0 0
    %335 = vmatprep.subr.bf16.mxu0 0
    %336 = vmatpush1.bf16.msra.mxu0 0
    %337 = vmatprep.subr.bf16.mxu0 0
    %338 = vmatpush1.bf16.msra.mxu0 0
    %339 = vmatprep.subr.bf16.mxu0 0
    %340 = vmatpush1.bf16.msra.mxu0 0
    %341 = vmatprep.subr.bf16.mxu0 0
    %342 = vmatpush1.bf16.msra.mxu0 0
    %343 = vmatprep.subr.bf16.mxu0 0
    %344 = vmatpush1.bf16.msra.mxu0 0
    %345 = vmatprep.subr.bf16.mxu0 0
    %346 = vmatpush1.bf16.msra.mxu0 0
    %347 = vmatprep.mubr.bf16.mxu0 0
    %348 = vmatmul.mubr.bf16.gmra.mrb[0].mxu0 %v292
    %v349 = vpop.f32.mrb[0].mxu0
    %v350 = vadd.f32 %v82, %v349
    %v351 = vpop.f32.mrb[0].mxu0
    %v352 = vadd.f32 %v86, %v351
    %v353 = vpop.f32.mrb[0].mxu0
    %v354 = vadd.f32 %v82, %v353
    %v355 = vpop.f32.mrb[0].mxu0
    %v356 = vadd.f32 %v86, %v355
    %357 = vmatprep.mubr.bf16.mxu0 0
    %358 = vmatmul.mubr.bf16.gmra.mrb[0].mxu0 %v295
    %v359 = vpop.f32.mrb[0].mxu0
    %v360 = vadd.f32 %v82, %v359
    %v361 = vpop.f32.mrb[0].mxu0
    %v362 = vadd.f32 %v86, %v361
    %v363 = vpop.f32.mrb[0].mxu0
    %v364 = vadd.f32 %v82, %v363
    %v365 = vpop.f32.mrb[0].mxu0
    %v366 = vadd.f32 %v86, %v365
    %367 = vmatprep.mubr.bf16.mxu0 0
    %368 = vmatmul.mubr.bf16.gmra.mrb[0].mxu0 %v298
    %v369 = vpop.f32.mrb[0].mxu0
    %v370 = vadd.f32 %v82, %v369
    %v371 = vpop.f32.mrb[0].mxu0
    %v372 = vadd.f32 %v86, %v371
    %v373 = vpop.f32.mrb[0].mxu0
    %v374 = vadd.f32 %v82, %v373
    %v375 = vpop.f32.mrb[0].mxu0
    %v376 = vadd.f32 %v86, %v375
    %377 = vmatprep.mubr.bf16.mxu0 0
    %378 = vmatmul.mubr.bf16.gmra.mrb[0].mxu0 %v301
    %v379 = vpop.f32.mrb[0].mxu0
    %v380 = vadd.f32 %v82, %v379
    %v381 = vpop.f32.mrb[0].mxu0
    %v382 = vadd.f32 %v86, %v381
    %v383 = vpop.f32.mrb[0].mxu0
    %v384 = vadd.f32 %v82, %v383
    %v385 = vpop.f32.mrb[0].mxu0
    %v386 = vadd.f32 %v86, %v385
    %387 = vmatprep.mubr.bf16.mxu0 0
    %388 = vmatmul.mubr.bf16.gmra.mrb[0].mxu0 %v304
    %v389 = vpop.f32.mrb[0].mxu0
    %v390 = vadd.f32 %v82, %v389
    %v391 = vpop.f32.mrb[0].mxu0
    %v392 = vadd.f32 %v86, %v391
    %v393 = vpop.f32.mrb[0].mxu0
    %v394 = vadd.f32 %v82, %v393
    %v395 = vpop.f32.mrb[0].mxu0
    %v396 = vadd.f32 %v86, %v395
    %397 = vmatprep.mubr.bf16.mxu0 0
    %398 = vmatmul.mubr.bf16.gmra.mrb[0].mxu0 %v307
    %v399 = vpop.f32.mrb[0].mxu0
    %v400 = vadd.f32 %v82, %v399
    %v401 = vpop.f32.mrb[0].mxu0
    %v402 = vadd.f32 %v86, %v401
    %v403 = vpop.f32.mrb[0].mxu0
    %v404 = vadd.f32 %v82, %v403
    %v405 = vpop.f32.mrb[0].mxu0
    %v406 = vadd.f32 %v86, %v405
    %407 = vmatprep.mubr.bf16.mxu0 0
    %408 = vmatmul.mubr.bf16.gmra.mrb[0].mxu0 %v310
    %v409 = vpop.f32.mrb[0].mxu0
    %v410 = vadd.f32 %v82, %v409
    %v411 = vpop.f32.mrb[0].mxu0
    %v412 = vadd.f32 %v86, %v411
    %v413 = vpop.f32.mrb[0].mxu0
    %v414 = vadd.f32 %v82, %v413
    %v415 = vpop.f32.mrb[0].mxu0
    %v416 = vadd.f32 %v86, %v415
    %417 = vmatprep.mubr.bf16.mxu0 0
    %418 = vmatmul.mubr.bf16.gmra.mrb[0].mxu0 %v313
    %v419 = vpop.f32.mrb[0].mxu0
    %v420 = vadd.f32 %v82, %v419
    %v421 = vpop.f32.mrb[0].mxu0
    %v422 = vadd.f32 %v86, %v421
    %v423 = vpop.f32.mrb[0].mxu0
    %v424 = vadd.f32 %v82, %v423
    %v425 = vpop.f32.mrb[0].mxu0
    %v426 = vadd.f32 %v86, %v425
    %427 = vdwg.mxu0
    %v428 = vmax.f32 %v350, 0.0
    %v429 = vmax.f32 %v352, 0.0
    %v430 = vmax.f32 %v354, 0.0
    %v431 = vmax.f32 %v356, 0.0
    %v432 = vmax.f32 %v360, 0.0
    %v433 = vmax.f32 %v362, 0.0
    %v434 = vmax.f32 %v364, 0.0
    %v435 = vmax.f32 %v366, 0.0
    %v436 = vmax.f32 %v370, 0.0
    %v437 = vmax.f32 %v372, 0.0
    %v438 = vmax.f32 %v374, 0.0
    %v439 = vmax.f32 %v376, 0.0
    %v440 = vmax.f32 %v380, 0.0
    %v441 = vmax.f32 %v382, 0.0
    %v442 = vmax.f32 %v384, 0.0
    %v443 = vmax.f32 %v386, 0.0
    %v444 = vmax.f32 %v390, 0.0
    %v445 = vmax.f32 %v392, 0.0
    %v446 = vmax.f32 %v394, 0.0
    %v447 = vmax.f32 %v396, 0.0
    %v448 = vmax.f32 %v400, 0.0
    %v449 = vmax.f32 %v402, 0.0
    %v450 = vmax.f32 %v404, 0.0
    %v451 = vmax.f32 %v406, 0.0
    %v452 = vmax.f32 %v410, 0.0
    %v453 = vmax.f32 %v412, 0.0
    %v454 = vmax.f32 %v414, 0.0
    %v455 = vmax.f32 %v416, 0.0
    %v456 = vmax.f32 %v420, 0.0
    %v457 = vmax.f32 %v422, 0.0
    %v458 = vmax.f32 %v424, 0.0
    %v459 = vmax.f32 %v426, 0.0
    %v460 = vld [vmem:[#allocation2] sm:$0xff]
    %v461 = vld [vmem:[#allocation2 + $0x8] sm:$0xff]
    %v462 = vld [vmem:[#allocation2 + $0x10] sm:$0xff]
    %v463 = vld [vmem:[#allocation2 + $0x18] sm:$0xff]
    %v464 = vld [vmem:[#allocation2 + $0x20] sm:$0xff]
    %v465 = vld [vmem:[#allocation2 + $0x28] sm:$0xff]
    %v466 = vld [vmem:[#allocation2 + $0x30] sm:$0xff]
    %v467 = vld [vmem:[#allocation2 + $0x38] sm:$0xff]
    %v468 = vld [vmem:[#allocation2 + $0x40] sm:$0xff]
    %v469 = vld [vmem:[#allocation2 + $0x48] sm:$0xff]
    %v470 = vld [vmem:[#allocation2 + $0x50] sm:$0xff]
    %v471 = vld [vmem:[#allocation2 + $0x58] sm:$0xff]
    %v472 = vld [vmem:[#allocation2 + $0x60] sm:$0xff]
    %v473 = vld [vmem:[#allocation2 + $0x68] sm:$0xff]
    %v474 = vld [vmem:[#allocation2 + $0x70] sm:$0xff]
    %v475 = vld [vmem:[#allocation2 + $0x78] sm:$0xff]
    %v476 = vld [vmem:[#allocation2 + $0x80] sm:$0xff]
    %v477 = vld [vmem:[#allocation2 + $0x88] sm:$0xff]
    %v478 = vld [vmem:[#allocation2 + $0x90] sm:$0xff]
    %v479 = vld [vmem:[#allocation2 + $0x98] sm:$0xff]
    %v480 = vld [vmem:[#allocation2 + $0xa0] sm:$0xff]
    %v481 = vld [vmem:[#allocation2 + $0xa8] sm:$0xff]
    %v482 = vld [vmem:[#allocation2 + $0xb0] sm:$0xff]
    %v483 = vld [vmem:[#allocation2 + $0xb8] sm:$0xff]
    %v484 = vld [vmem:[#allocation2 + $0xc0] sm:$0xff]
    %v485 = vld [vmem:[#allocation2 + $0xc8] sm:$0xff]
    %v486 = vld [vmem:[#allocation2 + $0xd0] sm:$0xff]
    %v487 = vld [vmem:[#allocation2 + $0xd8] sm:$0xff]
    %v488 = vld [vmem:[#allocation2 + $0xe0] sm:$0xff]
    %v489 = vld [vmem:[#allocation2 + $0xe8] sm:$0xff]
    %v490 = vld [vmem:[#allocation2 + $0xf0] sm:$0xff]
    %v491 = vld [vmem:[#allocation2 + $0xf8] sm:$0xff]
    %s492 = scalar_lea.vmem %s3, 1
    %v493 = vld [vmem:[%s492] ss:$4 sm:$0x3]
    %v495 = vlaneseq
    %v496 = vshrl.u32 %v495, 7
    %v497 = vsub.s32 0, %v496
    %v498 = vrot.slane %v493, %v497
    %v499 = vlaneseq
    %v500 = vshrl.u32 %v499, 7
    %v501 = vsub.s32 1, %v500
    %v502 = vrot.slane %v493, %v501
    %v505 = vpack.c.bf16 %v253, %v251
    %v506 = vpack.c.bf16 %v254, %v252
    %v507 = vpack.c.bf16 %v257, %v255
    %v508 = vpack.c.bf16 %v258, %v256
    %v509 = vpack.c.bf16 %v261, %v259
    %v510 = vpack.c.bf16 %v262, %v260
    %v511 = vpack.c.bf16 %v265, %v263
    %v512 = vpack.c.bf16 %v266, %v264
    %v513 = vpack.c.bf16 %v269, %v267
    %v514 = vpack.c.bf16 %v270, %v268
    %v515 = vpack.c.bf16 %v273, %v271
    %v516 = vpack.c.bf16 %v274, %v272
    %v517 = vpack.c.bf16 %v277, %v275
    %v518 = vpack.c.bf16 %v278, %v276
    %v519 = vpack.c.bf16 %v281, %v279
    %v520 = vpack.c.bf16 %v282, %v280
    %v553 = vunpack.c.l.b16 %v460
    %v554 = vunpack.c.h.b16 %v460
    %v555 = vunpack.c.l.b16 %v461
    %v556 = vunpack.c.h.b16 %v461
    %v557 = vunpack.c.l.b16 %v462
    %v558 = vunpack.c.h.b16 %v462
    %v559 = vunpack.c.l.b16 %v463
    %v560 = vunpack.c.h.b16 %v463
    %v561 = vunpack.c.l.b16 %v464
    %v562 = vunpack.c.h.b16 %v464
    %v563 = vunpack.c.l.b16 %v465
    %v564 = vunpack.c.h.b16 %v465
    %v565 = vunpack.c.l.b16 %v466
    %v566 = vunpack.c.h.b16 %v466
    %v567 = vunpack.c.l.b16 %v467
    %v568 = vunpack.c.h.b16 %v467
    %v569 = vunpack.c.l.b16 %v468
    %v570 = vunpack.c.h.b16 %v468
    %v571 = vunpack.c.l.b16 %v469
    %v572 = vunpack.c.h.b16 %v469
    %v573 = vunpack.c.l.b16 %v470
    %v574 = vunpack.c.h.b16 %v470
    %v575 = vunpack.c.l.b16 %v471
    %v576 = vunpack.c.h.b16 %v471
    %v577 = vunpack.c.l.b16 %v472
    %v578 = vunpack.c.h.b16 %v472
    %v579 = vunpack.c.l.b16 %v473
    %v580 = vunpack.c.h.b16 %v473
    %v581 = vunpack.c.l.b16 %v474
    %v582 = vunpack.c.h.b16 %v474
    %v583 = vunpack.c.l.b16 %v475
    %v584 = vunpack.c.h.b16 %v475
    %v585 = vunpack.c.l.b16 %v476
    %v586 = vunpack.c.h.b16 %v476
    %v587 = vunpack.c.l.b16 %v477
    %v588 = vunpack.c.h.b16 %v477
    %v589 = vunpack.c.l.b16 %v478
    %v590 = vunpack.c.h.b16 %v478
    %v591 = vunpack.c.l.b16 %v479
    %v592 = vunpack.c.h.b16 %v479
    %v593 = vunpack.c.l.b16 %v480
    %v594 = vunpack.c.h.b16 %v480
    %v595 = vunpack.c.l.b16 %v481
    %v596 = vunpack.c.h.b16 %v481
    %v597 = vunpack.c.l.b16 %v482
    %v598 = vunpack.c.h.b16 %v482
    %v599 = vunpack.c.l.b16 %v483
    %v600 = vunpack.c.h.b16 %v483
    %v601 = vunpack.c.l.b16 %v484
    %v602 = vunpack.c.h.b16 %v484
    %v603 = vunpack.c.l.b16 %v485
    %v604 = vunpack.c.h.b16 %v485
    %v605 = vunpack.c.l.b16 %v486
    %v606 = vunpack.c.h.b16 %v486
    %v607 = vunpack.c.l.b16 %v487
    %v608 = vunpack.c.h.b16 %v487
    %v609 = vunpack.c.l.b16 %v488
    %v610 = vunpack.c.h.b16 %v488
    %v611 = vunpack.c.l.b16 %v489
    %v612 = vunpack.c.h.b16 %v489
    %v613 = vunpack.c.l.b16 %v490
    %v614 = vunpack.c.h.b16 %v490
    %v615 = vunpack.c.l.b16 %v491
    %v616 = vunpack.c.h.b16 %v491
    %v617 = vpack.c.b16 %v555, %v553
    %v618 = vpack.c.b16 %v556, %v554
    %v619 = vpack.c.b16 %v559, %v557
    %v620 = vpack.c.b16 %v560, %v558
    %v621 = vpack.c.b16 %v563, %v561
    %v622 = vpack.c.b16 %v564, %v562
    %v623 = vpack.c.b16 %v567, %v565
    %v624 = vpack.c.b16 %v568, %v566
    %v625 = vpack.c.b16 %v571, %v569
    %v626 = vpack.c.b16 %v572, %v570
    %v627 = vpack.c.b16 %v575, %v573
    %v628 = vpack.c.b16 %v576, %v574
    %v629 = vpack.c.b16 %v579, %v577
    %v630 = vpack.c.b16 %v580, %v578
    %v631 = vpack.c.b16 %v583, %v581
    %v632 = vpack.c.b16 %v584, %v582
    %v633 = vpack.c.b16 %v587, %v585
    %v634 = vpack.c.b16 %v588, %v586
    %v635 = vpack.c.b16 %v591, %v589
    %v636 = vpack.c.b16 %v592, %v590
    %v637 = vpack.c.b16 %v595, %v593
    %v638 = vpack.c.b16 %v596, %v594
    %v639 = vpack.c.b16 %v599, %v597
    %v640 = vpack.c.b16 %v600, %v598
    %v641 = vpack.c.b16 %v603, %v601
    %v642 = vpack.c.b16 %v604, %v602
    %v643 = vpack.c.b16 %v607, %v605
    %v644 = vpack.c.b16 %v608, %v606
    %v645 = vpack.c.b16 %v611, %v609
    %v646 = vpack.c.b16 %v612, %v610
    %v647 = vpack.c.b16 %v615, %v613
    %v648 = vpack.c.b16 %v616, %v614
    %681 = vmatprep.subr.bf16.mxu0 %v618
    %682 = vmatpush1.bf16.msra.mxu0 %v617
    %683 = vmatprep.subr.bf16.mxu0 %v620
    %684 = vmatpush1.bf16.msra.mxu0 %v619
    %685 = vmatprep.subr.bf16.mxu0 %v622
    %686 = vmatpush1.bf16.msra.mxu0 %v621
    %687 = vmatprep.subr.bf16.mxu0 %v624
    %688 = vmatpush1.bf16.msra.mxu0 %v623
    %689 = vmatprep.subr.bf16.mxu0 %v626
    %690 = vmatpush1.bf16.msra.mxu0 %v625
    %691 = vmatprep.subr.bf16.mxu0 %v628
    %692 = vmatpush1.bf16.msra.mxu0 %v627
    %693 = vmatprep.subr.bf16.mxu0 %v630
    %694 = vmatpush1.bf16.msra.mxu0 %v629
    %695 = vmatprep.subr.bf16.mxu0 %v632
    %696 = vmatpush1.bf16.msra.mxu0 %v631
    %697 = vmatprep.subr.bf16.mxu0 %v634
    %698 = vmatpush1.bf16.msra.mxu0 %v633
    %699 = vmatprep.subr.bf16.mxu0 %v636
    %700 = vmatpush1.bf16.msra.mxu0 %v635
    %701 = vmatprep.subr.bf16.mxu0 %v638
    %702 = vmatpush1.bf16.msra.mxu0 %v637
    %703 = vmatprep.subr.bf16.mxu0 %v640
    %704 = vmatpush1.bf16.msra.mxu0 %v639
    %705 = vmatprep.subr.bf16.mxu0 %v642
    %706 = vmatpush1.bf16.msra.mxu0 %v641
    %707 = vmatprep.subr.bf16.mxu0 %v644
    %708 = vmatpush1.bf16.msra.mxu0 %v643
    %709 = vmatprep.subr.bf16.mxu0 %v646
    %710 = vmatpush1.bf16.msra.mxu0 %v645
    %711 = vmatprep.subr.bf16.mxu0 %v648
    %712 = vmatpush1.bf16.msra.mxu0 %v647
    %713 = vmatprep.mubr.bf16.mxu0 %v506
    %714 = vmatmul.mubr.bf16.gmra.mrb[0].mxu0 %v505
    %v715 = vpop.f32.mrb[0].mxu0
    %v716 = vadd.f32 %v498, %v715
    %v717 = vpop.f32.mrb[0].mxu0
    %v718 = vadd.f32 %v502, %v717
    %v719 = vpop.f32.mrb[0].mxu0
    %v720 = vadd.f32 %v498, %v719
    %v721 = vpop.f32.mrb[0].mxu0
    %v722 = vadd.f32 %v502, %v721
    %723 = vmatprep.mubr.bf16.mxu0 %v508
    %724 = vmatmul.mubr.bf16.gmra.mrb[0].mxu0 %v507
    %v725 = vpop.f32.mrb[0].mxu0
    %v726 = vadd.f32 %v498, %v725
    %v727 = vpop.f32.mrb[0].mxu0
    %v728 = vadd.f32 %v502, %v727
    %v729 = vpop.f32.mrb[0].mxu0
    %v730 = vadd.f32 %v498, %v729
    %v731 = vpop.f32.mrb[0].mxu0
    %v732 = vadd.f32 %v502, %v731
    %733 = vmatprep.mubr.bf16.mxu0 %v510
    %734 = vmatmul.mubr.bf16.gmra.mrb[0].mxu0 %v509
    %v735 = vpop.f32.mrb[0].mxu0
    %v736 = vadd.f32 %v498, %v735
    %v737 = vpop.f32.mrb[0].mxu0
    %v738 = vadd.f32 %v502, %v737
    %v739 = vpop.f32.mrb[0].mxu0
    %v740 = vadd.f32 %v498, %v739
    %v741 = vpop.f32.mrb[0].mxu0
    %v742 = vadd.f32 %v502, %v741
    %743 = vmatprep.mubr.bf16.mxu0 %v512
    %744 = vmatmul.mubr.bf16.gmra.mrb[0].mxu0 %v511
    %v745 = vpop.f32.mrb[0].mxu0
    %v746 = vadd.f32 %v498, %v745
    %v747 = vpop.f32.mrb[0].mxu0
    %v748 = vadd.f32 %v502, %v747
    %v749 = vpop.f32.mrb[0].mxu0
    %v750 = vadd.f32 %v498, %v749
    %v751 = vpop.f32.mrb[0].mxu0
    %v752 = vadd.f32 %v502, %v751
    %753 = vmatprep.mubr.bf16.mxu0 %v514
    %754 = vmatmul.mubr.bf16.gmra.mrb[0].mxu0 %v513
    %v755 = vpop.f32.mrb[0].mxu0
    %v756 = vadd.f32 %v498, %v755
    %v757 = vpop.f32.mrb[0].mxu0
    %v758 = vadd.f32 %v502, %v757
    %v759 = vpop.f32.mrb[0].mxu0
    %v760 = vadd.f32 %v498, %v759
    %v761 = vpop.f32.mrb[0].mxu0
    %v762 = vadd.f32 %v502, %v761
    %763 = vmatprep.mubr.bf16.mxu0 %v516
    %764 = vmatmul.mubr.bf16.gmra.mrb[0].mxu0 %v515
    %v765 = vpop.f32.mrb[0].mxu0
    %v766 = vadd.f32 %v498, %v765
    %v767 = vpop.f32.mrb[0].mxu0
    %v768 = vadd.f32 %v502, %v767
    %v769 = vpop.f32.mrb[0].mxu0
    %v770 = vadd.f32 %v498, %v769
    %v771 = vpop.f32.mrb[0].mxu0
    %v772 = vadd.f32 %v502, %v771
    %773 = vmatprep.mubr.bf16.mxu0 %v518
    %774 = vmatmul.mubr.bf16.gmra.mrb[0].mxu0 %v517
    %v775 = vpop.f32.mrb[0].mxu0
    %v776 = vadd.f32 %v498, %v775
    %v777 = vpop.f32.mrb[0].mxu0
    %v778 = vadd.f32 %v502, %v777
    %v779 = vpop.f32.mrb[0].mxu0
    %v780 = vadd.f32 %v498, %v779
    %v781 = vpop.f32.mrb[0].mxu0
    %v782 = vadd.f32 %v502, %v781
    %783 = vmatprep.mubr.bf16.mxu0 %v520
    %784 = vmatmul.mubr.bf16.gmra.mrb[0].mxu0 %v519
    %v785 = vpop.f32.mrb[0].mxu0
    %v786 = vadd.f32 %v498, %v785
    %v787 = vpop.f32.mrb[0].mxu0
    %v788 = vadd.f32 %v502, %v787
    %v789 = vpop.f32.mrb[0].mxu0
    %v790 = vadd.f32 %v498, %v789
    %v791 = vpop.f32.mrb[0].mxu0
    %v792 = vadd.f32 %v502, %v791
    %793 = vdwg.mxu0
    %v794 = vmax.f32 %v716, 0.0
    %v795 = vmax.f32 %v718, 0.0
    %v796 = vmax.f32 %v720, 0.0
    %v797 = vmax.f32 %v722, 0.0
    %v798 = vmax.f32 %v726, 0.0
    %v799 = vmax.f32 %v728, 0.0
    %v800 = vmax.f32 %v730, 0.0
    %v801 = vmax.f32 %v732, 0.0
    %v802 = vmax.f32 %v736, 0.0
    %v803 = vmax.f32 %v738, 0.0
    %v804 = vmax.f32 %v740, 0.0
    %v805 = vmax.f32 %v742, 0.0
    %v806 = vmax.f32 %v746, 0.0
    %v807 = vmax.f32 %v748, 0.0
    %v808 = vmax.f32 %v750, 0.0
    %v809 = vmax.f32 %v752, 0.0
    %v810 = vmax.f32 %v756, 0.0
    %v811 = vmax.f32 %v758, 0.0
    %v812 = vmax.f32 %v760, 0.0
    %v813 = vmax.f32 %v762, 0.0
    %v814 = vmax.f32 %v766, 0.0
    %v815 = vmax.f32 %v768, 0.0
    %v816 = vmax.f32 %v770, 0.0
    %v817 = vmax.f32 %v772, 0.0
    %v818 = vmax.f32 %v776, 0.0
    %v819 = vmax.f32 %v778, 0.0
    %v820 = vmax.f32 %v780, 0.0
    %v821 = vmax.f32 %v782, 0.0
    %v822 = vmax.f32 %v786, 0.0
    %v823 = vmax.f32 %v788, 0.0
    %v824 = vmax.f32 %v790, 0.0
    %v825 = vmax.f32 %v792, 0.0
    %v826 = vpack.c.bf16 %v430, %v428
    %v827 = vpack.c.bf16 %v431, %v429
    %v828 = vpack.c.bf16 %v434, %v432
    %v829 = vpack.c.bf16 %v435, %v433
    %v830 = vpack.c.bf16 %v438, %v436
    %v831 = vpack.c.bf16 %v439, %v437
    %v832 = vpack.c.bf16 %v442, %v440
    %v833 = vpack.c.bf16 %v443, %v441
    %v834 = vpack.c.bf16 %v446, %v444
    %v835 = vpack.c.bf16 %v447, %v445
    %v836 = vpack.c.bf16 %v450, %v448
    %v837 = vpack.c.bf16 %v451, %v449
    %v838 = vpack.c.bf16 %v454, %v452
    %v839 = vpack.c.bf16 %v455, %v453
    %v840 = vpack.c.bf16 %v458, %v456
    %v841 = vpack.c.bf16 %v459, %v457
    %842 = vmatprep.subr.bf16.mxu0 %v618
    %843 = vmatpush1.bf16.msra.mxu0 %v617
    %844 = vmatprep.subr.bf16.mxu0 %v620
    %845 = vmatpush1.bf16.msra.mxu0 %v619
    %846 = vmatprep.subr.bf16.mxu0 %v622
    %847 = vmatpush1.bf16.msra.mxu0 %v621
    %848 = vmatprep.subr.bf16.mxu0 %v624
    %849 = vmatpush1.bf16.msra.mxu0 %v623
    %850 = vmatprep.subr.bf16.mxu0 %v626
    %851 = vmatpush1.bf16.msra.mxu0 %v625
    %852 = vmatprep.subr.bf16.mxu0 %v628
    %853 = vmatpush1.bf16.msra.mxu0 %v627
    %854 = vmatprep.subr.bf16.mxu0 %v630
    %855 = vmatpush1.bf16.msra.mxu0 %v629
    %856 = vmatprep.subr.bf16.mxu0 %v632
    %857 = vmatpush1.bf16.msra.mxu0 %v631
    %858 = vmatprep.subr.bf16.mxu0 %v634
    %859 = vmatpush1.bf16.msra.mxu0 %v633
    %860 = vmatprep.subr.bf16.mxu0 %v636
    %861 = vmatpush1.bf16.msra.mxu0 %v635
    %862 = vmatprep.subr.bf16.mxu0 %v638
    %863 = vmatpush1.bf16.msra.mxu0 %v637
    %864 = vmatprep.subr.bf16.mxu0 %v640
    %865 = vmatpush1.bf16.msra.mxu0 %v639
    %866 = vmatprep.subr.bf16.mxu0 %v642
    %867 = vmatpush1.bf16.msra.mxu0 %v641
    %868 = vmatprep.subr.bf16.mxu0 %v644
    %869 = vmatpush1.bf16.msra.mxu0 %v643
    %870 = vmatprep.subr.bf16.mxu0 %v646
    %871 = vmatpush1.bf16.msra.mxu0 %v645
    %872 = vmatprep.subr.bf16.mxu0 %v648
    %873 = vmatpush1.bf16.msra.mxu0 %v647
    %874 = vmatprep.mubr.bf16.mxu0 %v827
    %875 = vmatmul.mubr.bf16.gmra.mrb[0].mxu0 %v826
    %v876 = vpop.f32.mrb[0].mxu0
    %v877 = vadd.f32 %v498, %v876
    %v878 = vpop.f32.mrb[0].mxu0
    %v879 = vadd.f32 %v502, %v878
    %v880 = vpop.f32.mrb[0].mxu0
    %v881 = vadd.f32 %v498, %v880
    %v882 = vpop.f32.mrb[0].mxu0
    %v883 = vadd.f32 %v502, %v882
    %884 = vmatprep.mubr.bf16.mxu0 %v829
    %885 = vmatmul.mubr.bf16.gmra.mrb[0].mxu0 %v828
    %v886 = vpop.f32.mrb[0].mxu0
    %v887 = vadd.f32 %v498, %v886
    %v888 = vpop.f32.mrb[0].mxu0
    %v889 = vadd.f32 %v502, %v888
    %v890 = vpop.f32.mrb[0].mxu0
    %v891 = vadd.f32 %v498, %v890
    %v892 = vpop.f32.mrb[0].mxu0
    %v893 = vadd.f32 %v502, %v892
    %894 = vmatprep.mubr.bf16.mxu0 %v831
    %895 = vmatmul.mubr.bf16.gmra.mrb[0].mxu0 %v830
    %v896 = vpop.f32.mrb[0].mxu0
    %v897 = vadd.f32 %v498, %v896
    %v898 = vpop.f32.mrb[0].mxu0
    %v899 = vadd.f32 %v502, %v898
    %v900 = vpop.f32.mrb[0].mxu0
    %v901 = vadd.f32 %v498, %v900
    %v902 = vpop.f32.mrb[0].mxu0
    %v903 = vadd.f32 %v502, %v902
    %904 = vmatprep.mubr.bf16.mxu0 %v833
    %905 = vmatmul.mubr.bf16.gmra.mrb[0].mxu0 %v832
    %v906 = vpop.f32.mrb[0].mxu0
    %v907 = vadd.f32 %v498, %v906
    %v908 = vpop.f32.mrb[0].mxu0
    %v909 = vadd.f32 %v502, %v908
    %v910 = vpop.f32.mrb[0].mxu0
    %v911 = vadd.f32 %v498, %v910
    %v912 = vpop.f32.mrb[0].mxu0
    %v913 = vadd.f32 %v502, %v912
    %914 = vmatprep.mubr.bf16.mxu0 %v835
    %915 = vmatmul.mubr.bf16.gmra.mrb[0].mxu0 %v834
    %v916 = vpop.f32.mrb[0].mxu0
    %v917 = vadd.f32 %v498, %v916
    %v918 = vpop.f32.mrb[0].mxu0
    %v919 = vadd.f32 %v502, %v918
    %v920 = vpop.f32.mrb[0].mxu0
    %v921 = vadd.f32 %v498, %v920
    %v922 = vpop.f32.mrb[0].mxu0
    %v923 = vadd.f32 %v502, %v922
    %924 = vmatprep.mubr.bf16.mxu0 %v837
    %925 = vmatmul.mubr.bf16.gmra.mrb[0].mxu0 %v836
    %v926 = vpop.f32.mrb[0].mxu0
    %v927 = vadd.f32 %v498, %v926
    %v928 = vpop.f32.mrb[0].mxu0
    %v929 = vadd.f32 %v502, %v928
    %v930 = vpop.f32.mrb[0].mxu0
    %v931 = vadd.f32 %v498, %v930
    %v932 = vpop.f32.mrb[0].mxu0
    %v933 = vadd.f32 %v502, %v932
    %934 = vmatprep.mubr.bf16.mxu0 %v839
    %935 = vmatmul.mubr.bf16.gmra.mrb[0].mxu0 %v838
    %v936 = vpop.f32.mrb[0].mxu0
    %v937 = vadd.f32 %v498, %v936
    %v938 = vpop.f32.mrb[0].mxu0
    %v939 = vadd.f32 %v502, %v938
    %v940 = vpop.f32.mrb[0].mxu0
    %v941 = vadd.f32 %v498, %v940
    %v942 = vpop.f32.mrb[0].mxu0
    %v943 = vadd.f32 %v502, %v942
    %944 = vmatprep.mubr.bf16.mxu0 %v841
    %945 = vmatmul.mubr.bf16.gmra.mrb[0].mxu0 %v840
    %v946 = vpop.f32.mrb[0].mxu0
    %v947 = vadd.f32 %v498, %v946
    %v948 = vpop.f32.mrb[0].mxu0
    %v949 = vadd.f32 %v502, %v948
    %v950 = vpop.f32.mrb[0].mxu0
    %v951 = vadd.f32 %v498, %v950
    %v952 = vpop.f32.mrb[0].mxu0
    %v953 = vadd.f32 %v502, %v952
    %954 = vdwg.mxu0
    %v955 = vmax.f32 %v877, 0.0
    %v956 = vmax.f32 %v879, 0.0
    %v957 = vmax.f32 %v881, 0.0
    %v958 = vmax.f32 %v883, 0.0
    %v959 = vmax.f32 %v887, 0.0
    %v960 = vmax.f32 %v889, 0.0
    %v961 = vmax.f32 %v891, 0.0
    %v962 = vmax.f32 %v893, 0.0
    %v963 = vmax.f32 %v897, 0.0
    %v964 = vmax.f32 %v899, 0.0
    %v965 = vmax.f32 %v901, 0.0
    %v966 = vmax.f32 %v903, 0.0
    %v967 = vmax.f32 %v907, 0.0
    %v968 = vmax.f32 %v909, 0.0
    %v969 = vmax.f32 %v911, 0.0
    %v970 = vmax.f32 %v913, 0.0
    %v971 = vmax.f32 %v917, 0.0
    %v972 = vmax.f32 %v919, 0.0
    %v973 = vmax.f32 %v921, 0.0
    %v974 = vmax.f32 %v923, 0.0
    %v975 = vmax.f32 %v927, 0.0
    %v976 = vmax.f32 %v929, 0.0
    %v977 = vmax.f32 %v931, 0.0
    %v978 = vmax.f32 %v933, 0.0
    %v979 = vmax.f32 %v937, 0.0
    %v980 = vmax.f32 %v939, 0.0
    %v981 = vmax.f32 %v941, 0.0
    %v982 = vmax.f32 %v943, 0.0
    %v983 = vmax.f32 %v947, 0.0
    %v984 = vmax.f32 %v949, 0.0
    %v985 = vmax.f32 %v951, 0.0
    %v986 = vmax.f32 %v953, 0.0
    %s987 = scalar_lea.vmem [#allocation2], 256
    %v988 = vld [vmem:[%s987] sm:$0xff]
    %v989 = vld [vmem:[%s987 + $0x8] sm:$0xff]
    %v990 = vld [vmem:[%s987 + $0x10] sm:$0xff]
    %v991 = vld [vmem:[%s987 + $0x18] sm:$0xff]
    %v992 = vld [vmem:[%s987 + $0x20] sm:$0xff]
    %v993 = vld [vmem:[%s987 + $0x28] sm:$0xff]
    %v994 = vld [vmem:[%s987 + $0x30] sm:$0xff]
    %v995 = vld [vmem:[%s987 + $0x38] sm:$0xff]
    %v996 = vld [vmem:[%s987 + $0x40] sm:$0xff]
    %v997 = vld [vmem:[%s987 + $0x48] sm:$0xff]
    %v998 = vld [vmem:[%s987 + $0x50] sm:$0xff]
    %v999 = vld [vmem:[%s987 + $0x58] sm:$0xff]
    %v1000 = vld [vmem:[%s987 + $0x60] sm:$0xff]
    %v1001 = vld [vmem:[%s987 + $0x68] sm:$0xff]
    %v1002 = vld [vmem:[%s987 + $0x70] sm:$0xff]
    %v1003 = vld [vmem:[%s987 + $0x78] sm:$0xff]
    %v1004 = vld [vmem:[%s987 + $0x80] sm:$0xff]
    %v1005 = vld [vmem:[%s987 + $0x88] sm:$0xff]
    %v1006 = vld [vmem:[%s987 + $0x90] sm:$0xff]
    %v1007 = vld [vmem:[%s987 + $0x98] sm:$0xff]
    %v1008 = vld [vmem:[%s987 + $0xa0] sm:$0xff]
    %v1009 = vld [vmem:[%s987 + $0xa8] sm:$0xff]
    %v1010 = vld [vmem:[%s987 + $0xb0] sm:$0xff]
    %v1011 = vld [vmem:[%s987 + $0xb8] sm:$0xff]
    %v1012 = vld [vmem:[%s987 + $0xc0] sm:$0xff]
    %v1013 = vld [vmem:[%s987 + $0xc8] sm:$0xff]
    %v1014 = vld [vmem:[%s987 + $0xd0] sm:$0xff]
    %v1015 = vld [vmem:[%s987 + $0xd8] sm:$0xff]
    %v1016 = vld [vmem:[%s987 + $0xe0] sm:$0xff]
    %v1017 = vld [vmem:[%s987 + $0xe8] sm:$0xff]
    %v1018 = vld [vmem:[%s987 + $0xf0] sm:$0xff]
    %v1019 = vld [vmem:[%s987 + $0xf8] sm:$0xff]
    %s1020 = scalar_lea.vmem %s3, 2
    %v1021 = vld [vmem:[%s1020] ss:$4 sm:$0x3]
    %v1023 = vlaneseq
    %v1024 = vshrl.u32 %v1023, 7
    %v1025 = vsub.s32 0, %v1024
    %v1026 = vrot.slane %v1021, %v1025
    %v1027 = vlaneseq
    %v1028 = vshrl.u32 %v1027, 7
    %v1029 = vsub.s32 1, %v1028
    %v1030 = vrot.slane %v1021, %v1029
    %v1033 = vpack.c.bf16 %v796, %v794
    %v1034 = vpack.c.bf16 %v797, %v795
    %v1035 = vpack.c.bf16 %v800, %v798
    %v1036 = vpack.c.bf16 %v801, %v799
    %v1037 = vpack.c.bf16 %v804, %v802
    %v1038 = vpack.c.bf16 %v805, %v803
    %v1039 = vpack.c.bf16 %v808, %v806
    %v1040 = vpack.c.bf16 %v809, %v807
    %v1041 = vpack.c.bf16 %v812, %v810
    %v1042 = vpack.c.bf16 %v813, %v811
    %v1043 = vpack.c.bf16 %v816, %v814
    %v1044 = vpack.c.bf16 %v817, %v815
    %v1045 = vpack.c.bf16 %v820, %v818
    %v1046 = vpack.c.bf16 %v821, %v819
    %v1047 = vpack.c.bf16 %v824, %v822
    %v1048 = vpack.c.bf16 %v825, %v823
    %v1081 = vunpack.c.l.b16 %v988
    %v1082 = vunpack.c.h.b16 %v988
    %v1083 = vunpack.c.l.b16 %v989
    %v1084 = vunpack.c.h.b16 %v989
    %v1085 = vunpack.c.l.b16 %v990
    %v1086 = vunpack.c.h.b16 %v990
    %v1087 = vunpack.c.l.b16 %v991
    %v1088 = vunpack.c.h.b16 %v991
    %v1089 = vunpack.c.l.b16 %v992
    %v1090 = vunpack.c.h.b16 %v992
    %v1091 = vunpack.c.l.b16 %v993
    %v1092 = vunpack.c.h.b16 %v993
    %v1093 = vunpack.c.l.b16 %v994
    %v1094 = vunpack.c.h.b16 %v994
    %v1095 = vunpack.c.l.b16 %v995
    %v1096 = vunpack.c.h.b16 %v995
    %v1097 = vunpack.c.l.b16 %v996
    %v1098 = vunpack.c.h.b16 %v996
    %v1099 = vunpack.c.l.b16 %v997
    %v1100 = vunpack.c.h.b16 %v997
    %v1101 = vunpack.c.l.b16 %v998
    %v1102 = vunpack.c.h.b16 %v998
    %v1103 = vunpack.c.l.b16 %v999
    %v1104 = vunpack.c.h.b16 %v999
    %v1105 = vunpack.c.l.b16 %v1000
    %v1106 = vunpack.c.h.b16 %v1000
    %v1107 = vunpack.c.l.b16 %v1001
    %v1108 = vunpack.c.h.b16 %v1001
    %v1109 = vunpack.c.l.b16 %v1002
    %v1110 = vunpack.c.h.b16 %v1002
    %v1111 = vunpack.c.l.b16 %v1003
    %v1112 = vunpack.c.h.b16 %v1003
    %v1113 = vunpack.c.l.b16 %v1004
    %v1114 = vunpack.c.h.b16 %v1004
    %v1115 = vunpack.c.l.b16 %v1005
    %v1116 = vunpack.c.h.b16 %v1005
    %v1117 = vunpack.c.l.b16 %v1006
    %v1118 = vunpack.c.h.b16 %v1006
    %v1119 = vunpack.c.l.b16 %v1007
    %v1120 = vunpack.c.h.b16 %v1007
    %v1121 = vunpack.c.l.b16 %v1008
    %v1122 = vunpack.c.h.b16 %v1008
    %v1123 = vunpack.c.l.b16 %v1009
    %v1124 = vunpack.c.h.b16 %v1009
    %v1125 = vunpack.c.l.b16 %v1010
    %v1126 = vunpack.c.h.b16 %v1010
    %v1127 = vunpack.c.l.b16 %v1011
    %v1128 = vunpack.c.h.b16 %v1011
    %v1129 = vunpack.c.l.b16 %v1012
    %v1130 = vunpack.c.h.b16 %v1012
    %v1131 = vunpack.c.l.b16 %v1013
    %v1132 = vunpack.c.h.b16 %v1013
    %v1133 = vunpack.c.l.b16 %v1014
    %v1134 = vunpack.c.h.b16 %v1014
    %v1135 = vunpack.c.l.b16 %v1015
    %v1136 = vunpack.c.h.b16 %v1015
    %v1137 = vunpack.c.l.b16 %v1016
    %v1138 = vunpack.c.h.b16 %v1016
    %v1139 = vunpack.c.l.b16 %v1017
    %v1140 = vunpack.c.h.b16 %v1017
    %v1141 = vunpack.c.l.b16 %v1018
    %v1142 = vunpack.c.h.b16 %v1018
    %v1143 = vunpack.c.l.b16 %v1019
    %v1144 = vunpack.c.h.b16 %v1019
    %v1145 = vpack.c.b16 %v1083, %v1081
    %v1146 = vpack.c.b16 %v1084, %v1082
    %v1147 = vpack.c.b16 %v1087, %v1085
    %v1148 = vpack.c.b16 %v1088, %v1086
    %v1149 = vpack.c.b16 %v1091, %v1089
    %v1150 = vpack.c.b16 %v1092, %v1090
    %v1151 = vpack.c.b16 %v1095, %v1093
    %v1152 = vpack.c.b16 %v1096, %v1094
    %v1153 = vpack.c.b16 %v1099, %v1097
    %v1154 = vpack.c.b16 %v1100, %v1098
    %v1155 = vpack.c.b16 %v1103, %v1101
    %v1156 = vpack.c.b16 %v1104, %v1102
    %v1157 = vpack.c.b16 %v1107, %v1105
    %v1158 = vpack.c.b16 %v1108, %v1106
    %v1159 = vpack.c.b16 %v1111, %v1109
    %v1160 = vpack.c.b16 %v1112, %v1110
    %v1161 = vpack.c.b16 %v1115, %v1113
    %v1162 = vpack.c.b16 %v1116, %v1114
    %v1163 = vpack.c.b16 %v1119, %v1117
    %v1164 = vpack.c.b16 %v1120, %v1118
    %v1165 = vpack.c.b16 %v1123, %v1121
    %v1166 = vpack.c.b16 %v1124, %v1122
    %v1167 = vpack.c.b16 %v1127, %v1125
    %v1168 = vpack.c.b16 %v1128, %v1126
    %v1169 = vpack.c.b16 %v1131, %v1129
    %v1170 = vpack.c.b16 %v1132, %v1130
    %v1171 = vpack.c.b16 %v1135, %v1133
    %v1172 = vpack.c.b16 %v1136, %v1134
    %v1173 = vpack.c.b16 %v1139, %v1137
    %v1174 = vpack.c.b16 %v1140, %v1138
    %v1175 = vpack.c.b16 %v1143, %v1141
    %v1176 = vpack.c.b16 %v1144, %v1142
    %1209 = vmatprep.subr.bf16.mxu0 %v1146
    %1210 = vmatpush1.bf16.msra.mxu0 %v1145
    %1211 = vmatprep.subr.bf16.mxu0 %v1148
    %1212 = vmatpush1.bf16.msra.mxu0 %v1147
    %1213 = vmatprep.subr.bf16.mxu0 %v1150
    %1214 = vmatpush1.bf16.msra.mxu0 %v1149
    %1215 = vmatprep.subr.bf16.mxu0 %v1152
    %1216 = vmatpush1.bf16.msra.mxu0 %v1151
    %1217 = vmatprep.subr.bf16.mxu0 %v1154
    %1218 = vmatpush1.bf16.msra.mxu0 %v1153
    %1219 = vmatprep.subr.bf16.mxu0 %v1156
    %1220 = vmatpush1.bf16.msra.mxu0 %v1155
    %1221 = vmatprep.subr.bf16.mxu0 %v1158
    %1222 = vmatpush1.bf16.msra.mxu0 %v1157
    %1223 = vmatprep.subr.bf16.mxu0 %v1160
    %1224 = vmatpush1.bf16.msra.mxu0 %v1159
    %1225 = vmatprep.subr.bf16.mxu0 %v1162
    %1226 = vmatpush1.bf16.msra.mxu0 %v1161
    %1227 = vmatprep.subr.bf16.mxu0 %v1164
    %1228 = vmatpush1.bf16.msra.mxu0 %v1163
    %1229 = vmatprep.subr.bf16.mxu0 %v1166
    %1230 = vmatpush1.bf16.msra.mxu0 %v1165
    %1231 = vmatprep.subr.bf16.mxu0 %v1168
    %1232 = vmatpush1.bf16.msra.mxu0 %v1167
    %1233 = vmatprep.subr.bf16.mxu0 %v1170
    %1234 = vmatpush1.bf16.msra.mxu0 %v1169
    %1235 = vmatprep.subr.bf16.mxu0 %v1172
    %1236 = vmatpush1.bf16.msra.mxu0 %v1171
    %1237 = vmatprep.subr.bf16.mxu0 %v1174
    %1238 = vmatpush1.bf16.msra.mxu0 %v1173
    %1239 = vmatprep.subr.bf16.mxu0 %v1176
    %1240 = vmatpush1.bf16.msra.mxu0 %v1175
    %1241 = vmatprep.mubr.bf16.mxu0 %v1034
    %1242 = vmatmul.mubr.bf16.gmra.mrb[0].mxu0 %v1033
    %v1243 = vpop.f32.mrb[0].mxu0
    %v1244 = vadd.f32 %v1026, %v1243
    %v1245 = vpop.f32.mrb[0].mxu0
    %v1246 = vadd.f32 %v1030, %v1245
    %v1247 = vpop.f32.mrb[0].mxu0
    %v1248 = vadd.f32 %v1026, %v1247
    %v1249 = vpop.f32.mrb[0].mxu0
    %v1250 = vadd.f32 %v1030, %v1249
    %1251 = vmatprep.mubr.bf16.mxu0 %v1036
    %1252 = vmatmul.mubr.bf16.gmra.mrb[0].mxu0 %v1035
    %v1253 = vpop.f32.mrb[0].mxu0
    %v1254 = vadd.f32 %v1026, %v1253
    %v1255 = vpop.f32.mrb[0].mxu0
    %v1256 = vadd.f32 %v1030, %v1255
    %v1257 = vpop.f32.mrb[0].mxu0
    %v1258 = vadd.f32 %v1026, %v1257
    %v1259 = vpop.f32.mrb[0].mxu0
    %v1260 = vadd.f32 %v1030, %v1259
    %1261 = vmatprep.mubr.bf16.mxu0 %v1038
    %1262 = vmatmul.mubr.bf16.gmra.mrb[0].mxu0 %v1037
    %v1263 = vpop.f32.mrb[0].mxu0
    %v1264 = vadd.f32 %v1026, %v1263
    %v1265 = vpop.f32.mrb[0].mxu0
    %v1266 = vadd.f32 %v1030, %v1265
    %v1267 = vpop.f32.mrb[0].mxu0
    %v1268 = vadd.f32 %v1026, %v1267
    %v1269 = vpop.f32.mrb[0].mxu0
    %v1270 = vadd.f32 %v1030, %v1269
    %1271 = vmatprep.mubr.bf16.mxu0 %v1040
    %1272 = vmatmul.mubr.bf16.gmra.mrb[0].mxu0 %v1039
    %v1273 = vpop.f32.mrb[0].mxu0
    %v1274 = vadd.f32 %v1026, %v1273
    %v1275 = vpop.f32.mrb[0].mxu0
    %v1276 = vadd.f32 %v1030, %v1275
    %v1277 = vpop.f32.mrb[0].mxu0
    %v1278 = vadd.f32 %v1026, %v1277
    %v1279 = vpop.f32.mrb[0].mxu0
    %v1280 = vadd.f32 %v1030, %v1279
    %1281 = vmatprep.mubr.bf16.mxu0 %v1042
    %1282 = vmatmul.mubr.bf16.gmra.mrb[0].mxu0 %v1041
    %v1283 = vpop.f32.mrb[0].mxu0
    %v1284 = vadd.f32 %v1026, %v1283
    %v1285 = vpop.f32.mrb[0].mxu0
    %v1286 = vadd.f32 %v1030, %v1285
    %v1287 = vpop.f32.mrb[0].mxu0
    %v1288 = vadd.f32 %v1026, %v1287
    %v1289 = vpop.f32.mrb[0].mxu0
    %v1290 = vadd.f32 %v1030, %v1289
    %1291 = vmatprep.mubr.bf16.mxu0 %v1044
    %1292 = vmatmul.mubr.bf16.gmra.mrb[0].mxu0 %v1043
    %v1293 = vpop.f32.mrb[0].mxu0
    %v1294 = vadd.f32 %v1026, %v1293
    %v1295 = vpop.f32.mrb[0].mxu0
    %v1296 = vadd.f32 %v1030, %v1295
    %v1297 = vpop.f32.mrb[0].mxu0
    %v1298 = vadd.f32 %v1026, %v1297
    %v1299 = vpop.f32.mrb[0].mxu0
    %v1300 = vadd.f32 %v1030, %v1299
    %1301 = vmatprep.mubr.bf16.mxu0 %v1046
    %1302 = vmatmul.mubr.bf16.gmra.mrb[0].mxu0 %v1045
    %v1303 = vpop.f32.mrb[0].mxu0
    %v1304 = vadd.f32 %v1026, %v1303
    %v1305 = vpop.f32.mrb[0].mxu0
    %v1306 = vadd.f32 %v1030, %v1305
    %v1307 = vpop.f32.mrb[0].mxu0
    %v1308 = vadd.f32 %v1026, %v1307
    %v1309 = vpop.f32.mrb[0].mxu0
    %v1310 = vadd.f32 %v1030, %v1309
    %1311 = vmatprep.mubr.bf16.mxu0 %v1048
    %1312 = vmatmul.mubr.bf16.gmra.mrb[0].mxu0 %v1047
    %v1313 = vpop.f32.mrb[0].mxu0
    %v1314 = vadd.f32 %v1026, %v1313
    %v1315 = vpop.f32.mrb[0].mxu0
    %v1316 = vadd.f32 %v1030, %v1315
    %v1317 = vpop.f32.mrb[0].mxu0
    %v1318 = vadd.f32 %v1026, %v1317
    %v1319 = vpop.f32.mrb[0].mxu0
    %v1320 = vadd.f32 %v1030, %v1319
    %1321 = vdwg.mxu0
    %v1322 = vmax.f32 %v1244, 0.0
    %v1323 = vmax.f32 %v1246, 0.0
    %v1324 = vmax.f32 %v1248, 0.0
    %v1325 = vmax.f32 %v1250, 0.0
    %v1326 = vmax.f32 %v1254, 0.0
    %v1327 = vmax.f32 %v1256, 0.0
    %v1328 = vmax.f32 %v1258, 0.0
    %v1329 = vmax.f32 %v1260, 0.0
    %v1330 = vmax.f32 %v1264, 0.0
    %v1331 = vmax.f32 %v1266, 0.0
    %v1332 = vmax.f32 %v1268, 0.0
    %v1333 = vmax.f32 %v1270, 0.0
    %v1334 = vmax.f32 %v1274, 0.0
    %v1335 = vmax.f32 %v1276, 0.0
    %v1336 = vmax.f32 %v1278, 0.0
    %v1337 = vmax.f32 %v1280, 0.0
    %v1338 = vmax.f32 %v1284, 0.0
    %v1339 = vmax.f32 %v1286, 0.0
    %v1340 = vmax.f32 %v1288, 0.0
    %v1341 = vmax.f32 %v1290, 0.0
    %v1342 = vmax.f32 %v1294, 0.0
    %v1343 = vmax.f32 %v1296, 0.0
    %v1344 = vmax.f32 %v1298, 0.0
    %v1345 = vmax.f32 %v1300, 0.0
    %v1346 = vmax.f32 %v1304, 0.0
    %v1347 = vmax.f32 %v1306, 0.0
    %v1348 = vmax.f32 %v1308, 0.0
    %v1349 = vmax.f32 %v1310, 0.0
    %v1350 = vmax.f32 %v1314, 0.0
    %v1351 = vmax.f32 %v1316, 0.0
    %v1352 = vmax.f32 %v1318, 0.0
    %v1353 = vmax.f32 %v1320, 0.0
    %v1354 = vpack.c.bf16 %v957, %v955
    %v1355 = vpack.c.bf16 %v958, %v956
    %v1356 = vpack.c.bf16 %v961, %v959
    %v1357 = vpack.c.bf16 %v962, %v960
    %v1358 = vpack.c.bf16 %v965, %v963
    %v1359 = vpack.c.bf16 %v966, %v964
    %v1360 = vpack.c.bf16 %v969, %v967
    %v1361 = vpack.c.bf16 %v970, %v968
    %v1362 = vpack.c.bf16 %v973, %v971
    %v1363 = vpack.c.bf16 %v974, %v972
    %v1364 = vpack.c.bf16 %v977, %v975
    %v1365 = vpack.c.bf16 %v978, %v976
    %v1366 = vpack.c.bf16 %v981, %v979
    %v1367 = vpack.c.bf16 %v982, %v980
    %v1368 = vpack.c.bf16 %v985, %v983
    %v1369 = vpack.c.bf16 %v986, %v984
    %1370 = vmatprep.subr.bf16.mxu0 %v1146
    %1371 = vmatpush1.bf16.msra.mxu0 %v1145
    %1372 = vmatprep.subr.bf16.mxu0 %v1148
    %1373 = vmatpush1.bf16.msra.mxu0 %v1147
    %1374 = vmatprep.subr.bf16.mxu0 %v1150
    %1375 = vmatpush1.bf16.msra.mxu0 %v1149
    %1376 = vmatprep.subr.bf16.mxu0 %v1152
    %1377 = vmatpush1.bf16.msra.mxu0 %v1151
    %1378 = vmatprep.subr.bf16.mxu0 %v1154
    %1379 = vmatpush1.bf16.msra.mxu0 %v1153
    %1380 = vmatprep.subr.bf16.mxu0 %v1156
    %1381 = vmatpush1.bf16.msra.mxu0 %v1155
    %1382 = vmatprep.subr.bf16.mxu0 %v1158
    %1383 = vmatpush1.bf16.msra.mxu0 %v1157
    %1384 = vmatprep.subr.bf16.mxu0 %v1160
    %1385 = vmatpush1.bf16.msra.mxu0 %v1159
    %1386 = vmatprep.subr.bf16.mxu0 %v1162
    %1387 = vmatpush1.bf16.msra.mxu0 %v1161
    %1388 = vmatprep.subr.bf16.mxu0 %v1164
    %1389 = vmatpush1.bf16.msra.mxu0 %v1163
    %1390 = vmatprep.subr.bf16.mxu0 %v1166
    %1391 = vmatpush1.bf16.msra.mxu0 %v1165
    %1392 = vmatprep.subr.bf16.mxu0 %v1168
    %1393 = vmatpush1.bf16.msra.mxu0 %v1167
    %1394 = vmatprep.subr.bf16.mxu0 %v1170
    %1395 = vmatpush1.bf16.msra.mxu0 %v1169
    %1396 = vmatprep.subr.bf16.mxu0 %v1172
    %1397 = vmatpush1.bf16.msra.mxu0 %v1171
    %1398 = vmatprep.subr.bf16.mxu0 %v1174
    %1399 = vmatpush1.bf16.msra.mxu0 %v1173
    %1400 = vmatprep.subr.bf16.mxu0 %v1176
    %1401 = vmatpush1.bf16.msra.mxu0 %v1175
    %1402 = vmatprep.mubr.bf16.mxu0 %v1355
    %1403 = vmatmul.mubr.bf16.gmra.mrb[0].mxu0 %v1354
    %v1404 = vpop.f32.mrb[0].mxu0
    %v1405 = vadd.f32 %v1026, %v1404
    %v1406 = vpop.f32.mrb[0].mxu0
    %v1407 = vadd.f32 %v1030, %v1406
    %v1408 = vpop.f32.mrb[0].mxu0
    %v1409 = vadd.f32 %v1026, %v1408
    %v1410 = vpop.f32.mrb[0].mxu0
    %v1411 = vadd.f32 %v1030, %v1410
    %1412 = vmatprep.mubr.bf16.mxu0 %v1357
    %1413 = vmatmul.mubr.bf16.gmra.mrb[0].mxu0 %v1356
    %v1414 = vpop.f32.mrb[0].mxu0
    %v1415 = vadd.f32 %v1026, %v1414
    %v1416 = vpop.f32.mrb[0].mxu0
    %v1417 = vadd.f32 %v1030, %v1416
    %v1418 = vpop.f32.mrb[0].mxu0
    %v1419 = vadd.f32 %v1026, %v1418
    %v1420 = vpop.f32.mrb[0].mxu0
    %v1421 = vadd.f32 %v1030, %v1420
    %1422 = vmatprep.mubr.bf16.mxu0 %v1359
    %1423 = vmatmul.mubr.bf16.gmra.mrb[0].mxu0 %v1358
    %v1424 = vpop.f32.mrb[0].mxu0
    %v1425 = vadd.f32 %v1026, %v1424
    %v1426 = vpop.f32.mrb[0].mxu0
    %v1427 = vadd.f32 %v1030, %v1426
    %v1428 = vpop.f32.mrb[0].mxu0
    %v1429 = vadd.f32 %v1026, %v1428
    %v1430 = vpop.f32.mrb[0].mxu0
    %v1431 = vadd.f32 %v1030, %v1430
    %1432 = vmatprep.mubr.bf16.mxu0 %v1361
    %1433 = vmatmul.mubr.bf16.gmra.mrb[0].mxu0 %v1360
    %v1434 = vpop.f32.mrb[0].mxu0
    %v1435 = vadd.f32 %v1026, %v1434
    %v1436 = vpop.f32.mrb[0].mxu0
    %v1437 = vadd.f32 %v1030, %v1436
    %v1438 = vpop.f32.mrb[0].mxu0
    %v1439 = vadd.f32 %v1026, %v1438
    %v1440 = vpop.f32.mrb[0].mxu0
    %v1441 = vadd.f32 %v1030, %v1440
    %1442 = vmatprep.mubr.bf16.mxu0 %v1363
    %1443 = vmatmul.mubr.bf16.gmra.mrb[0].mxu0 %v1362
    %v1444 = vpop.f32.mrb[0].mxu0
    %v1445 = vadd.f32 %v1026, %v1444
    %v1446 = vpop.f32.mrb[0].mxu0
    %v1447 = vadd.f32 %v1030, %v1446
    %v1448 = vpop.f32.mrb[0].mxu0
    %v1449 = vadd.f32 %v1026, %v1448
    %v1450 = vpop.f32.mrb[0].mxu0
    %v1451 = vadd.f32 %v1030, %v1450
    %1452 = vmatprep.mubr.bf16.mxu0 %v1365
    %1453 = vmatmul.mubr.bf16.gmra.mrb[0].mxu0 %v1364
    %v1454 = vpop.f32.mrb[0].mxu0
    %v1455 = vadd.f32 %v1026, %v1454
    %v1456 = vpop.f32.mrb[0].mxu0
    %v1457 = vadd.f32 %v1030, %v1456
    %v1458 = vpop.f32.mrb[0].mxu0
    %v1459 = vadd.f32 %v1026, %v1458
    %v1460 = vpop.f32.mrb[0].mxu0
    %v1461 = vadd.f32 %v1030, %v1460
    %1462 = vmatprep.mubr.bf16.mxu0 %v1367
    %1463 = vmatmul.mubr.bf16.gmra.mrb[0].mxu0 %v1366
    %v1464 = vpop.f32.mrb[0].mxu0
    %v1465 = vadd.f32 %v1026, %v1464
    %v1466 = vpop.f32.mrb[0].mxu0
    %v1467 = vadd.f32 %v1030, %v1466
    %v1468 = vpop.f32.mrb[0].mxu0
    %v1469 = vadd.f32 %v1026, %v1468
    %v1470 = vpop.f32.mrb[0].mxu0
    %v1471 = vadd.f32 %v1030, %v1470
    %1472 = vmatprep.mubr.bf16.mxu0 %v1369
    %1473 = vmatmul.mubr.bf16.gmra.mrb[0].mxu0 %v1368
    %v1474 = vpop.f32.mrb[0].mxu0
    %v1475 = vadd.f32 %v1026, %v1474
    %v1476 = vpop.f32.mrb[0].mxu0
    %v1477 = vadd.f32 %v1030, %v1476
    %v1478 = vpop.f32.mrb[0].mxu0
    %v1479 = vadd.f32 %v1026, %v1478
    %v1480 = vpop.f32.mrb[0].mxu0
    %v1481 = vadd.f32 %v1030, %v1480
    %1482 = vdwg.mxu0
    %v1483 = vmax.f32 %v1405, 0.0
    %v1484 = vmax.f32 %v1407, 0.0
    %v1485 = vmax.f32 %v1409, 0.0
    %v1486 = vmax.f32 %v1411, 0.0
    %v1487 = vmax.f32 %v1415, 0.0
    %v1488 = vmax.f32 %v1417, 0.0
    %v1489 = vmax.f32 %v1419, 0.0
    %v1490 = vmax.f32 %v1421, 0.0
    %v1491 = vmax.f32 %v1425, 0.0
    %v1492 = vmax.f32 %v1427, 0.0
    %v1493 = vmax.f32 %v1429, 0.0
    %v1494 = vmax.f32 %v1431, 0.0
    %v1495 = vmax.f32 %v1435, 0.0
    %v1496 = vmax.f32 %v1437, 0.0
    %v1497 = vmax.f32 %v1439, 0.0
    %v1498 = vmax.f32 %v1441, 0.0
    %v1499 = vmax.f32 %v1445, 0.0
    %v1500 = vmax.f32 %v1447, 0.0
    %v1501 = vmax.f32 %v1449, 0.0
    %v1502 = vmax.f32 %v1451, 0.0
    %v1503 = vmax.f32 %v1455, 0.0
    %v1504 = vmax.f32 %v1457, 0.0
    %v1505 = vmax.f32 %v1459, 0.0
    %v1506 = vmax.f32 %v1461, 0.0
    %v1507 = vmax.f32 %v1465, 0.0
    %v1508 = vmax.f32 %v1467, 0.0
    %v1509 = vmax.f32 %v1469, 0.0
    %v1510 = vmax.f32 %v1471, 0.0
    %v1511 = vmax.f32 %v1475, 0.0
    %v1512 = vmax.f32 %v1477, 0.0
    %v1513 = vmax.f32 %v1479, 0.0
    %v1514 = vmax.f32 %v1481, 0.0
    %s1515 = scalar_lea.vmem [#allocation2], 512
    %v1516 = vld [vmem:[%s1515] sm:$0xff]
    %v1517 = vld [vmem:[%s1515 + $0x8] sm:$0xff]
    %v1518 = vld [vmem:[%s1515 + $0x10] sm:$0xff]
    %v1519 = vld [vmem:[%s1515 + $0x18] sm:$0xff]
    %v1520 = vld [vmem:[%s1515 + $0x20] sm:$0xff]
    %v1521 = vld [vmem:[%s1515 + $0x28] sm:$0xff]
    %v1522 = vld [vmem:[%s1515 + $0x30] sm:$0xff]
    %v1523 = vld [vmem:[%s1515 + $0x38] sm:$0xff]
    %v1524 = vld [vmem:[%s1515 + $0x40] sm:$0xff]
    %v1525 = vld [vmem:[%s1515 + $0x48] sm:$0xff]
    %v1526 = vld [vmem:[%s1515 + $0x50] sm:$0xff]
    %v1527 = vld [vmem:[%s1515 + $0x58] sm:$0xff]
    %v1528 = vld [vmem:[%s1515 + $0x60] sm:$0xff]
    %v1529 = vld [vmem:[%s1515 + $0x68] sm:$0xff]
    %v1530 = vld [vmem:[%s1515 + $0x70] sm:$0xff]
    %v1531 = vld [vmem:[%s1515 + $0x78] sm:$0xff]
    %v1532 = vld [vmem:[%s1515 + $0x80] sm:$0xff]
    %v1533 = vld [vmem:[%s1515 + $0x88] sm:$0xff]
    %v1534 = vld [vmem:[%s1515 + $0x90] sm:$0xff]
    %v1535 = vld [vmem:[%s1515 + $0x98] sm:$0xff]
    %v1536 = vld [vmem:[%s1515 + $0xa0] sm:$0xff]
    %v1537 = vld [vmem:[%s1515 + $0xa8] sm:$0xff]
    %v1538 = vld [vmem:[%s1515 + $0xb0] sm:$0xff]
    %v1539 = vld [vmem:[%s1515 + $0xb8] sm:$0xff]
    %v1540 = vld [vmem:[%s1515 + $0xc0] sm:$0xff]
    %v1541 = vld [vmem:[%s1515 + $0xc8] sm:$0xff]
    %v1542 = vld [vmem:[%s1515 + $0xd0] sm:$0xff]
    %v1543 = vld [vmem:[%s1515 + $0xd8] sm:$0xff]
    %v1544 = vld [vmem:[%s1515 + $0xe0] sm:$0xff]
    %v1545 = vld [vmem:[%s1515 + $0xe8] sm:$0xff]
    %v1546 = vld [vmem:[%s1515 + $0xf0] sm:$0xff]
    %v1547 = vld [vmem:[%s1515 + $0xf8] sm:$0xff]
    %s1548 = scalar_lea.vmem %s3, 3
    %v1549 = vld [vmem:[%s1548] ss:$4 sm:$0x3]
    %v1551 = vlaneseq
    %v1552 = vshrl.u32 %v1551, 7
    %v1553 = vsub.s32 0, %v1552
    %v1554 = vrot.slane %v1549, %v1553
    %v1555 = vlaneseq
    %v1556 = vshrl.u32 %v1555, 7
    %v1557 = vsub.s32 1, %v1556
    %v1558 = vrot.slane %v1549, %v1557
    %v1561 = vpack.c.bf16 %v1324, %v1322
    %v1562 = vpack.c.bf16 %v1325, %v1323
    %v1563 = vpack.c.bf16 %v1328, %v1326
    %v1564 = vpack.c.bf16 %v1329, %v1327
    %v1565 = vpack.c.bf16 %v1332, %v1330
    %v1566 = vpack.c.bf16 %v1333, %v1331
    %v1567 = vpack.c.bf16 %v1336, %v1334
    %v1568 = vpack.c.bf16 %v1337, %v1335
    %v1569 = vpack.c.bf16 %v1340, %v1338
    %v1570 = vpack.c.bf16 %v1341, %v1339
    %v1571 = vpack.c.bf16 %v1344, %v1342
    %v1572 = vpack.c.bf16 %v1345, %v1343
    %v1573 = vpack.c.bf16 %v1348, %v1346
    %v1574 = vpack.c.bf16 %v1349, %v1347
    %v1575 = vpack.c.bf16 %v1352, %v1350
    %v1576 = vpack.c.bf16 %v1353, %v1351
    %v1609 = vunpack.c.l.b16 %v1516
    %v1610 = vunpack.c.h.b16 %v1516
    %v1611 = vunpack.c.l.b16 %v1517
    %v1612 = vunpack.c.h.b16 %v1517
    %v1613 = vunpack.c.l.b16 %v1518
    %v1614 = vunpack.c.h.b16 %v1518
    %v1615 = vunpack.c.l.b16 %v1519
    %v1616 = vunpack.c.h.b16 %v1519
    %v1617 = vunpack.c.l.b16 %v1520
    %v1618 = vunpack.c.h.b16 %v1520
    %v1619 = vunpack.c.l.b16 %v1521
    %v1620 = vunpack.c.h.b16 %v1521
    %v1621 = vunpack.c.l.b16 %v1522
    %v1622 = vunpack.c.h.b16 %v1522
    %v1623 = vunpack.c.l.b16 %v1523
    %v1624 = vunpack.c.h.b16 %v1523
    %v1625 = vunpack.c.l.b16 %v1524
    %v1626 = vunpack.c.h.b16 %v1524
    %v1627 = vunpack.c.l.b16 %v1525
    %v1628 = vunpack.c.h.b16 %v1525
    %v1629 = vunpack.c.l.b16 %v1526
    %v1630 = vunpack.c.h.b16 %v1526
    %v1631 = vunpack.c.l.b16 %v1527
    %v1632 = vunpack.c.h.b16 %v1527
    %v1633 = vunpack.c.l.b16 %v1528
    %v1634 = vunpack.c.h.b16 %v1528
    %v1635 = vunpack.c.l.b16 %v1529
    %v1636 = vunpack.c.h.b16 %v1529
    %v1637 = vunpack.c.l.b16 %v1530
    %v1638 = vunpack.c.h.b16 %v1530
    %v1639 = vunpack.c.l.b16 %v1531
    %v1640 = vunpack.c.h.b16 %v1531
    %v1641 = vunpack.c.l.b16 %v1532
    %v1642 = vunpack.c.h.b16 %v1532
    %v1643 = vunpack.c.l.b16 %v1533
    %v1644 = vunpack.c.h.b16 %v1533
    %v1645 = vunpack.c.l.b16 %v1534
    %v1646 = vunpack.c.h.b16 %v1534
    %v1647 = vunpack.c.l.b16 %v1535
    %v1648 = vunpack.c.h.b16 %v1535
    %v1649 = vunpack.c.l.b16 %v1536
    %v1650 = vunpack.c.h.b16 %v1536
    %v1651 = vunpack.c.l.b16 %v1537
    %v1652 = vunpack.c.h.b16 %v1537
    %v1653 = vunpack.c.l.b16 %v1538
    %v1654 = vunpack.c.h.b16 %v1538
    %v1655 = vunpack.c.l.b16 %v1539
    %v1656 = vunpack.c.h.b16 %v1539
    %v1657 = vunpack.c.l.b16 %v1540
    %v1658 = vunpack.c.h.b16 %v1540
    %v1659 = vunpack.c.l.b16 %v1541
    %v1660 = vunpack.c.h.b16 %v1541
    %v1661 = vunpack.c.l.b16 %v1542
    %v1662 = vunpack.c.h.b16 %v1542
    %v1663 = vunpack.c.l.b16 %v1543
    %v1664 = vunpack.c.h.b16 %v1543
    %v1665 = vunpack.c.l.b16 %v1544
    %v1666 = vunpack.c.h.b16 %v1544
    %v1667 = vunpack.c.l.b16 %v1545
    %v1668 = vunpack.c.h.b16 %v1545
    %v1669 = vunpack.c.l.b16 %v1546
    %v1670 = vunpack.c.h.b16 %v1546
    %v1671 = vunpack.c.l.b16 %v1547
    %v1672 = vunpack.c.h.b16 %v1547
    %v1673 = vpack.c.b16 %v1611, %v1609
    %v1674 = vpack.c.b16 %v1612, %v1610
    %v1675 = vpack.c.b16 %v1615, %v1613
    %v1676 = vpack.c.b16 %v1616, %v1614
    %v1677 = vpack.c.b16 %v1619, %v1617
    %v1678 = vpack.c.b16 %v1620, %v1618
    %v1679 = vpack.c.b16 %v1623, %v1621
    %v1680 = vpack.c.b16 %v1624, %v1622
    %v1681 = vpack.c.b16 %v1627, %v1625
    %v1682 = vpack.c.b16 %v1628, %v1626
    %v1683 = vpack.c.b16 %v1631, %v1629
    %v1684 = vpack.c.b16 %v1632, %v1630
    %v1685 = vpack.c.b16 %v1635, %v1633
    %v1686 = vpack.c.b16 %v1636, %v1634
    %v1687 = vpack.c.b16 %v1639, %v1637
    %v1688 = vpack.c.b16 %v1640, %v1638
    %v1689 = vpack.c.b16 %v1643, %v1641
    %v1690 = vpack.c.b16 %v1644, %v1642
    %v1691 = vpack.c.b16 %v1647, %v1645
    %v1692 = vpack.c.b16 %v1648, %v1646
    %v1693 = vpack.c.b16 %v1651, %v1649
    %v1694 = vpack.c.b16 %v1652, %v1650
    %v1695 = vpack.c.b16 %v1655, %v1653
    %v1696 = vpack.c.b16 %v1656, %v1654
    %v1697 = vpack.c.b16 %v1659, %v1657
    %v1698 = vpack.c.b16 %v1660, %v1658
    %v1699 = vpack.c.b16 %v1663, %v1661
    %v1700 = vpack.c.b16 %v1664, %v1662
    %v1701 = vpack.c.b16 %v1667, %v1665
    %v1702 = vpack.c.b16 %v1668, %v1666
    %v1703 = vpack.c.b16 %v1671, %v1669
    %v1704 = vpack.c.b16 %v1672, %v1670
    %1737 = vmatprep.subr.bf16.mxu0 %v1674
    %1738 = vmatpush1.bf16.msra.mxu0 %v1673
    %1739 = vmatprep.subr.bf16.mxu0 %v1676
    %1740 = vmatpush1.bf16.msra.mxu0 %v1675
    %1741 = vmatprep.subr.bf16.mxu0 %v1678
    %1742 = vmatpush1.bf16.msra.mxu0 %v1677
    %1743 = vmatprep.subr.bf16.mxu0 %v1680
    %1744 = vmatpush1.bf16.msra.mxu0 %v1679
    %1745 = vmatprep.subr.bf16.mxu0 %v1682
    %1746 = vmatpush1.bf16.msra.mxu0 %v1681
    %1747 = vmatprep.subr.bf16.mxu0 %v1684
    %1748 = vmatpush1.bf16.msra.mxu0 %v1683
    %1749 = vmatprep.subr.bf16.mxu0 %v1686
    %1750 = vmatpush1.bf16.msra.mxu0 %v1685
    %1751 = vmatprep.subr.bf16.mxu0 %v1688
    %1752 = vmatpush1.bf16.msra.mxu0 %v1687
    %1753 = vmatprep.subr.bf16.mxu0 %v1690
    %1754 = vmatpush1.bf16.msra.mxu0 %v1689
    %1755 = vmatprep.subr.bf16.mxu0 %v1692
    %1756 = vmatpush1.bf16.msra.mxu0 %v1691
    %1757 = vmatprep.subr.bf16.mxu0 %v1694
    %1758 = vmatpush1.bf16.msra.mxu0 %v1693
    %1759 = vmatprep.subr.bf16.mxu0 %v1696
    %1760 = vmatpush1.bf16.msra.mxu0 %v1695
    %1761 = vmatprep.subr.bf16.mxu0 %v1698
    %1762 = vmatpush1.bf16.msra.mxu0 %v1697
    %1763 = vmatprep.subr.bf16.mxu0 %v1700
    %1764 = vmatpush1.bf16.msra.mxu0 %v1699
    %1765 = vmatprep.subr.bf16.mxu0 %v1702
    %1766 = vmatpush1.bf16.msra.mxu0 %v1701
    %1767 = vmatprep.subr.bf16.mxu0 %v1704
    %1768 = vmatpush1.bf16.msra.mxu0 %v1703
    %1769 = vmatprep.mubr.bf16.mxu0 %v1562
    %1770 = vmatmul.mubr.bf16.gmra.mrb[0].mxu0 %v1561
    %v1771 = vpop.f32.mrb[0].mxu0
    %v1772 = vadd.f32 %v1554, %v1771
    %v1773 = vpop.f32.mrb[0].mxu0
    %v1774 = vadd.f32 %v1558, %v1773
    %v1775 = vpop.f32.mrb[0].mxu0
    %v1776 = vadd.f32 %v1554, %v1775
    %v1777 = vpop.f32.mrb[0].mxu0
    %v1778 = vadd.f32 %v1558, %v1777
    %1779 = vmatprep.mubr.bf16.mxu0 %v1564
    %1780 = vmatmul.mubr.bf16.gmra.mrb[0].mxu0 %v1563
    %v1781 = vpop.f32.mrb[0].mxu0
    %v1782 = vadd.f32 %v1554, %v1781
    %v1783 = vpop.f32.mrb[0].mxu0
    %v1784 = vadd.f32 %v1558, %v1783
    %v1785 = vpop.f32.mrb[0].mxu0
    %v1786 = vadd.f32 %v1554, %v1785
    %v1787 = vpop.f32.mrb[0].mxu0
    %v1788 = vadd.f32 %v1558, %v1787
    %1789 = vmatprep.mubr.bf16.mxu0 %v1566
    %1790 = vmatmul.mubr.bf16.gmra.mrb[0].mxu0 %v1565
    %v1791 = vpop.f32.mrb[0].mxu0
    %v1792 = vadd.f32 %v1554, %v1791
    %v1793 = vpop.f32.mrb[0].mxu0
    %v1794 = vadd.f32 %v1558, %v1793
    %v1795 = vpop.f32.mrb[0].mxu0
    %v1796 = vadd.f32 %v1554, %v1795
    %v1797 = vpop.f32.mrb[0].mxu0
    %v1798 = vadd.f32 %v1558, %v1797
    %1799 = vmatprep.mubr.bf16.mxu0 %v1568
    %1800 = vmatmul.mubr.bf16.gmra.mrb[0].mxu0 %v1567
    %v1801 = vpop.f32.mrb[0].mxu0
    %v1802 = vadd.f32 %v1554, %v1801
    %v1803 = vpop.f32.mrb[0].mxu0
    %v1804 = vadd.f32 %v1558, %v1803
    %v1805 = vpop.f32.mrb[0].mxu0
    %v1806 = vadd.f32 %v1554, %v1805
    %v1807 = vpop.f32.mrb[0].mxu0
    %v1808 = vadd.f32 %v1558, %v1807
    %1809 = vmatprep.mubr.bf16.mxu0 %v1570
    %1810 = vmatmul.mubr.bf16.gmra.mrb[0].mxu0 %v1569
    %v1811 = vpop.f32.mrb[0].mxu0
    %v1812 = vadd.f32 %v1554, %v1811
    %v1813 = vpop.f32.mrb[0].mxu0
    %v1814 = vadd.f32 %v1558, %v1813
    %v1815 = vpop.f32.mrb[0].mxu0
    %v1816 = vadd.f32 %v1554, %v1815
    %v1817 = vpop.f32.mrb[0].mxu0
    %v1818 = vadd.f32 %v1558, %v1817
    %1819 = vmatprep.mubr.bf16.mxu0 %v1572
    %1820 = vmatmul.mubr.bf16.gmra.mrb[0].mxu0 %v1571
    %v1821 = vpop.f32.mrb[0].mxu0
    %v1822 = vadd.f32 %v1554, %v1821
    %v1823 = vpop.f32.mrb[0].mxu0
    %v1824 = vadd.f32 %v1558, %v1823
    %v1825 = vpop.f32.mrb[0].mxu0
    %v1826 = vadd.f32 %v1554, %v1825
    %v1827 = vpop.f32.mrb[0].mxu0
    %v1828 = vadd.f32 %v1558, %v1827
    %1829 = vmatprep.mubr.bf16.mxu0 %v1574
    %1830 = vmatmul.mubr.bf16.gmra.mrb[0].mxu0 %v1573
    %v1831 = vpop.f32.mrb[0].mxu0
    %v1832 = vadd.f32 %v1554, %v1831
    %v1833 = vpop.f32.mrb[0].mxu0
    %v1834 = vadd.f32 %v1558, %v1833
    %v1835 = vpop.f32.mrb[0].mxu0
    %v1836 = vadd.f32 %v1554, %v1835
    %v1837 = vpop.f32.mrb[0].mxu0
    %v1838 = vadd.f32 %v1558, %v1837
    %1839 = vmatprep.mubr.bf16.mxu0 %v1576
    %1840 = vmatmul.mubr.bf16.gmra.mrb[0].mxu0 %v1575
    %v1841 = vpop.f32.mrb[0].mxu0
    %v1842 = vadd.f32 %v1554, %v1841
    %v1843 = vpop.f32.mrb[0].mxu0
    %v1844 = vadd.f32 %v1558, %v1843
    %v1845 = vpop.f32.mrb[0].mxu0
    %v1846 = vadd.f32 %v1554, %v1845
    %v1847 = vpop.f32.mrb[0].mxu0
    %v1848 = vadd.f32 %v1558, %v1847
    %1849 = vdwg.mxu0
    %v1850 = vmax.f32 %v1772, 0.0
    %v1851 = vmax.f32 %v1774, 0.0
    %v1852 = vmax.f32 %v1776, 0.0
    %v1853 = vmax.f32 %v1778, 0.0
    %v1854 = vmax.f32 %v1782, 0.0
    %v1855 = vmax.f32 %v1784, 0.0
    %v1856 = vmax.f32 %v1786, 0.0
    %v1857 = vmax.f32 %v1788, 0.0
    %v1858 = vmax.f32 %v1792, 0.0
    %v1859 = vmax.f32 %v1794, 0.0
    %v1860 = vmax.f32 %v1796, 0.0
    %v1861 = vmax.f32 %v1798, 0.0
    %v1862 = vmax.f32 %v1802, 0.0
    %v1863 = vmax.f32 %v1804, 0.0
    %v1864 = vmax.f32 %v1806, 0.0
    %v1865 = vmax.f32 %v1808, 0.0
    %v1866 = vmax.f32 %v1812, 0.0
    %v1867 = vmax.f32 %v1814, 0.0
    %v1868 = vmax.f32 %v1816, 0.0
    %v1869 = vmax.f32 %v1818, 0.0
    %v1870 = vmax.f32 %v1822, 0.0
    %v1871 = vmax.f32 %v1824, 0.0
    %v1872 = vmax.f32 %v1826, 0.0
    %v1873 = vmax.f32 %v1828, 0.0
    %v1874 = vmax.f32 %v1832, 0.0
    %v1875 = vmax.f32 %v1834, 0.0
    %v1876 = vmax.f32 %v1836, 0.0
    %v1877 = vmax.f32 %v1838, 0.0
    %v1878 = vmax.f32 %v1842, 0.0
    %v1879 = vmax.f32 %v1844, 0.0
    %v1880 = vmax.f32 %v1846, 0.0
    %v1881 = vmax.f32 %v1848, 0.0
    %v1882 = vpack.c.bf16 %v1485, %v1483
    %v1883 = vpack.c.bf16 %v1486, %v1484
    %v1884 = vpack.c.bf16 %v1489, %v1487
    %v1885 = vpack.c.bf16 %v1490, %v1488
    %v1886 = vpack.c.bf16 %v1493, %v1491
    %v1887 = vpack.c.bf16 %v1494, %v1492
    %v1888 = vpack.c.bf16 %v1497, %v1495
    %v1889 = vpack.c.bf16 %v1498, %v1496
    %v1890 = vpack.c.bf16 %v1501, %v1499
    %v1891 = vpack.c.bf16 %v1502, %v1500
    %v1892 = vpack.c.bf16 %v1505, %v1503
    %v1893 = vpack.c.bf16 %v1506, %v1504
    %v1894 = vpack.c.bf16 %v1509, %v1507
    %v1895 = vpack.c.bf16 %v1510, %v1508
    %v1896 = vpack.c.bf16 %v1513, %v1511
    %v1897 = vpack.c.bf16 %v1514, %v1512
    %1898 = vmatprep.subr.bf16.mxu0 %v1674
    %1899 = vmatpush1.bf16.msra.mxu0 %v1673
    %1900 = vmatprep.subr.bf16.mxu0 %v1676
    %1901 = vmatpush1.bf16.msra.mxu0 %v1675
    %1902 = vmatprep.subr.bf16.mxu0 %v1678
    %1903 = vmatpush1.bf16.msra.mxu0 %v1677
    %1904 = vmatprep.subr.bf16.mxu0 %v1680
    %1905 = vmatpush1.bf16.msra.mxu0 %v1679
    %1906 = vmatprep.subr.bf16.mxu0 %v1682
    %1907 = vmatpush1.bf16.msra.mxu0 %v1681
    %1908 = vmatprep.subr.bf16.mxu0 %v1684
    %1909 = vmatpush1.bf16.msra.mxu0 %v1683
    %1910 = vmatprep.subr.bf16.mxu0 %v1686
    %1911 = vmatpush1.bf16.msra.mxu0 %v1685
    %1912 = vmatprep.subr.bf16.mxu0 %v1688
    %1913 = vmatpush1.bf16.msra.mxu0 %v1687
    %1914 = vmatprep.subr.bf16.mxu0 %v1690
    %1915 = vmatpush1.bf16.msra.mxu0 %v1689
    %1916 = vmatprep.subr.bf16.mxu0 %v1692
    %1917 = vmatpush1.bf16.msra.mxu0 %v1691
    %1918 = vmatprep.subr.bf16.mxu0 %v1694
    %1919 = vmatpush1.bf16.msra.mxu0 %v1693
    %1920 = vmatprep.subr.bf16.mxu0 %v1696
    %1921 = vmatpush1.bf16.msra.mxu0 %v1695
    %1922 = vmatprep.subr.bf16.mxu0 %v1698
    %1923 = vmatpush1.bf16.msra.mxu0 %v1697
    %1924 = vmatprep.subr.bf16.mxu0 %v1700
    %1925 = vmatpush1.bf16.msra.mxu0 %v1699
    %1926 = vmatprep.subr.bf16.mxu0 %v1702
    %1927 = vmatpush1.bf16.msra.mxu0 %v1701
    %1928 = vmatprep.subr.bf16.mxu0 %v1704
    %1929 = vmatpush1.bf16.msra.mxu0 %v1703
    %1930 = vmatprep.mubr.bf16.mxu0 %v1883
    %1931 = vmatmul.mubr.bf16.gmra.mrb[0].mxu0 %v1882
    %v1932 = vpop.f32.mrb[0].mxu0
    %v1933 = vadd.f32 %v1554, %v1932
    %v1934 = vpop.f32.mrb[0].mxu0
    %v1935 = vadd.f32 %v1558, %v1934
    %v1936 = vpop.f32.mrb[0].mxu0
    %v1937 = vadd.f32 %v1554, %v1936
    %v1938 = vpop.f32.mrb[0].mxu0
    %v1939 = vadd.f32 %v1558, %v1938
    %1940 = vmatprep.mubr.bf16.mxu0 %v1885
    %1941 = vmatmul.mubr.bf16.gmra.mrb[0].mxu0 %v1884
    %v1942 = vpop.f32.mrb[0].mxu0
    %v1943 = vadd.f32 %v1554, %v1942
    %v1944 = vpop.f32.mrb[0].mxu0
    %v1945 = vadd.f32 %v1558, %v1944
    %v1946 = vpop.f32.mrb[0].mxu0
    %v1947 = vadd.f32 %v1554, %v1946
    %v1948 = vpop.f32.mrb[0].mxu0
    %v1949 = vadd.f32 %v1558, %v1948
    %1950 = vmatprep.mubr.bf16.mxu0 %v1887
    %1951 = vmatmul.mubr.bf16.gmra.mrb[0].mxu0 %v1886
    %v1952 = vpop.f32.mrb[0].mxu0
    %v1953 = vadd.f32 %v1554, %v1952
    %v1954 = vpop.f32.mrb[0].mxu0
    %v1955 = vadd.f32 %v1558, %v1954
    %v1956 = vpop.f32.mrb[0].mxu0
    %v1957 = vadd.f32 %v1554, %v1956
    %v1958 = vpop.f32.mrb[0].mxu0
    %v1959 = vadd.f32 %v1558, %v1958
    %1960 = vmatprep.mubr.bf16.mxu0 %v1889
    %1961 = vmatmul.mubr.bf16.gmra.mrb[0].mxu0 %v1888
    %v1962 = vpop.f32.mrb[0].mxu0
    %v1963 = vadd.f32 %v1554, %v1962
    %v1964 = vpop.f32.mrb[0].mxu0
    %v1965 = vadd.f32 %v1558, %v1964
    %v1966 = vpop.f32.mrb[0].mxu0
    %v1967 = vadd.f32 %v1554, %v1966
    %v1968 = vpop.f32.mrb[0].mxu0
    %v1969 = vadd.f32 %v1558, %v1968
    %1970 = vmatprep.mubr.bf16.mxu0 %v1891
    %1971 = vmatmul.mubr.bf16.gmra.mrb[0].mxu0 %v1890
    %v1972 = vpop.f32.mrb[0].mxu0
    %v1973 = vadd.f32 %v1554, %v1972
    %v1974 = vpop.f32.mrb[0].mxu0
    %v1975 = vadd.f32 %v1558, %v1974
    %v1976 = vpop.f32.mrb[0].mxu0
    %v1977 = vadd.f32 %v1554, %v1976
    %v1978 = vpop.f32.mrb[0].mxu0
    %v1979 = vadd.f32 %v1558, %v1978
    %1980 = vmatprep.mubr.bf16.mxu0 %v1893
    %1981 = vmatmul.mubr.bf16.gmra.mrb[0].mxu0 %v1892
    %v1982 = vpop.f32.mrb[0].mxu0
    %v1983 = vadd.f32 %v1554, %v1982
    %v1984 = vpop.f32.mrb[0].mxu0
    %v1985 = vadd.f32 %v1558, %v1984
    %v1986 = vpop.f32.mrb[0].mxu0
    %v1987 = vadd.f32 %v1554, %v1986
    %v1988 = vpop.f32.mrb[0].mxu0
    %v1989 = vadd.f32 %v1558, %v1988
    %1990 = vmatprep.mubr.bf16.mxu0 %v1895
    %1991 = vmatmul.mubr.bf16.gmra.mrb[0].mxu0 %v1894
    %v1992 = vpop.f32.mrb[0].mxu0
    %v1993 = vadd.f32 %v1554, %v1992
    %v1994 = vpop.f32.mrb[0].mxu0
    %v1995 = vadd.f32 %v1558, %v1994
    %v1996 = vpop.f32.mrb[0].mxu0
    %v1997 = vadd.f32 %v1554, %v1996
    %v1998 = vpop.f32.mrb[0].mxu0
    %v1999 = vadd.f32 %v1558, %v1998
    %2000 = vmatprep.mubr.bf16.mxu0 %v1897
    %2001 = vmatmul.mubr.bf16.gmra.mrb[0].mxu0 %v1896
    %v2002 = vpop.f32.mrb[0].mxu0
    %v2003 = vadd.f32 %v1554, %v2002
    %v2004 = vpop.f32.mrb[0].mxu0
    %v2005 = vadd.f32 %v1558, %v2004
    %v2006 = vpop.f32.mrb[0].mxu0
    %v2007 = vadd.f32 %v1554, %v2006
    %v2008 = vpop.f32.mrb[0].mxu0
    %v2009 = vadd.f32 %v1558, %v2008
    %2010 = vdwg.mxu0
    %v2011 = vmax.f32 %v1933, 0.0
    %v2012 = vmax.f32 %v1935, 0.0
    %v2013 = vmax.f32 %v1937, 0.0
    %v2014 = vmax.f32 %v1939, 0.0
    %v2015 = vmax.f32 %v1943, 0.0
    %v2016 = vmax.f32 %v1945, 0.0
    %v2017 = vmax.f32 %v1947, 0.0
    %v2018 = vmax.f32 %v1949, 0.0
    %v2019 = vmax.f32 %v1953, 0.0
    %v2020 = vmax.f32 %v1955, 0.0
    %v2021 = vmax.f32 %v1957, 0.0
    %v2022 = vmax.f32 %v1959, 0.0
    %v2023 = vmax.f32 %v1963, 0.0
    %v2024 = vmax.f32 %v1965, 0.0
    %v2025 = vmax.f32 %v1967, 0.0
    %v2026 = vmax.f32 %v1969, 0.0
    %v2027 = vmax.f32 %v1973, 0.0
    %v2028 = vmax.f32 %v1975, 0.0
    %v2029 = vmax.f32 %v1977, 0.0
    %v2030 = vmax.f32 %v1979, 0.0
    %v2031 = vmax.f32 %v1983, 0.0
    %v2032 = vmax.f32 %v1985, 0.0
    %v2033 = vmax.f32 %v1987, 0.0
    %v2034 = vmax.f32 %v1989, 0.0
    %v2035 = vmax.f32 %v1993, 0.0
    %v2036 = vmax.f32 %v1995, 0.0
    %v2037 = vmax.f32 %v1997, 0.0
    %v2038 = vmax.f32 %v1999, 0.0
    %v2039 = vmax.f32 %v2003, 0.0
    %v2040 = vmax.f32 %v2005, 0.0
    %v2041 = vmax.f32 %v2007, 0.0
    %v2042 = vmax.f32 %v2009, 0.0
    %v2043 = vld [vmem:[%s4] sm:$0xf]
    %v2044 = vld [vmem:[%s4 + $0x4] sm:$0xf]
    %v2045 = vld [vmem:[%s4 + $0x8] sm:$0xf]
    %v2046 = vld [vmem:[%s4 + $0xc] sm:$0xf]
    %v2047 = vld [vmem:[%s4 + $0x10] sm:$0xf]
    %v2048 = vld [vmem:[%s4 + $0x14] sm:$0xf]
    %v2049 = vld [vmem:[%s4 + $0x18] sm:$0xf]
    %v2050 = vld [vmem:[%s4 + $0x1c] sm:$0xf]
    %v2051 = vld [vmem:[%s4 + $0x20] sm:$0xf]
    %v2052 = vld [vmem:[%s4 + $0x24] sm:$0xf]
    %v2053 = vld [vmem:[%s4 + $0x28] sm:$0xf]
    %v2054 = vld [vmem:[%s4 + $0x2c] sm:$0xf]
    %v2055 = vld [vmem:[%s4 + $0x30] sm:$0xf]
    %v2056 = vld [vmem:[%s4 + $0x34] sm:$0xf]
    %v2057 = vld [vmem:[%s4 + $0x38] sm:$0xf]
    %v2058 = vld [vmem:[%s4 + $0x3c] sm:$0xf]
    %v2059 = vld [vmem:[%s4 + $0x40] sm:$0xf]
    %v2060 = vld [vmem:[%s4 + $0x44] sm:$0xf]
    %v2061 = vld [vmem:[%s4 + $0x48] sm:$0xf]
    %v2062 = vld [vmem:[%s4 + $0x4c] sm:$0xf]
    %v2063 = vld [vmem:[%s4 + $0x50] sm:$0xf]
    %v2064 = vld [vmem:[%s4 + $0x54] sm:$0xf]
    %v2065 = vld [vmem:[%s4 + $0x58] sm:$0xf]
    %v2066 = vld [vmem:[%s4 + $0x5c] sm:$0xf]
    %v2067 = vld [vmem:[%s4 + $0x60] sm:$0xf]
    %v2068 = vld [vmem:[%s4 + $0x64] sm:$0xf]
    %v2069 = vld [vmem:[%s4 + $0x68] sm:$0xf]
    %v2070 = vld [vmem:[%s4 + $0x6c] sm:$0xf]
    %v2071 = vld [vmem:[%s4 + $0x70] sm:$0xf]
    %v2072 = vld [vmem:[%s4 + $0x74] sm:$0xf]
    %v2073 = vld [vmem:[%s4 + $0x78] sm:$0xf]
    %v2074 = vld [vmem:[%s4 + $0x7c] sm:$0xf]
    %v2075 = vld [vmem:[%s6] sm:$0x1]
    %v2076 = vlaneseq
    %v2077 = vshrl.u32 %v2076, 7
    %v2078 = vsub.s32 0, %v2077
    %v2079 = vrot.slane %v2075, %v2078
    %v2080 = vpack.c.bf16 %v1852, %v1850
    %v2081 = vpack.c.bf16 %v1853, %v1851
    %v2082 = vpack.c.bf16 %v1856, %v1854
    %v2083 = vpack.c.bf16 %v1857, %v1855
    %v2084 = vpack.c.bf16 %v1860, %v1858
    %v2085 = vpack.c.bf16 %v1861, %v1859
    %v2086 = vpack.c.bf16 %v1864, %v1862
    %v2087 = vpack.c.bf16 %v1865, %v1863
    %v2088 = vpack.c.bf16 %v1868, %v1866
    %v2089 = vpack.c.bf16 %v1869, %v1867
    %v2090 = vpack.c.bf16 %v1872, %v1870
    %v2091 = vpack.c.bf16 %v1873, %v1871
    %v2092 = vpack.c.bf16 %v1876, %v1874
    %v2093 = vpack.c.bf16 %v1877, %v1875
    %v2094 = vpack.c.bf16 %v1880, %v1878
    %v2095 = vpack.c.bf16 %v1881, %v1879
    %v2128 = vunpack.c.l.b16 %v2043
    %v2129 = vunpack.c.l.b16 %v2044
    %v2130 = vunpack.c.l.b16 %v2045
    %v2131 = vunpack.c.l.b16 %v2046
    %v2132 = vunpack.c.l.b16 %v2047
    %v2133 = vunpack.c.l.b16 %v2048
    %v2134 = vunpack.c.l.b16 %v2049
    %v2135 = vunpack.c.l.b16 %v2050
    %v2136 = vunpack.c.l.b16 %v2051
    %v2137 = vunpack.c.l.b16 %v2052
    %v2138 = vunpack.c.l.b16 %v2053
    %v2139 = vunpack.c.l.b16 %v2054
    %v2140 = vunpack.c.l.b16 %v2055
    %v2141 = vunpack.c.l.b16 %v2056
    %v2142 = vunpack.c.l.b16 %v2057
    %v2143 = vunpack.c.l.b16 %v2058
    %v2144 = vunpack.c.l.b16 %v2059
    %v2145 = vunpack.c.l.b16 %v2060
    %v2146 = vunpack.c.l.b16 %v2061
    %v2147 = vunpack.c.l.b16 %v2062
    %v2148 = vunpack.c.l.b16 %v2063
    %v2149 = vunpack.c.l.b16 %v2064
    %v2150 = vunpack.c.l.b16 %v2065
    %v2151 = vunpack.c.l.b16 %v2066
    %v2152 = vunpack.c.l.b16 %v2067
    %v2153 = vunpack.c.l.b16 %v2068
    %v2154 = vunpack.c.l.b16 %v2069
    %v2155 = vunpack.c.l.b16 %v2070
    %v2156 = vunpack.c.l.b16 %v2071
    %v2157 = vunpack.c.l.b16 %v2072
    %v2158 = vunpack.c.l.b16 %v2073
    %v2159 = vunpack.c.l.b16 %v2074
    %v2160 = vpack.c.b16 %v2129, %v2128
    %v2161 = vpack.c.b16 %v2131, %v2130
    %v2162 = vpack.c.b16 %v2133, %v2132
    %v2163 = vpack.c.b16 %v2135, %v2134
    %v2164 = vpack.c.b16 %v2137, %v2136
    %v2165 = vpack.c.b16 %v2139, %v2138
    %v2166 = vpack.c.b16 %v2141, %v2140
    %v2167 = vpack.c.b16 %v2143, %v2142
    %v2168 = vpack.c.b16 %v2145, %v2144
    %v2169 = vpack.c.b16 %v2147, %v2146
    %v2170 = vpack.c.b16 %v2149, %v2148
    %v2171 = vpack.c.b16 %v2151, %v2150
    %v2172 = vpack.c.b16 %v2153, %v2152
    %v2173 = vpack.c.b16 %v2155, %v2154
    %v2174 = vpack.c.b16 %v2157, %v2156
    %v2175 = vpack.c.b16 %v2159, %v2158
    %2192 = vmatprep.subr.bf16.mxu0 0
    %2193 = vmatpush1.bf16.msra.mxu0 %v2160
    %2194 = vmatprep.subr.bf16.mxu0 0
    %2195 = vmatpush1.bf16.msra.mxu0 %v2161
    %2196 = vmatprep.subr.bf16.mxu0 0
    %2197 = vmatpush1.bf16.msra.mxu0 %v2162
    %2198 = vmatprep.subr.bf16.mxu0 0
    %2199 = vmatpush1.bf16.msra.mxu0 %v2163
    %2200 = vmatprep.subr.bf16.mxu0 0
    %2201 = vmatpush1.bf16.msra.mxu0 %v2164
    %2202 = vmatprep.subr.bf16.mxu0 0
    %2203 = vmatpush1.bf16.msra.mxu0 %v2165
    %2204 = vmatprep.subr.bf16.mxu0 0
    %2205 = vmatpush1.bf16.msra.mxu0 %v2166
    %2206 = vmatprep.subr.bf16.mxu0 0
    %2207 = vmatpush1.bf16.msra.mxu0 %v2167
    %2208 = vmatprep.subr.bf16.mxu0 0
    %2209 = vmatpush1.bf16.msra.mxu0 %v2168
    %2210 = vmatprep.subr.bf16.mxu0 0
    %2211 = vmatpush1.bf16.msra.mxu0 %v2169
    %2212 = vmatprep.subr.bf16.mxu0 0
    %2213 = vmatpush1.bf16.msra.mxu0 %v2170
    %2214 = vmatprep.subr.bf16.mxu0 0
    %2215 = vmatpush1.bf16.msra.mxu0 %v2171
    %2216 = vmatprep.subr.bf16.mxu0 0
    %2217 = vmatpush1.bf16.msra.mxu0 %v2172
    %2218 = vmatprep.subr.bf16.mxu0 0
    %2219 = vmatpush1.bf16.msra.mxu0 %v2173
    %2220 = vmatprep.subr.bf16.mxu0 0
    %2221 = vmatpush1.bf16.msra.mxu0 %v2174
    %2222 = vmatprep.subr.bf16.mxu0 0
    %2223 = vmatpush1.bf16.msra.mxu0 %v2175
    %2224 = vmatprep.mubr.bf16.mxu0 %v2081
    %2225 = vmatmul.mubr.bf16.gmra.mrb[0].mxu0 %v2080
    %v2226 = vpop.f32.mrb[0].mxu0
    %v2227 = vadd.f32 %v2079, %v2226
    %v2228 = vpop.f32.mrb[0].mxu0
    %v2229 = vpop.f32.mrb[0].mxu0
    %v2230 = vadd.f32 %v2079, %v2229
    %v2231 = vpop.f32.mrb[0].mxu0
    %2232 = vmatprep.mubr.bf16.mxu0 %v2083
    %2233 = vmatmul.mubr.bf16.gmra.mrb[0].mxu0 %v2082
    %v2234 = vpop.f32.mrb[0].mxu0
    %v2235 = vadd.f32 %v2079, %v2234
    %v2236 = vpop.f32.mrb[0].mxu0
    %v2237 = vpop.f32.mrb[0].mxu0
    %v2238 = vadd.f32 %v2079, %v2237
    %v2239 = vpop.f32.mrb[0].mxu0
    %2240 = vmatprep.mubr.bf16.mxu0 %v2085
    %2241 = vmatmul.mubr.bf16.gmra.mrb[0].mxu0 %v2084
    %v2242 = vpop.f32.mrb[0].mxu0
    %v2243 = vadd.f32 %v2079, %v2242
    %v2244 = vpop.f32.mrb[0].mxu0
    %v2245 = vpop.f32.mrb[0].mxu0
    %v2246 = vadd.f32 %v2079, %v2245
    %v2247 = vpop.f32.mrb[0].mxu0
    %2248 = vmatprep.mubr.bf16.mxu0 %v2087
    %2249 = vmatmul.mubr.bf16.gmra.mrb[0].mxu0 %v2086
    %v2250 = vpop.f32.mrb[0].mxu0
    %v2251 = vadd.f32 %v2079, %v2250
    %v2252 = vpop.f32.mrb[0].mxu0
    %v2253 = vpop.f32.mrb[0].mxu0
    %v2254 = vadd.f32 %v2079, %v2253
    %v2255 = vpop.f32.mrb[0].mxu0
    %2256 = vmatprep.mubr.bf16.mxu0 %v2089
    %2257 = vmatmul.mubr.bf16.gmra.mrb[0].mxu0 %v2088
    %v2258 = vpop.f32.mrb[0].mxu0
    %v2259 = vadd.f32 %v2079, %v2258
    %v2260 = vpop.f32.mrb[0].mxu0
    %v2261 = vpop.f32.mrb[0].mxu0
    %v2262 = vadd.f32 %v2079, %v2261
    %v2263 = vpop.f32.mrb[0].mxu0
    %2264 = vmatprep.mubr.bf16.mxu0 %v2091
    %2265 = vmatmul.mubr.bf16.gmra.mrb[0].mxu0 %v2090
    %v2266 = vpop.f32.mrb[0].mxu0
    %v2267 = vadd.f32 %v2079, %v2266
    %v2268 = vpop.f32.mrb[0].mxu0
    %v2269 = vpop.f32.mrb[0].mxu0
    %v2270 = vadd.f32 %v2079, %v2269
    %v2271 = vpop.f32.mrb[0].mxu0
    %2272 = vmatprep.mubr.bf16.mxu0 %v2093
    %2273 = vmatmul.mubr.bf16.gmra.mrb[0].mxu0 %v2092
    %v2274 = vpop.f32.mrb[0].mxu0
    %v2275 = vadd.f32 %v2079, %v2274
    %v2276 = vpop.f32.mrb[0].mxu0
    %v2277 = vpop.f32.mrb[0].mxu0
    %v2278 = vadd.f32 %v2079, %v2277
    %v2279 = vpop.f32.mrb[0].mxu0
    %2280 = vmatprep.mubr.bf16.mxu0 %v2095
    %2281 = vmatmul.mubr.bf16.gmra.mrb[0].mxu0 %v2094
    %v2282 = vpop.f32.mrb[0].mxu0
    %v2283 = vadd.f32 %v2079, %v2282
    %v2284 = vpop.f32.mrb[0].mxu0
    %v2285 = vpop.f32.mrb[0].mxu0
    %v2286 = vadd.f32 %v2079, %v2285
    %v2287 = vpop.f32.mrb[0].mxu0
    %2288 = vdwg.mxu0
    %v2289 = vmax.f32 %v2227, 0.0
    %v2290 = vmax.f32 %v2230, 0.0
    %v2291 = vmax.f32 %v2235, 0.0
    %v2292 = vmax.f32 %v2238, 0.0
    %v2293 = vmax.f32 %v2243, 0.0
    %v2294 = vmax.f32 %v2246, 0.0
    %v2295 = vmax.f32 %v2251, 0.0
    %v2296 = vmax.f32 %v2254, 0.0
    %v2297 = vmax.f32 %v2259, 0.0
    %v2298 = vmax.f32 %v2262, 0.0
    %v2299 = vmax.f32 %v2267, 0.0
    %v2300 = vmax.f32 %v2270, 0.0
    %v2301 = vmax.f32 %v2275, 0.0
    %v2302 = vmax.f32 %v2278, 0.0
    %v2303 = vmax.f32 %v2283, 0.0
    %v2304 = vmax.f32 %v2286, 0.0
    %v2305 = vpack.c.bf16 %v2013, %v2011
    %v2306 = vpack.c.bf16 %v2014, %v2012
    %v2307 = vpack.c.bf16 %v2017, %v2015
    %v2308 = vpack.c.bf16 %v2018, %v2016
    %v2309 = vpack.c.bf16 %v2021, %v2019
    %v2310 = vpack.c.bf16 %v2022, %v2020
    %v2311 = vpack.c.bf16 %v2025, %v2023
    %v2312 = vpack.c.bf16 %v2026, %v2024
    %v2313 = vpack.c.bf16 %v2029, %v2027
    %v2314 = vpack.c.bf16 %v2030, %v2028
    %v2315 = vpack.c.bf16 %v2033, %v2031
    %v2316 = vpack.c.bf16 %v2034, %v2032
    %v2317 = vpack.c.bf16 %v2037, %v2035
    %v2318 = vpack.c.bf16 %v2038, %v2036
    %v2319 = vpack.c.bf16 %v2041, %v2039
    %v2320 = vpack.c.bf16 %v2042, %v2040
    %2321 = vmatprep.subr.bf16.mxu0 0
    %2322 = vmatpush1.bf16.msra.mxu0 %v2160
    %2323 = vmatprep.subr.bf16.mxu0 0
    %2324 = vmatpush1.bf16.msra.mxu0 %v2161
    %2325 = vmatprep.subr.bf16.mxu0 0
    %2326 = vmatpush1.bf16.msra.mxu0 %v2162
    %2327 = vmatprep.subr.bf16.mxu0 0
    %2328 = vmatpush1.bf16.msra.mxu0 %v2163
    %2329 = vmatprep.subr.bf16.mxu0 0
    %2330 = vmatpush1.bf16.msra.mxu0 %v2164
    %2331 = vmatprep.subr.bf16.mxu0 0
    %2332 = vmatpush1.bf16.msra.mxu0 %v2165
    %2333 = vmatprep.subr.bf16.mxu0 0
    %2334 = vmatpush1.bf16.msra.mxu0 %v2166
    %2335 = vmatprep.subr.bf16.mxu0 0
    %2336 = vmatpush1.bf16.msra.mxu0 %v2167
    %2337 = vmatprep.subr.bf16.mxu0 0
    %2338 = vmatpush1.bf16.msra.mxu0 %v2168
    %2339 = vmatprep.subr.bf16.mxu0 0
    %2340 = vmatpush1.bf16.msra.mxu0 %v2169
    %2341 = vmatprep.subr.bf16.mxu0 0
    %2342 = vmatpush1.bf16.msra.mxu0 %v2170
    %2343 = vmatprep.subr.bf16.mxu0 0
    %2344 = vmatpush1.bf16.msra.mxu0 %v2171
    %2345 = vmatprep.subr.bf16.mxu0 0
    %2346 = vmatpush1.bf16.msra.mxu0 %v2172
    %2347 = vmatprep.subr.bf16.mxu0 0
    %2348 = vmatpush1.bf16.msra.mxu0 %v2173
    %2349 = vmatprep.subr.bf16.mxu0 0
    %2350 = vmatpush1.bf16.msra.mxu0 %v2174
    %2351 = vmatprep.subr.bf16.mxu0 0
    %2352 = vmatpush1.bf16.msra.mxu0 %v2175
    %2353 = vmatprep.mubr.bf16.mxu0 %v2306
    %2354 = vmatmul.mubr.bf16.gmra.mrb[0].mxu0 %v2305
    %v2355 = vpop.f32.mrb[0].mxu0
    %v2356 = vadd.f32 %v2079, %v2355
    %v2357 = vpop.f32.mrb[0].mxu0
    %v2358 = vpop.f32.mrb[0].mxu0
    %v2359 = vadd.f32 %v2079, %v2358
    %v2360 = vpop.f32.mrb[0].mxu0
    %2361 = vmatprep.mubr.bf16.mxu0 %v2308
    %2362 = vmatmul.mubr.bf16.gmra.mrb[0].mxu0 %v2307
    %v2363 = vpop.f32.mrb[0].mxu0
    %v2364 = vadd.f32 %v2079, %v2363
    %v2365 = vpop.f32.mrb[0].mxu0
    %v2366 = vpop.f32.mrb[0].mxu0
    %v2367 = vadd.f32 %v2079, %v2366
    %v2368 = vpop.f32.mrb[0].mxu0
    %2369 = vmatprep.mubr.bf16.mxu0 %v2310
    %2370 = vmatmul.mubr.bf16.gmra.mrb[0].mxu0 %v2309
    %v2371 = vpop.f32.mrb[0].mxu0
    %v2372 = vadd.f32 %v2079, %v2371
    %v2373 = vpop.f32.mrb[0].mxu0
    %v2374 = vpop.f32.mrb[0].mxu0
    %v2375 = vadd.f32 %v2079, %v2374
    %v2376 = vpop.f32.mrb[0].mxu0
    %2377 = vmatprep.mubr.bf16.mxu0 %v2312
    %2378 = vmatmul.mubr.bf16.gmra.mrb[0].mxu0 %v2311
    %v2379 = vpop.f32.mrb[0].mxu0
    %v2380 = vadd.f32 %v2079, %v2379
    %v2381 = vpop.f32.mrb[0].mxu0
    %v2382 = vpop.f32.mrb[0].mxu0
    %v2383 = vadd.f32 %v2079, %v2382
    %v2384 = vpop.f32.mrb[0].mxu0
    %2385 = vmatprep.mubr.bf16.mxu0 %v2314
    %2386 = vmatmul.mubr.bf16.gmra.mrb[0].mxu0 %v2313
    %v2387 = vpop.f32.mrb[0].mxu0
    %v2388 = vadd.f32 %v2079, %v2387
    %v2389 = vpop.f32.mrb[0].mxu0
    %v2390 = vpop.f32.mrb[0].mxu0
    %v2391 = vadd.f32 %v2079, %v2390
    %v2392 = vpop.f32.mrb[0].mxu0
    %2393 = vmatprep.mubr.bf16.mxu0 %v2316
    %2394 = vmatmul.mubr.bf16.gmra.mrb[0].mxu0 %v2315
    %v2395 = vpop.f32.mrb[0].mxu0
    %v2396 = vadd.f32 %v2079, %v2395
    %v2397 = vpop.f32.mrb[0].mxu0
    %v2398 = vpop.f32.mrb[0].mxu0
    %v2399 = vadd.f32 %v2079, %v2398
    %v2400 = vpop.f32.mrb[0].mxu0
    %2401 = vmatprep.mubr.bf16.mxu0 %v2318
    %2402 = vmatmul.mubr.bf16.gmra.mrb[0].mxu0 %v2317
    %v2403 = vpop.f32.mrb[0].mxu0
    %v2404 = vadd.f32 %v2079, %v2403
    %v2405 = vpop.f32.mrb[0].mxu0
    %v2406 = vpop.f32.mrb[0].mxu0
    %v2407 = vadd.f32 %v2079, %v2406
    %v2408 = vpop.f32.mrb[0].mxu0
    %2409 = vmatprep.mubr.bf16.mxu0 %v2320
    %2410 = vmatmul.mubr.bf16.gmra.mrb[0].mxu0 %v2319
    %v2411 = vpop.f32.mrb[0].mxu0
    %v2412 = vadd.f32 %v2079, %v2411
    %v2413 = vpop.f32.mrb[0].mxu0
    %v2414 = vpop.f32.mrb[0].mxu0
    %v2415 = vadd.f32 %v2079, %v2414
    %v2416 = vpop.f32.mrb[0].mxu0
    %2417 = vdwg.mxu0
    %v2418 = vmax.f32 %v2356, 0.0
    %v2419 = vmax.f32 %v2359, 0.0
    %v2420 = vmax.f32 %v2364, 0.0
    %v2421 = vmax.f32 %v2367, 0.0
    %v2422 = vmax.f32 %v2372, 0.0
    %v2423 = vmax.f32 %v2375, 0.0
    %v2424 = vmax.f32 %v2380, 0.0
    %v2425 = vmax.f32 %v2383, 0.0
    %v2426 = vmax.f32 %v2388, 0.0
    %v2427 = vmax.f32 %v2391, 0.0
    %v2428 = vmax.f32 %v2396, 0.0
    %v2429 = vmax.f32 %v2399, 0.0
    %v2430 = vmax.f32 %v2404, 0.0
    %v2431 = vmax.f32 %v2407, 0.0
    %v2432 = vmax.f32 %v2412, 0.0
    %v2433 = vmax.f32 %v2415, 0.0
    %v2434 = vld [vmem:[%s5] sm:$0xf]
    %v2435 = vld [vmem:[%s5 + $0x4] sm:$0xf]
    %v2436 = vld [vmem:[%s6 + $0x1] sm:$0x1]
    %v2437 = vlaneseq
    %v2438 = vshrl.u32 %v2437, 7
    %v2439 = vsub.s32 0, %v2438
    %v2440 = vrot.slane %v2436, %v2439
    %v2441 = vpack.c.bf16 %v2290, %v2289
    %v2442 = vpack.c.bf16 %v2292, %v2291
    %v2443 = vpack.c.bf16 %v2294, %v2293
    %v2444 = vpack.c.bf16 %v2296, %v2295
    %v2445 = vpack.c.bf16 %v2298, %v2297
    %v2446 = vpack.c.bf16 %v2300, %v2299
    %v2447 = vpack.c.bf16 %v2302, %v2301
    %v2448 = vpack.c.bf16 %v2304, %v2303
    %v2451 = vunpack.c.l.b16 %v2434
    %v2452 = vunpack.c.l.b16 %v2435
    %v2453 = vpack.c.b16 %v2452, %v2451
    %vm2455 = vcmask 130048
    %v2457 = vsel %vm2455, %v2441, 0
    %v2460 = vsel %vm2455, %v2442, 0
    %v2463 = vsel %vm2455, %v2443, 0
    %v2466 = vsel %vm2455, %v2444, 0
    %v2469 = vsel %vm2455, %v2445, 0
    %v2472 = vsel %vm2455, %v2446, 0
    %v2475 = vsel %vm2455, %v2447, 0
    %v2478 = vsel %vm2455, %v2448, 0
    %2480 = vmatprep.subr.bf16.mxu0 0
    %2481 = vmatpush1.bf16.msra.mxu0 %v2453
    %2482 = vmatprep.subr.bf16.mxu0 0
    %2483 = vmatpush1.bf16.msra.mxu0 0
    %2484 = vmatprep.subr.bf16.mxu0 0
    %2485 = vmatpush1.bf16.msra.mxu0 0
    %2486 = vmatprep.subr.bf16.mxu0 0
    %2487 = vmatpush1.bf16.msra.mxu0 0
    %2488 = vmatprep.subr.bf16.mxu0 0
    %2489 = vmatpush1.bf16.msra.mxu0 0
    %2490 = vmatprep.subr.bf16.mxu0 0
    %2491 = vmatpush1.bf16.msra.mxu0 0
    %2492 = vmatprep.subr.bf16.mxu0 0
    %2493 = vmatpush1.bf16.msra.mxu0 0
    %2494 = vmatprep.subr.bf16.mxu0 0
    %2495 = vmatpush1.bf16.msra.mxu0 0
    %2496 = vmatprep.subr.bf16.mxu0 0
    %2497 = vmatpush1.bf16.msra.mxu0 0
    %2498 = vmatprep.subr.bf16.mxu0 0
    %2499 = vmatpush1.bf16.msra.mxu0 0
    %2500 = vmatprep.subr.bf16.mxu0 0
    %2501 = vmatpush1.bf16.msra.mxu0 0
    %2502 = vmatprep.subr.bf16.mxu0 0
    %2503 = vmatpush1.bf16.msra.mxu0 0
    %2504 = vmatprep.subr.bf16.mxu0 0
    %2505 = vmatpush1.bf16.msra.mxu0 0
    %2506 = vmatprep.subr.bf16.mxu0 0
    %2507 = vmatpush1.bf16.msra.mxu0 0
    %2508 = vmatprep.subr.bf16.mxu0 0
    %2509 = vmatpush1.bf16.msra.mxu0 0
    %2510 = vmatprep.subr.bf16.mxu0 0
    %2511 = vmatpush1.bf16.msra.mxu0 0
    %2512 = vmatprep.mubr.bf16.mxu0 0
    %2513 = vmatmul.mubr.bf16.gmra.mrb[0].mxu0 %v2457
    %v2514 = vpop.f32.mrb[0].mxu0
    %v2515 = vadd.f32 %v2440, %v2514
    %v2516 = vpop.f32.mrb[0].mxu0
    %v2517 = vpop.f32.mrb[0].mxu0
    %v2518 = vadd.f32 %v2440, %v2517
    %v2519 = vpop.f32.mrb[0].mxu0
    %2520 = vmatprep.mubr.bf16.mxu0 0
    %2521 = vmatmul.mubr.bf16.gmra.mrb[0].mxu0 %v2460
    %v2522 = vpop.f32.mrb[0].mxu0
    %v2523 = vadd.f32 %v2440, %v2522
    %v2524 = vpop.f32.mrb[0].mxu0
    %v2525 = vpop.f32.mrb[0].mxu0
    %v2526 = vadd.f32 %v2440, %v2525
    %v2527 = vpop.f32.mrb[0].mxu0
    %2528 = vmatprep.mubr.bf16.mxu0 0
    %2529 = vmatmul.mubr.bf16.gmra.mrb[0].mxu0 %v2463
    %v2530 = vpop.f32.mrb[0].mxu0
    %v2531 = vadd.f32 %v2440, %v2530
    %v2532 = vpop.f32.mrb[0].mxu0
    %v2533 = vpop.f32.mrb[0].mxu0
    %v2534 = vadd.f32 %v2440, %v2533
    %v2535 = vpop.f32.mrb[0].mxu0
    %2536 = vmatprep.mubr.bf16.mxu0 0
    %2537 = vmatmul.mubr.bf16.gmra.mrb[0].mxu0 %v2466
    %v2538 = vpop.f32.mrb[0].mxu0
    %v2539 = vadd.f32 %v2440, %v2538
    %v2540 = vpop.f32.mrb[0].mxu0
    %v2541 = vpop.f32.mrb[0].mxu0
    %v2542 = vadd.f32 %v2440, %v2541
    %v2543 = vpop.f32.mrb[0].mxu0
    %2544 = vmatprep.mubr.bf16.mxu0 0
    %2545 = vmatmul.mubr.bf16.gmra.mrb[0].mxu0 %v2469
    %v2546 = vpop.f32.mrb[0].mxu0
    %v2547 = vadd.f32 %v2440, %v2546
    %v2548 = vpop.f32.mrb[0].mxu0
    %v2549 = vpop.f32.mrb[0].mxu0
    %v2550 = vadd.f32 %v2440, %v2549
    %v2551 = vpop.f32.mrb[0].mxu0
    %2552 = vmatprep.mubr.bf16.mxu0 0
    %2553 = vmatmul.mubr.bf16.gmra.mrb[0].mxu0 %v2472
    %v2554 = vpop.f32.mrb[0].mxu0
    %v2555 = vadd.f32 %v2440, %v2554
    %v2556 = vpop.f32.mrb[0].mxu0
    %v2557 = vpop.f32.mrb[0].mxu0
    %v2558 = vadd.f32 %v2440, %v2557
    %v2559 = vpop.f32.mrb[0].mxu0
    %2560 = vmatprep.mubr.bf16.mxu0 0
    %2561 = vmatmul.mubr.bf16.gmra.mrb[0].mxu0 %v2475
    %v2562 = vpop.f32.mrb[0].mxu0
    %v2563 = vadd.f32 %v2440, %v2562
    %v2564 = vpop.f32.mrb[0].mxu0
    %v2565 = vpop.f32.mrb[0].mxu0
    %v2566 = vadd.f32 %v2440, %v2565
    %v2567 = vpop.f32.mrb[0].mxu0
    %2568 = vmatprep.mubr.bf16.mxu0 0
    %2569 = vmatmul.mubr.bf16.gmra.mrb[0].mxu0 %v2478
    %v2570 = vpop.f32.mrb[0].mxu0
    %v2571 = vadd.f32 %v2440, %v2570
    %v2572 = vpop.f32.mrb[0].mxu0
    %v2573 = vpop.f32.mrb[0].mxu0
    %v2574 = vadd.f32 %v2440, %v2573
    %v2575 = vpop.f32.mrb[0].mxu0
    %2576 = vdwg.mxu0
    %v2577 = vmax.f32 %v2515, 0.0
    %v2578 = vmax.f32 %v2518, 0.0
    %v2579 = vmax.f32 %v2523, 0.0
    %v2580 = vmax.f32 %v2526, 0.0
    %v2581 = vmax.f32 %v2531, 0.0
    %v2582 = vmax.f32 %v2534, 0.0
    %v2583 = vmax.f32 %v2539, 0.0
    %v2584 = vmax.f32 %v2542, 0.0
    %v2585 = vmax.f32 %v2547, 0.0
    %v2586 = vmax.f32 %v2550, 0.0
    %v2587 = vmax.f32 %v2555, 0.0
    %v2588 = vmax.f32 %v2558, 0.0
    %v2589 = vmax.f32 %v2563, 0.0
    %v2590 = vmax.f32 %v2566, 0.0
    %v2591 = vmax.f32 %v2571, 0.0
    %v2592 = vmax.f32 %v2574, 0.0
    %v2593 = vpack.c.bf16 %v2419, %v2418
    %v2594 = vpack.c.bf16 %v2421, %v2420
    %v2595 = vpack.c.bf16 %v2423, %v2422
    %v2596 = vpack.c.bf16 %v2425, %v2424
    %v2597 = vpack.c.bf16 %v2427, %v2426
    %v2598 = vpack.c.bf16 %v2429, %v2428
    %v2599 = vpack.c.bf16 %v2431, %v2430
    %v2600 = vpack.c.bf16 %v2433, %v2432
    %v2602 = vsel %vm2455, %v2593, 0
    %v2605 = vsel %vm2455, %v2594, 0
    %v2608 = vsel %vm2455, %v2595, 0
    %v2611 = vsel %vm2455, %v2596, 0
    %v2614 = vsel %vm2455, %v2597, 0
    %v2617 = vsel %vm2455, %v2598, 0
    %v2620 = vsel %vm2455, %v2599, 0
    %v2623 = vsel %vm2455, %v2600, 0
    %2625 = vmatprep.subr.bf16.mxu0 0
    %2626 = vmatpush1.bf16.msra.mxu0 %v2453
    %2627 = vmatprep.subr.bf16.mxu0 0
    %2628 = vmatpush1.bf16.msra.mxu0 0
    %2629 = vmatprep.subr.bf16.mxu0 0
    %2630 = vmatpush1.bf16.msra.mxu0 0
    %2631 = vmatprep.subr.bf16.mxu0 0
    %2632 = vmatpush1.bf16.msra.mxu0 0
    %2633 = vmatprep.subr.bf16.mxu0 0
    %2634 = vmatpush1.bf16.msra.mxu0 0
    %2635 = vmatprep.subr.bf16.mxu0 0
    %2636 = vmatpush1.bf16.msra.mxu0 0
    %2637 = vmatprep.subr.bf16.mxu0 0
    %2638 = vmatpush1.bf16.msra.mxu0 0
    %2639 = vmatprep.subr.bf16.mxu0 0
    %2640 = vmatpush1.bf16.msra.mxu0 0
    %2641 = vmatprep.subr.bf16.mxu0 0
    %2642 = vmatpush1.bf16.msra.mxu0 0
    %2643 = vmatprep.subr.bf16.mxu0 0
    %2644 = vmatpush1.bf16.msra.mxu0 0
    %2645 = vmatprep.subr.bf16.mxu0 0
    %2646 = vmatpush1.bf16.msra.mxu0 0
    %2647 = vmatprep.subr.bf16.mxu0 0
    %2648 = vmatpush1.bf16.msra.mxu0 0
    %2649 = vmatprep.subr.bf16.mxu0 0
    %2650 = vmatpush1.bf16.msra.mxu0 0
    %2651 = vmatprep.subr.bf16.mxu0 0
    %2652 = vmatpush1.bf16.msra.mxu0 0
    %2653 = vmatprep.subr.bf16.mxu0 0
    %2654 = vmatpush1.bf16.msra.mxu0 0
    %2655 = vmatprep.subr.bf16.mxu0 0
    %2656 = vmatpush1.bf16.msra.mxu0 0
    %2657 = vmatprep.mubr.bf16.mxu0 0
    %2658 = vmatmul.mubr.bf16.gmra.mrb[0].mxu0 %v2602
    %v2659 = vpop.f32.mrb[0].mxu0
    %v2660 = vadd.f32 %v2440, %v2659
    %v2661 = vpop.f32.mrb[0].mxu0
    %v2662 = vpop.f32.mrb[0].mxu0
    %v2663 = vadd.f32 %v2440, %v2662
    %v2664 = vpop.f32.mrb[0].mxu0
    %2665 = vmatprep.mubr.bf16.mxu0 0
    %2666 = vmatmul.mubr.bf16.gmra.mrb[0].mxu0 %v2605
    %v2667 = vpop.f32.mrb[0].mxu0
    %v2668 = vadd.f32 %v2440, %v2667
    %v2669 = vpop.f32.mrb[0].mxu0
    %v2670 = vpop.f32.mrb[0].mxu0
    %v2671 = vadd.f32 %v2440, %v2670
    %v2672 = vpop.f32.mrb[0].mxu0
    %2673 = vmatprep.mubr.bf16.mxu0 0
    %2674 = vmatmul.mubr.bf16.gmra.mrb[0].mxu0 %v2608
    %v2675 = vpop.f32.mrb[0].mxu0
    %v2676 = vadd.f32 %v2440, %v2675
    %v2677 = vpop.f32.mrb[0].mxu0
    %v2678 = vpop.f32.mrb[0].mxu0
    %v2679 = vadd.f32 %v2440, %v2678
    %v2680 = vpop.f32.mrb[0].mxu0
    %2681 = vmatprep.mubr.bf16.mxu0 0
    %2682 = vmatmul.mubr.bf16.gmra.mrb[0].mxu0 %v2611
    %v2683 = vpop.f32.mrb[0].mxu0
    %v2684 = vadd.f32 %v2440, %v2683
    %v2685 = vpop.f32.mrb[0].mxu0
    %v2686 = vpop.f32.mrb[0].mxu0
    %v2687 = vadd.f32 %v2440, %v2686
    %v2688 = vpop.f32.mrb[0].mxu0
    %2689 = vmatprep.mubr.bf16.mxu0 0
    %2690 = vmatmul.mubr.bf16.gmra.mrb[0].mxu0 %v2614
    %v2691 = vpop.f32.mrb[0].mxu0
    %v2692 = vadd.f32 %v2440, %v2691
    %v2693 = vpop.f32.mrb[0].mxu0
    %v2694 = vpop.f32.mrb[0].mxu0
    %v2695 = vadd.f32 %v2440, %v2694
    %v2696 = vpop.f32.mrb[0].mxu0
    %2697 = vmatprep.mubr.bf16.mxu0 0
    %2698 = vmatmul.mubr.bf16.gmra.mrb[0].mxu0 %v2617
    %v2699 = vpop.f32.mrb[0].mxu0
    %v2700 = vadd.f32 %v2440, %v2699
    %v2701 = vpop.f32.mrb[0].mxu0
    %v2702 = vpop.f32.mrb[0].mxu0
    %v2703 = vadd.f32 %v2440, %v2702
    %v2704 = vpop.f32.mrb[0].mxu0
    %2705 = vmatprep.mubr.bf16.mxu0 0
    %2706 = vmatmul.mubr.bf16.gmra.mrb[0].mxu0 %v2620
    %v2707 = vpop.f32.mrb[0].mxu0
    %v2708 = vadd.f32 %v2440, %v2707
    %v2709 = vpop.f32.mrb[0].mxu0
    %v2710 = vpop.f32.mrb[0].mxu0
    %v2711 = vadd.f32 %v2440, %v2710
    %v2712 = vpop.f32.mrb[0].mxu0
    %2713 = vmatprep.mubr.bf16.mxu0 0
    %2714 = vmatmul.mubr.bf16.gmra.mrb[0].mxu0 %v2623
    %v2715 = vpop.f32.mrb[0].mxu0
    %v2716 = vadd.f32 %v2440, %v2715
    %v2717 = vpop.f32.mrb[0].mxu0
    %v2718 = vpop.f32.mrb[0].mxu0
    %v2719 = vadd.f32 %v2440, %v2718
    %v2720 = vpop.f32.mrb[0].mxu0
    %2721 = vdwg.mxu0
    %v2722 = vmax.f32 %v2660, 0.0
    %v2723 = vmax.f32 %v2663, 0.0
    %v2724 = vmax.f32 %v2668, 0.0
    %v2725 = vmax.f32 %v2671, 0.0
    %v2726 = vmax.f32 %v2676, 0.0
    %v2727 = vmax.f32 %v2679, 0.0
    %v2728 = vmax.f32 %v2684, 0.0
    %v2729 = vmax.f32 %v2687, 0.0
    %v2730 = vmax.f32 %v2692, 0.0
    %v2731 = vmax.f32 %v2695, 0.0
    %v2732 = vmax.f32 %v2700, 0.0
    %v2733 = vmax.f32 %v2703, 0.0
    %v2734 = vmax.f32 %v2708, 0.0
    %v2735 = vmax.f32 %v2711, 0.0
    %v2736 = vmax.f32 %v2716, 0.0
    %v2737 = vmax.f32 %v2719, 0.0
    %s2738 = scalar_lea.vmem %s5, 8
    %v2739 = vld [vmem:[%s2738] sm:$0xf]
    %v2740 = vld [vmem:[%s2738 + $0x4] sm:$0xf]
    %v2741 = vld [vmem:[%s6 + $0x2] sm:$0x1]
    %v2742 = vlaneseq
    %v2743 = vshrl.u32 %v2742, 7
    %v2744 = vsub.s32 0, %v2743
    %v2745 = vrot.slane %v2741, %v2744
    %v2746 = vpack.c.bf16 %v2578, %v2577
    %v2747 = vpack.c.bf16 %v2580, %v2579
    %v2748 = vpack.c.bf16 %v2582, %v2581
    %v2749 = vpack.c.bf16 %v2584, %v2583
    %v2750 = vpack.c.bf16 %v2586, %v2585
    %v2751 = vpack.c.bf16 %v2588, %v2587
    %v2752 = vpack.c.bf16 %v2590, %v2589
    %v2753 = vpack.c.bf16 %v2592, %v2591
    %v2756 = vunpack.c.l.b16 %v2739
    %v2757 = vunpack.c.l.b16 %v2740
    %v2758 = vpack.c.b16 %v2757, %v2756
    %v2761 = vsel %vm2455, %v2746, 0
    %v2764 = vsel %vm2455, %v2747, 0
    %v2767 = vsel %vm2455, %v2748, 0
    %v2770 = vsel %vm2455, %v2749, 0
    %v2773 = vsel %vm2455, %v2750, 0
    %v2776 = vsel %vm2455, %v2751, 0
    %v2779 = vsel %vm2455, %v2752, 0
    %v2782 = vsel %vm2455, %v2753, 0
    %2784 = vmatprep.subr.bf16.mxu0 0
    %2785 = vmatpush1.bf16.msra.mxu0 %v2758
    %2786 = vmatprep.subr.bf16.mxu0 0
    %2787 = vmatpush1.bf16.msra.mxu0 0
    %2788 = vmatprep.subr.bf16.mxu0 0
    %2789 = vmatpush1.bf16.msra.mxu0 0
    %2790 = vmatprep.subr.bf16.mxu0 0
    %2791 = vmatpush1.bf16.msra.mxu0 0
    %2792 = vmatprep.subr.bf16.mxu0 0
    %2793 = vmatpush1.bf16.msra.mxu0 0
    %2794 = vmatprep.subr.bf16.mxu0 0
    %2795 = vmatpush1.bf16.msra.mxu0 0
    %2796 = vmatprep.subr.bf16.mxu0 0
    %2797 = vmatpush1.bf16.msra.mxu0 0
    %2798 = vmatprep.subr.bf16.mxu0 0
    %2799 = vmatpush1.bf16.msra.mxu0 0
    %2800 = vmatprep.subr.bf16.mxu0 0
    %2801 = vmatpush1.bf16.msra.mxu0 0
    %2802 = vmatprep.subr.bf16.mxu0 0
    %2803 = vmatpush1.bf16.msra.mxu0 0
    %2804 = vmatprep.subr.bf16.mxu0 0
    %2805 = vmatpush1.bf16.msra.mxu0 0
    %2806 = vmatprep.subr.bf16.mxu0 0
    %2807 = vmatpush1.bf16.msra.mxu0 0
    %2808 = vmatprep.subr.bf16.mxu0 0
    %2809 = vmatpush1.bf16.msra.mxu0 0
    %2810 = vmatprep.subr.bf16.mxu0 0
    %2811 = vmatpush1.bf16.msra.mxu0 0
    %2812 = vmatprep.subr.bf16.mxu0 0
    %2813 = vmatpush1.bf16.msra.mxu0 0
    %2814 = vmatprep.subr.bf16.mxu0 0
    %2815 = vmatpush1.bf16.msra.mxu0 0
    %2816 = vmatprep.mubr.bf16.mxu0 0
    %2817 = vmatmul.mubr.bf16.gmra.mrb[0].mxu0 %v2761
    %v2818 = vpop.f32.mrb[0].mxu0
    %v2819 = vadd.f32 %v2745, %v2818
    %v2820 = vpop.f32.mrb[0].mxu0
    %v2821 = vpop.f32.mrb[0].mxu0
    %v2822 = vadd.f32 %v2745, %v2821
    %v2823 = vpop.f32.mrb[0].mxu0
    %2824 = vmatprep.mubr.bf16.mxu0 0
    %2825 = vmatmul.mubr.bf16.gmra.mrb[0].mxu0 %v2764
    %v2826 = vpop.f32.mrb[0].mxu0
    %v2827 = vadd.f32 %v2745, %v2826
    %v2828 = vpop.f32.mrb[0].mxu0
    %v2829 = vpop.f32.mrb[0].mxu0
    %v2830 = vadd.f32 %v2745, %v2829
    %v2831 = vpop.f32.mrb[0].mxu0
    %2832 = vmatprep.mubr.bf16.mxu0 0
    %2833 = vmatmul.mubr.bf16.gmra.mrb[0].mxu0 %v2767
    %v2834 = vpop.f32.mrb[0].mxu0
    %v2835 = vadd.f32 %v2745, %v2834
    %v2836 = vpop.f32.mrb[0].mxu0
    %v2837 = vpop.f32.mrb[0].mxu0
    %v2838 = vadd.f32 %v2745, %v2837
    %v2839 = vpop.f32.mrb[0].mxu0
    %2840 = vmatprep.mubr.bf16.mxu0 0
    %2841 = vmatmul.mubr.bf16.gmra.mrb[0].mxu0 %v2770
    %v2842 = vpop.f32.mrb[0].mxu0
    %v2843 = vadd.f32 %v2745, %v2842
    %v2844 = vpop.f32.mrb[0].mxu0
    %v2845 = vpop.f32.mrb[0].mxu0
    %v2846 = vadd.f32 %v2745, %v2845
    %v2847 = vpop.f32.mrb[0].mxu0
    %2848 = vmatprep.mubr.bf16.mxu0 0
    %2849 = vmatmul.mubr.bf16.gmra.mrb[0].mxu0 %v2773
    %v2850 = vpop.f32.mrb[0].mxu0
    %v2851 = vadd.f32 %v2745, %v2850
    %v2852 = vpop.f32.mrb[0].mxu0
    %v2853 = vpop.f32.mrb[0].mxu0
    %v2854 = vadd.f32 %v2745, %v2853
    %v2855 = vpop.f32.mrb[0].mxu0
    %2856 = vmatprep.mubr.bf16.mxu0 0
    %2857 = vmatmul.mubr.bf16.gmra.mrb[0].mxu0 %v2776
    %v2858 = vpop.f32.mrb[0].mxu0
    %v2859 = vadd.f32 %v2745, %v2858
    %v2860 = vpop.f32.mrb[0].mxu0
    %v2861 = vpop.f32.mrb[0].mxu0
    %v2862 = vadd.f32 %v2745, %v2861
    %v2863 = vpop.f32.mrb[0].mxu0
    %2864 = vmatprep.mubr.bf16.mxu0 0
    %2865 = vmatmul.mubr.bf16.gmra.mrb[0].mxu0 %v2779
    %v2866 = vpop.f32.mrb[0].mxu0
    %v2867 = vadd.f32 %v2745, %v2866
    %v2868 = vpop.f32.mrb[0].mxu0
    %v2869 = vpop.f32.mrb[0].mxu0
    %v2870 = vadd.f32 %v2745, %v2869
    %v2871 = vpop.f32.mrb[0].mxu0
    %2872 = vmatprep.mubr.bf16.mxu0 0
    %2873 = vmatmul.mubr.bf16.gmra.mrb[0].mxu0 %v2782
    %v2874 = vpop.f32.mrb[0].mxu0
    %v2875 = vadd.f32 %v2745, %v2874
    %v2876 = vpop.f32.mrb[0].mxu0
    %v2877 = vpop.f32.mrb[0].mxu0
    %v2878 = vadd.f32 %v2745, %v2877
    %v2879 = vpop.f32.mrb[0].mxu0
    %2880 = vdwg.mxu0
    %v2881 = vmax.f32 %v2819, 0.0
    %v2882 = vmax.f32 %v2822, 0.0
    %v2883 = vmax.f32 %v2827, 0.0
    %v2884 = vmax.f32 %v2830, 0.0
    %v2885 = vmax.f32 %v2835, 0.0
    %v2886 = vmax.f32 %v2838, 0.0
    %v2887 = vmax.f32 %v2843, 0.0
    %v2888 = vmax.f32 %v2846, 0.0
    %v2889 = vmax.f32 %v2851, 0.0
    %v2890 = vmax.f32 %v2854, 0.0
    %v2891 = vmax.f32 %v2859, 0.0
    %v2892 = vmax.f32 %v2862, 0.0
    %v2893 = vmax.f32 %v2867, 0.0
    %v2894 = vmax.f32 %v2870, 0.0
    %v2895 = vmax.f32 %v2875, 0.0
    %v2896 = vmax.f32 %v2878, 0.0
    %v2897 = vpack.c.bf16 %v2723, %v2722
    %v2898 = vpack.c.bf16 %v2725, %v2724
    %v2899 = vpack.c.bf16 %v2727, %v2726
    %v2900 = vpack.c.bf16 %v2729, %v2728
    %v2901 = vpack.c.bf16 %v2731, %v2730
    %v2902 = vpack.c.bf16 %v2733, %v2732
    %v2903 = vpack.c.bf16 %v2735, %v2734
    %v2904 = vpack.c.bf16 %v2737, %v2736
    %v2906 = vsel %vm2455, %v2897, 0
    %v2909 = vsel %vm2455, %v2898, 0
    %v2912 = vsel %vm2455, %v2899, 0
    %v2915 = vsel %vm2455, %v2900, 0
    %v2918 = vsel %vm2455, %v2901, 0
    %v2921 = vsel %vm2455, %v2902, 0
    %v2924 = vsel %vm2455, %v2903, 0
    %v2927 = vsel %vm2455, %v2904, 0
    %2929 = vmatprep.subr.bf16.mxu0 0
    %2930 = vmatpush1.bf16.msra.mxu0 %v2758
    %2931 = vmatprep.subr.bf16.mxu0 0
    %2932 = vmatpush1.bf16.msra.mxu0 0
    %2933 = vmatprep.subr.bf16.mxu0 0
    %2934 = vmatpush1.bf16.msra.mxu0 0
    %2935 = vmatprep.subr.bf16.mxu0 0
    %2936 = vmatpush1.bf16.msra.mxu0 0
    %2937 = vmatprep.subr.bf16.mxu0 0
    %2938 = vmatpush1.bf16.msra.mxu0 0
    %2939 = vmatprep.subr.bf16.mxu0 0
    %2940 = vmatpush1.bf16.msra.mxu0 0
    %2941 = vmatprep.subr.bf16.mxu0 0
    %2942 = vmatpush1.bf16.msra.mxu0 0
    %2943 = vmatprep.subr.bf16.mxu0 0
    %2944 = vmatpush1.bf16.msra.mxu0 0
    %2945 = vmatprep.subr.bf16.mxu0 0
    %2946 = vmatpush1.bf16.msra.mxu0 0
    %2947 = vmatprep.subr.bf16.mxu0 0
    %2948 = vmatpush1.bf16.msra.mxu0 0
    %2949 = vmatprep.subr.bf16.mxu0 0
    %2950 = vmatpush1.bf16.msra.mxu0 0
    %2951 = vmatprep.subr.bf16.mxu0 0
    %2952 = vmatpush1.bf16.msra.mxu0 0
    %2953 = vmatprep.subr.bf16.mxu0 0
    %2954 = vmatpush1.bf16.msra.mxu0 0
    %2955 = vmatprep.subr.bf16.mxu0 0
    %2956 = vmatpush1.bf16.msra.mxu0 0
    %2957 = vmatprep.subr.bf16.mxu0 0
    %2958 = vmatpush1.bf16.msra.mxu0 0
    %2959 = vmatprep.subr.bf16.mxu0 0
    %2960 = vmatpush1.bf16.msra.mxu0 0
    %2961 = vmatprep.mubr.bf16.mxu0 0
    %2962 = vmatmul.mubr.bf16.gmra.mrb[0].mxu0 %v2906
    %v2963 = vpop.f32.mrb[0].mxu0
    %v2964 = vadd.f32 %v2745, %v2963
    %v2965 = vpop.f32.mrb[0].mxu0
    %v2966 = vpop.f32.mrb[0].mxu0
    %v2967 = vadd.f32 %v2745, %v2966
    %v2968 = vpop.f32.mrb[0].mxu0
    %2969 = vmatprep.mubr.bf16.mxu0 0
    %2970 = vmatmul.mubr.bf16.gmra.mrb[0].mxu0 %v2909
    %v2971 = vpop.f32.mrb[0].mxu0
    %v2972 = vadd.f32 %v2745, %v2971
    %v2973 = vpop.f32.mrb[0].mxu0
    %v2974 = vpop.f32.mrb[0].mxu0
    %v2975 = vadd.f32 %v2745, %v2974
    %v2976 = vpop.f32.mrb[0].mxu0
    %2977 = vmatprep.mubr.bf16.mxu0 0
    %2978 = vmatmul.mubr.bf16.gmra.mrb[0].mxu0 %v2912
    %v2979 = vpop.f32.mrb[0].mxu0
    %v2980 = vadd.f32 %v2745, %v2979
    %v2981 = vpop.f32.mrb[0].mxu0
    %v2982 = vpop.f32.mrb[0].mxu0
    %v2983 = vadd.f32 %v2745, %v2982
    %v2984 = vpop.f32.mrb[0].mxu0
    %2985 = vmatprep.mubr.bf16.mxu0 0
    %2986 = vmatmul.mubr.bf16.gmra.mrb[0].mxu0 %v2915
    %v2987 = vpop.f32.mrb[0].mxu0
    %v2988 = vadd.f32 %v2745, %v2987
    %v2989 = vpop.f32.mrb[0].mxu0
    %v2990 = vpop.f32.mrb[0].mxu0
    %v2991 = vadd.f32 %v2745, %v2990
    %v2992 = vpop.f32.mrb[0].mxu0
    %2993 = vmatprep.mubr.bf16.mxu0 0
    %2994 = vmatmul.mubr.bf16.gmra.mrb[0].mxu0 %v2918
    %v2995 = vpop.f32.mrb[0].mxu0
    %v2996 = vadd.f32 %v2745, %v2995
    %v2997 = vpop.f32.mrb[0].mxu0
    %v2998 = vpop.f32.mrb[0].mxu0
    %v2999 = vadd.f32 %v2745, %v2998
    %v3000 = vpop.f32.mrb[0].mxu0
    %3001 = vmatprep.mubr.bf16.mxu0 0
    %3002 = vmatmul.mubr.bf16.gmra.mrb[0].mxu0 %v2921
    %v3003 = vpop.f32.mrb[0].mxu0
    %v3004 = vadd.f32 %v2745, %v3003
    %v3005 = vpop.f32.mrb[0].mxu0
    %v3006 = vpop.f32.mrb[0].mxu0
    %v3007 = vadd.f32 %v2745, %v3006
    %v3008 = vpop.f32.mrb[0].mxu0
    %3009 = vmatprep.mubr.bf16.mxu0 0
    %3010 = vmatmul.mubr.bf16.gmra.mrb[0].mxu0 %v2924
    %v3011 = vpop.f32.mrb[0].mxu0
    %v3012 = vadd.f32 %v2745, %v3011
    %v3013 = vpop.f32.mrb[0].mxu0
    %v3014 = vpop.f32.mrb[0].mxu0
    %v3015 = vadd.f32 %v2745, %v3014
    %v3016 = vpop.f32.mrb[0].mxu0
    %3017 = vmatprep.mubr.bf16.mxu0 0
    %3018 = vmatmul.mubr.bf16.gmra.mrb[0].mxu0 %v2927
    %v3019 = vpop.f32.mrb[0].mxu0
    %v3020 = vadd.f32 %v2745, %v3019
    %v3021 = vpop.f32.mrb[0].mxu0
    %v3022 = vpop.f32.mrb[0].mxu0
    %v3023 = vadd.f32 %v2745, %v3022
    %v3024 = vpop.f32.mrb[0].mxu0
    %3025 = vdwg.mxu0
    %v3026 = vmax.f32 %v2964, 0.0
    %v3027 = vmax.f32 %v2967, 0.0
    %v3028 = vmax.f32 %v2972, 0.0
    %v3029 = vmax.f32 %v2975, 0.0
    %v3030 = vmax.f32 %v2980, 0.0
    %v3031 = vmax.f32 %v2983, 0.0
    %v3032 = vmax.f32 %v2988, 0.0
    %v3033 = vmax.f32 %v2991, 0.0
    %v3034 = vmax.f32 %v2996, 0.0
    %v3035 = vmax.f32 %v2999, 0.0
    %v3036 = vmax.f32 %v3004, 0.0
    %v3037 = vmax.f32 %v3007, 0.0
    %v3038 = vmax.f32 %v3012, 0.0
    %v3039 = vmax.f32 %v3015, 0.0
    %v3040 = vmax.f32 %v3020, 0.0
    %v3041 = vmax.f32 %v3023, 0.0
    %s3042 = scalar_lea.vmem %s5, 16
    %v3043 = vld [vmem:[%s3042] sm:$0xf]
    %v3044 = vld [vmem:[%s3042 + $0x4] sm:$0xf]
    %v3045 = vld [vmem:[%s7] sm:$0x3]
    %v3046 = vld [vmem:[%s6 + $0x3] sm:$0x1]
    %v3047 = vlaneseq
    %v3048 = vshrl.u32 %v3047, 7
    %v3049 = vsub.s32 0, %v3048
    %v3050 = vrot.slane %v3046, %v3049
    %v3051 = vpack.c.bf16 %v2882, %v2881
    %v3052 = vpack.c.bf16 %v2884, %v2883
    %v3053 = vpack.c.bf16 %v2886, %v2885
    %v3054 = vpack.c.bf16 %v2888, %v2887
    %v3055 = vpack.c.bf16 %v2890, %v2889
    %v3056 = vpack.c.bf16 %v2892, %v2891
    %v3057 = vpack.c.bf16 %v2894, %v2893
    %v3058 = vpack.c.bf16 %v2896, %v2895
    %v3060 = vsel %vm131, %v3045, 0
    %3062 = vmatprep.subr.bf16.mxu0 0
    %3063 = vmatpush1.bf16.msra.mxu0 %v3060
    %3064 = vmatprep.subr.bf16.mxu0 0
    %3065 = vmatpush1.bf16.msra.mxu0 0
    %3066 = vmatprep.subr.bf16.mxu0 0
    %3067 = vmatpush1.bf16.msra.mxu0 0
    %3068 = vmatprep.subr.bf16.mxu0 0
    %3069 = vmatpush1.bf16.msra.mxu0 0
    %3070 = vmatprep.subr.bf16.mxu0 0
    %3071 = vmatpush1.bf16.msra.mxu0 0
    %3072 = vmatprep.subr.bf16.mxu0 0
    %3073 = vmatpush1.bf16.msra.mxu0 0
    %3074 = vmatprep.subr.bf16.mxu0 0
    %3075 = vmatpush1.bf16.msra.mxu0 0
    %3076 = vmatprep.subr.bf16.mxu0 0
    %3077 = vmatpush1.bf16.msra.mxu0 0
    %3078 = vmatprep.subr.bf16.mxu0 0
    %3079 = vmatpush1.bf16.msra.mxu0 0
    %3080 = vmatprep.subr.bf16.mxu0 0
    %3081 = vmatpush1.bf16.msra.mxu0 0
    %3082 = vmatprep.subr.bf16.mxu0 0
    %3083 = vmatpush1.bf16.msra.mxu0 0
    %3084 = vmatprep.subr.bf16.mxu0 0
    %3085 = vmatpush1.bf16.msra.mxu0 0
    %3086 = vmatprep.subr.bf16.mxu0 0
    %3087 = vmatpush1.bf16.msra.mxu0 0
    %3088 = vmatprep.subr.bf16.mxu0 0
    %3089 = vmatpush1.bf16.msra.mxu0 0
    %3090 = vmatprep.subr.bf16.mxu0 0
    %3091 = vmatpush1.bf16.msra.mxu0 0
    %3092 = vmatprep.subr.bf16.mxu0 0
    %3093 = vmatpush1.bf16.msra.mxu0 0
    %3094 = vmatprep.mubr.bf16.mxu0 0
    %3095 = vmatmul.mubr.bf16.gmra.mrb[0].mxu0 %v108
    %v3096 = vpop.f32.mrb[0].mxu0
    %v3097 = vadd.f32 0.0, %v3096
    %v3098 = vpop.f32.mrb[0].mxu0
    %v3099 = vpop.f32.mrb[0].mxu0
    %v3100 = vadd.f32 0.0, %v3099
    %v3101 = vpop.f32.mrb[0].mxu0
    %3102 = vmatprep.mubr.bf16.mxu0 0
    %3103 = vmatmul.mubr.bf16.gmra.mrb[0].mxu0 %v111
    %v3104 = vpop.f32.mrb[0].mxu0
    %v3105 = vadd.f32 0.0, %v3104
    %v3106 = vpop.f32.mrb[0].mxu0
    %v3107 = vpop.f32.mrb[0].mxu0
    %v3108 = vadd.f32 0.0, %v3107
    %v3109 = vpop.f32.mrb[0].mxu0
    %3110 = vmatprep.mubr.bf16.mxu0 0
    %3111 = vmatmul.mubr.bf16.gmra.mrb[0].mxu0 %v114
    %v3112 = vpop.f32.mrb[0].mxu0
    %v3113 = vadd.f32 0.0, %v3112
    %v3114 = vpop.f32.mrb[0].mxu0
    %v3115 = vpop.f32.mrb[0].mxu0
    %v3116 = vadd.f32 0.0, %v3115
    %v3117 = vpop.f32.mrb[0].mxu0
    %3118 = vmatprep.mubr.bf16.mxu0 0
    %3119 = vmatmul.mubr.bf16.gmra.mrb[0].mxu0 %v117
    %v3120 = vpop.f32.mrb[0].mxu0
    %v3121 = vadd.f32 0.0, %v3120
    %v3122 = vpop.f32.mrb[0].mxu0
    %v3123 = vpop.f32.mrb[0].mxu0
    %v3124 = vadd.f32 0.0, %v3123
    %v3125 = vpop.f32.mrb[0].mxu0
    %3126 = vmatprep.mubr.bf16.mxu0 0
    %3127 = vmatmul.mubr.bf16.gmra.mrb[0].mxu0 %v120
    %v3128 = vpop.f32.mrb[0].mxu0
    %v3129 = vadd.f32 0.0, %v3128
    %v3130 = vpop.f32.mrb[0].mxu0
    %v3131 = vpop.f32.mrb[0].mxu0
    %v3132 = vadd.f32 0.0, %v3131
    %v3133 = vpop.f32.mrb[0].mxu0
    %3134 = vmatprep.mubr.bf16.mxu0 0
    %3135 = vmatmul.mubr.bf16.gmra.mrb[0].mxu0 %v123
    %v3136 = vpop.f32.mrb[0].mxu0
    %v3137 = vadd.f32 0.0, %v3136
    %v3138 = vpop.f32.mrb[0].mxu0
    %v3139 = vpop.f32.mrb[0].mxu0
    %v3140 = vadd.f32 0.0, %v3139
    %v3141 = vpop.f32.mrb[0].mxu0
    %3142 = vmatprep.mubr.bf16.mxu0 0
    %3143 = vmatmul.mubr.bf16.gmra.mrb[0].mxu0 %v126
    %v3144 = vpop.f32.mrb[0].mxu0
    %v3145 = vadd.f32 0.0, %v3144
    %v3146 = vpop.f32.mrb[0].mxu0
    %v3147 = vpop.f32.mrb[0].mxu0
    %v3148 = vadd.f32 0.0, %v3147
    %v3149 = vpop.f32.mrb[0].mxu0
    %3150 = vmatprep.mubr.bf16.mxu0 0
    %3151 = vmatmul.mubr.bf16.gmra.mrb[0].mxu0 %v129
    %v3152 = vpop.f32.mrb[0].mxu0
    %v3153 = vadd.f32 0.0, %v3152
    %v3154 = vpop.f32.mrb[0].mxu0
    %v3155 = vpop.f32.mrb[0].mxu0
    %v3156 = vadd.f32 0.0, %v3155
    %v3157 = vpop.f32.mrb[0].mxu0
    %3158 = vdwg.mxu0
    %v3161 = vunpack.c.l.b16 %v3043
    %v3162 = vunpack.c.l.b16 %v3044
    %v3163 = vpack.c.b16 %v3162, %v3161
    %v3166 = vsel %vm2455, %v3051, 0
    %v3169 = vsel %vm2455, %v3052, 0
    %v3172 = vsel %vm2455, %v3053, 0
    %v3175 = vsel %vm2455, %v3054, 0
    %v3178 = vsel %vm2455, %v3055, 0
    %v3181 = vsel %vm2455, %v3056, 0
    %v3184 = vsel %vm2455, %v3057, 0
    %v3187 = vsel %vm2455, %v3058, 0
    %3189 = vmatprep.subr.bf16.mxu0 0
    %3190 = vmatpush1.bf16.msra.mxu0 %v3163
    %3191 = vmatprep.subr.bf16.mxu0 0
    %3192 = vmatpush1.bf16.msra.mxu0 0
    %3193 = vmatprep.subr.bf16.mxu0 0
    %3194 = vmatpush1.bf16.msra.mxu0 0
    %3195 = vmatprep.subr.bf16.mxu0 0
    %3196 = vmatpush1.bf16.msra.mxu0 0
    %3197 = vmatprep.subr.bf16.mxu0 0
    %3198 = vmatpush1.bf16.msra.mxu0 0
    %3199 = vmatprep.subr.bf16.mxu0 0
    %3200 = vmatpush1.bf16.msra.mxu0 0
    %3201 = vmatprep.subr.bf16.mxu0 0
    %3202 = vmatpush1.bf16.msra.mxu0 0
    %3203 = vmatprep.subr.bf16.mxu0 0
    %3204 = vmatpush1.bf16.msra.mxu0 0
    %3205 = vmatprep.subr.bf16.mxu0 0
    %3206 = vmatpush1.bf16.msra.mxu0 0
    %3207 = vmatprep.subr.bf16.mxu0 0
    %3208 = vmatpush1.bf16.msra.mxu0 0
    %3209 = vmatprep.subr.bf16.mxu0 0
    %3210 = vmatpush1.bf16.msra.mxu0 0
    %3211 = vmatprep.subr.bf16.mxu0 0
    %3212 = vmatpush1.bf16.msra.mxu0 0
    %3213 = vmatprep.subr.bf16.mxu0 0
    %3214 = vmatpush1.bf16.msra.mxu0 0
    %3215 = vmatprep.subr.bf16.mxu0 0
    %3216 = vmatpush1.bf16.msra.mxu0 0
    %3217 = vmatprep.subr.bf16.mxu0 0
    %3218 = vmatpush1.bf16.msra.mxu0 0
    %3219 = vmatprep.subr.bf16.mxu0 0
    %3220 = vmatpush1.bf16.msra.mxu0 0
    %3221 = vmatprep.mubr.bf16.mxu0 0
    %3222 = vmatmul.mubr.bf16.gmra.mrb[0].mxu0 %v3166
    %v3223 = vpop.f32.mrb[0].mxu0
    %v3224 = vadd.f32 %v3097, %v3223
    %v3225 = vpop.f32.mrb[0].mxu0
    %v3226 = vpop.f32.mrb[0].mxu0
    %v3227 = vadd.f32 %v3100, %v3226
    %v3228 = vpop.f32.mrb[0].mxu0
    %3229 = vmatprep.mubr.bf16.mxu0 0
    %3230 = vmatmul.mubr.bf16.gmra.mrb[0].mxu0 %v3169
    %v3231 = vpop.f32.mrb[0].mxu0
    %v3232 = vadd.f32 %v3105, %v3231
    %v3233 = vpop.f32.mrb[0].mxu0
    %v3234 = vpop.f32.mrb[0].mxu0
    %v3235 = vadd.f32 %v3108, %v3234
    %v3236 = vpop.f32.mrb[0].mxu0
    %3237 = vmatprep.mubr.bf16.mxu0 0
    %3238 = vmatmul.mubr.bf16.gmra.mrb[0].mxu0 %v3172
    %v3239 = vpop.f32.mrb[0].mxu0
    %v3240 = vadd.f32 %v3113, %v3239
    %v3241 = vpop.f32.mrb[0].mxu0
    %v3242 = vpop.f32.mrb[0].mxu0
    %v3243 = vadd.f32 %v3116, %v3242
    %v3244 = vpop.f32.mrb[0].mxu0
    %3245 = vmatprep.mubr.bf16.mxu0 0
    %3246 = vmatmul.mubr.bf16.gmra.mrb[0].mxu0 %v3175
    %v3247 = vpop.f32.mrb[0].mxu0
    %v3248 = vadd.f32 %v3121, %v3247
    %v3249 = vpop.f32.mrb[0].mxu0
    %v3250 = vpop.f32.mrb[0].mxu0
    %v3251 = vadd.f32 %v3124, %v3250
    %v3252 = vpop.f32.mrb[0].mxu0
    %3253 = vmatprep.mubr.bf16.mxu0 0
    %3254 = vmatmul.mubr.bf16.gmra.mrb[0].mxu0 %v3178
    %v3255 = vpop.f32.mrb[0].mxu0
    %v3256 = vadd.f32 %v3129, %v3255
    %v3257 = vpop.f32.mrb[0].mxu0
    %v3258 = vpop.f32.mrb[0].mxu0
    %v3259 = vadd.f32 %v3132, %v3258
    %v3260 = vpop.f32.mrb[0].mxu0
    %3261 = vmatprep.mubr.bf16.mxu0 0
    %3262 = vmatmul.mubr.bf16.gmra.mrb[0].mxu0 %v3181
    %v3263 = vpop.f32.mrb[0].mxu0
    %v3264 = vadd.f32 %v3137, %v3263
    %v3265 = vpop.f32.mrb[0].mxu0
    %v3266 = vpop.f32.mrb[0].mxu0
    %v3267 = vadd.f32 %v3140, %v3266
    %v3268 = vpop.f32.mrb[0].mxu0
    %3269 = vmatprep.mubr.bf16.mxu0 0
    %3270 = vmatmul.mubr.bf16.gmra.mrb[0].mxu0 %v3184
    %v3271 = vpop.f32.mrb[0].mxu0
    %v3272 = vadd.f32 %v3145, %v3271
    %v3273 = vpop.f32.mrb[0].mxu0
    %v3274 = vpop.f32.mrb[0].mxu0
    %v3275 = vadd.f32 %v3148, %v3274
    %v3276 = vpop.f32.mrb[0].mxu0
    %3277 = vmatprep.mubr.bf16.mxu0 0
    %3278 = vmatmul.mubr.bf16.gmra.mrb[0].mxu0 %v3187
    %v3279 = vpop.f32.mrb[0].mxu0
    %v3280 = vadd.f32 %v3153, %v3279
    %v3281 = vpop.f32.mrb[0].mxu0
    %v3282 = vpop.f32.mrb[0].mxu0
    %v3283 = vadd.f32 %v3156, %v3282
    %v3284 = vpop.f32.mrb[0].mxu0
    %3285 = vdwg.mxu0
    %v3286 = vadd.f32 %v3224, %v3050
    %v3287 = vadd.f32 %v3227, %v3050
    %v3288 = vadd.f32 %v3232, %v3050
    %v3289 = vadd.f32 %v3235, %v3050
    %v3290 = vadd.f32 %v3240, %v3050
    %v3291 = vadd.f32 %v3243, %v3050
    %v3292 = vadd.f32 %v3248, %v3050
    %v3293 = vadd.f32 %v3251, %v3050
    %v3294 = vadd.f32 %v3256, %v3050
    %v3295 = vadd.f32 %v3259, %v3050
    %v3296 = vadd.f32 %v3264, %v3050
    %v3297 = vadd.f32 %v3267, %v3050
    %v3298 = vadd.f32 %v3272, %v3050
    %v3299 = vadd.f32 %v3275, %v3050
    %v3300 = vadd.f32 %v3280, %v3050
    %v3301 = vadd.f32 %v3283, %v3050
    %3302 = vst.msk [vmem:[%s8] sm:$0xff] %vm2455, %v3286
    %3303 = vst.msk [vmem:[%s8 + $0x8] sm:$0xff] %vm2455, %v3287
    %3304 = vst.msk [vmem:[%s8 + $0x10] sm:$0xff] %vm2455, %v3288
    %3305 = vst.msk [vmem:[%s8 + $0x18] sm:$0xff] %vm2455, %v3289
    %3306 = vst.msk [vmem:[%s8 + $0x20] sm:$0xff] %vm2455, %v3290
    %3307 = vst.msk [vmem:[%s8 + $0x28] sm:$0xff] %vm2455, %v3291
    %3308 = vst.msk [vmem:[%s8 + $0x30] sm:$0xff] %vm2455, %v3292
    %3309 = vst.msk [vmem:[%s8 + $0x38] sm:$0xff] %vm2455, %v3293
    %3310 = vst.msk [vmem:[%s8 + $0x40] sm:$0xff] %vm2455, %v3294
    %3311 = vst.msk [vmem:[%s8 + $0x48] sm:$0xff] %vm2455, %v3295
    %3312 = vst.msk [vmem:[%s8 + $0x50] sm:$0xff] %vm2455, %v3296
    %3313 = vst.msk [vmem:[%s8 + $0x58] sm:$0xff] %vm2455, %v3297
    %3314 = vst.msk [vmem:[%s8 + $0x60] sm:$0xff] %vm2455, %v3298
    %3315 = vst.msk [vmem:[%s8 + $0x68] sm:$0xff] %vm2455, %v3299
    %3316 = vst.msk [vmem:[%s8 + $0x70] sm:$0xff] %vm2455, %v3300
    %3317 = vst.msk [vmem:[%s8 + $0x78] sm:$0xff] %vm2455, %v3301
    %v3318 = vpack.c.bf16 %v3027, %v3026
    %v3319 = vpack.c.bf16 %v3029, %v3028
    %v3320 = vpack.c.bf16 %v3031, %v3030
    %v3321 = vpack.c.bf16 %v3033, %v3032
    %v3322 = vpack.c.bf16 %v3035, %v3034
    %v3323 = vpack.c.bf16 %v3037, %v3036
    %v3324 = vpack.c.bf16 %v3039, %v3038
    %v3325 = vpack.c.bf16 %v3041, %v3040
    %3326 = vmatprep.subr.bf16.mxu0 0
    %3327 = vmatpush1.bf16.msra.mxu0 %v3060
    %3328 = vmatprep.subr.bf16.mxu0 0
    %3329 = vmatpush1.bf16.msra.mxu0 0
    %3330 = vmatprep.subr.bf16.mxu0 0
    %3331 = vmatpush1.bf16.msra.mxu0 0
    %3332 = vmatprep.subr.bf16.mxu0 0
    %3333 = vmatpush1.bf16.msra.mxu0 0
    %3334 = vmatprep.subr.bf16.mxu0 0
    %3335 = vmatpush1.bf16.msra.mxu0 0
    %3336 = vmatprep.subr.bf16.mxu0 0
    %3337 = vmatpush1.bf16.msra.mxu0 0
    %3338 = vmatprep.subr.bf16.mxu0 0
    %3339 = vmatpush1.bf16.msra.mxu0 0
    %3340 = vmatprep.subr.bf16.mxu0 0
    %3341 = vmatpush1.bf16.msra.mxu0 0
    %3342 = vmatprep.subr.bf16.mxu0 0
    %3343 = vmatpush1.bf16.msra.mxu0 0
    %3344 = vmatprep.subr.bf16.mxu0 0
    %3345 = vmatpush1.bf16.msra.mxu0 0
    %3346 = vmatprep.subr.bf16.mxu0 0
    %3347 = vmatpush1.bf16.msra.mxu0 0
    %3348 = vmatprep.subr.bf16.mxu0 0
    %3349 = vmatpush1.bf16.msra.mxu0 0
    %3350 = vmatprep.subr.bf16.mxu0 0
    %3351 = vmatpush1.bf16.msra.mxu0 0
    %3352 = vmatprep.subr.bf16.mxu0 0
    %3353 = vmatpush1.bf16.msra.mxu0 0
    %3354 = vmatprep.subr.bf16.mxu0 0
    %3355 = vmatpush1.bf16.msra.mxu0 0
    %3356 = vmatprep.subr.bf16.mxu0 0
    %3357 = vmatpush1.bf16.msra.mxu0 0
    %3358 = vmatprep.mubr.bf16.mxu0 0
    %3359 = vmatmul.mubr.bf16.gmra.mrb[0].mxu0 %v292
    %v3360 = vpop.f32.mrb[0].mxu0
    %v3361 = vadd.f32 0.0, %v3360
    %v3362 = vpop.f32.mrb[0].mxu0
    %v3363 = vpop.f32.mrb[0].mxu0
    %v3364 = vadd.f32 0.0, %v3363
    %v3365 = vpop.f32.mrb[0].mxu0
    %3366 = vmatprep.mubr.bf16.mxu0 0
    %3367 = vmatmul.mubr.bf16.gmra.mrb[0].mxu0 %v295
    %v3368 = vpop.f32.mrb[0].mxu0
    %v3369 = vadd.f32 0.0, %v3368
    %v3370 = vpop.f32.mrb[0].mxu0
    %v3371 = vpop.f32.mrb[0].mxu0
    %v3372 = vadd.f32 0.0, %v3371
    %v3373 = vpop.f32.mrb[0].mxu0
    %3374 = vmatprep.mubr.bf16.mxu0 0
    %3375 = vmatmul.mubr.bf16.gmra.mrb[0].mxu0 %v298
    %v3376 = vpop.f32.mrb[0].mxu0
    %v3377 = vadd.f32 0.0, %v3376
    %v3378 = vpop.f32.mrb[0].mxu0
    %v3379 = vpop.f32.mrb[0].mxu0
    %v3380 = vadd.f32 0.0, %v3379
    %v3381 = vpop.f32.mrb[0].mxu0
    %3382 = vmatprep.mubr.bf16.mxu0 0
    %3383 = vmatmul.mubr.bf16.gmra.mrb[0].mxu0 %v301
    %v3384 = vpop.f32.mrb[0].mxu0
    %v3385 = vadd.f32 0.0, %v3384
    %v3386 = vpop.f32.mrb[0].mxu0
    %v3387 = vpop.f32.mrb[0].mxu0
    %v3388 = vadd.f32 0.0, %v3387
    %v3389 = vpop.f32.mrb[0].mxu0
    %3390 = vmatprep.mubr.bf16.mxu0 0
    %3391 = vmatmul.mubr.bf16.gmra.mrb[0].mxu0 %v304
    %v3392 = vpop.f32.mrb[0].mxu0
    %v3393 = vadd.f32 0.0, %v3392
    %v3394 = vpop.f32.mrb[0].mxu0
    %v3395 = vpop.f32.mrb[0].mxu0
    %v3396 = vadd.f32 0.0, %v3395
    %v3397 = vpop.f32.mrb[0].mxu0
    %3398 = vmatprep.mubr.bf16.mxu0 0
    %3399 = vmatmul.mubr.bf16.gmra.mrb[0].mxu0 %v307
    %v3400 = vpop.f32.mrb[0].mxu0
    %v3401 = vadd.f32 0.0, %v3400
    %v3402 = vpop.f32.mrb[0].mxu0
    %v3403 = vpop.f32.mrb[0].mxu0
    %v3404 = vadd.f32 0.0, %v3403
    %v3405 = vpop.f32.mrb[0].mxu0
    %3406 = vmatprep.mubr.bf16.mxu0 0
    %3407 = vmatmul.mubr.bf16.gmra.mrb[0].mxu0 %v310
    %v3408 = vpop.f32.mrb[0].mxu0
    %v3409 = vadd.f32 0.0, %v3408
    %v3410 = vpop.f32.mrb[0].mxu0
    %v3411 = vpop.f32.mrb[0].mxu0
    %v3412 = vadd.f32 0.0, %v3411
    %v3413 = vpop.f32.mrb[0].mxu0
    %3414 = vmatprep.mubr.bf16.mxu0 0
    %3415 = vmatmul.mubr.bf16.gmra.mrb[0].mxu0 %v313
    %v3416 = vpop.f32.mrb[0].mxu0
    %v3417 = vadd.f32 0.0, %v3416
    %v3418 = vpop.f32.mrb[0].mxu0
    %v3419 = vpop.f32.mrb[0].mxu0
    %v3420 = vadd.f32 0.0, %v3419
    %v3421 = vpop.f32.mrb[0].mxu0
    %3422 = vdwg.mxu0
    %v3424 = vsel %vm2455, %v3318, 0
    %v3427 = vsel %vm2455, %v3319, 0
    %v3430 = vsel %vm2455, %v3320, 0
    %v3433 = vsel %vm2455, %v3321, 0
    %v3436 = vsel %vm2455, %v3322, 0
    %v3439 = vsel %vm2455, %v3323, 0
    %v3442 = vsel %vm2455, %v3324, 0
    %v3445 = vsel %vm2455, %v3325, 0
    %3447 = vmatprep.subr.bf16.mxu0 0
    %3448 = vmatpush1.bf16.msra.mxu0 %v3163
    %3449 = vmatprep.subr.bf16.mxu0 0
    %3450 = vmatpush1.bf16.msra.mxu0 0
    %3451 = vmatprep.subr.bf16.mxu0 0
    %3452 = vmatpush1.bf16.msra.mxu0 0
    %3453 = vmatprep.subr.bf16.mxu0 0
    %3454 = vmatpush1.bf16.msra.mxu0 0
    %3455 = vmatprep.subr.bf16.mxu0 0
    %3456 = vmatpush1.bf16.msra.mxu0 0
    %3457 = vmatprep.subr.bf16.mxu0 0
    %3458 = vmatpush1.bf16.msra.mxu0 0
    %3459 = vmatprep.subr.bf16.mxu0 0
    %3460 = vmatpush1.bf16.msra.mxu0 0
    %3461 = vmatprep.subr.bf16.mxu0 0
    %3462 = vmatpush1.bf16.msra.mxu0 0
    %3463 = vmatprep.subr.bf16.mxu0 0
    %3464 = vmatpush1.bf16.msra.mxu0 0
    %3465 = vmatprep.subr.bf16.mxu0 0
    %3466 = vmatpush1.bf16.msra.mxu0 0
    %3467 = vmatprep.subr.bf16.mxu0 0
    %3468 = vmatpush1.bf16.msra.mxu0 0
    %3469 = vmatprep.subr.bf16.mxu0 0
    %3470 = vmatpush1.bf16.msra.mxu0 0
    %3471 = vmatprep.subr.bf16.mxu0 0
    %3472 = vmatpush1.bf16.msra.mxu0 0
    %3473 = vmatprep.subr.bf16.mxu0 0
    %3474 = vmatpush1.bf16.msra.mxu0 0
    %3475 = vmatprep.subr.bf16.mxu0 0
    %3476 = vmatpush1.bf16.msra.mxu0 0
    %3477 = vmatprep.subr.bf16.mxu0 0
    %3478 = vmatpush1.bf16.msra.mxu0 0
    %3479 = vmatprep.mubr.bf16.mxu0 0
    %3480 = vmatmul.mubr.bf16.gmra.mrb[0].mxu0 %v3424
    %v3481 = vpop.f32.mrb[0].mxu0
    %v3482 = vadd.f32 %v3361, %v3481
    %v3483 = vpop.f32.mrb[0].mxu0
    %v3484 = vpop.f32.mrb[0].mxu0
    %v3485 = vadd.f32 %v3364, %v3484
    %v3486 = vpop.f32.mrb[0].mxu0
    %3487 = vmatprep.mubr.bf16.mxu0 0
    %3488 = vmatmul.mubr.bf16.gmra.mrb[0].mxu0 %v3427
    %v3489 = vpop.f32.mrb[0].mxu0
    %v3490 = vadd.f32 %v3369, %v3489
    %v3491 = vpop.f32.mrb[0].mxu0
    %v3492 = vpop.f32.mrb[0].mxu0
    %v3493 = vadd.f32 %v3372, %v3492
    %v3494 = vpop.f32.mrb[0].mxu0
    %3495 = vmatprep.mubr.bf16.mxu0 0
    %3496 = vmatmul.mubr.bf16.gmra.mrb[0].mxu0 %v3430
    %v3497 = vpop.f32.mrb[0].mxu0
    %v3498 = vadd.f32 %v3377, %v3497
    %v3499 = vpop.f32.mrb[0].mxu0
    %v3500 = vpop.f32.mrb[0].mxu0
    %v3501 = vadd.f32 %v3380, %v3500
    %v3502 = vpop.f32.mrb[0].mxu0
    %3503 = vmatprep.mubr.bf16.mxu0 0
    %3504 = vmatmul.mubr.bf16.gmra.mrb[0].mxu0 %v3433
    %v3505 = vpop.f32.mrb[0].mxu0
    %v3506 = vadd.f32 %v3385, %v3505
    %v3507 = vpop.f32.mrb[0].mxu0
    %v3508 = vpop.f32.mrb[0].mxu0
    %v3509 = vadd.f32 %v3388, %v3508
    %v3510 = vpop.f32.mrb[0].mxu0
    %3511 = vmatprep.mubr.bf16.mxu0 0
    %3512 = vmatmul.mubr.bf16.gmra.mrb[0].mxu0 %v3436
    %v3513 = vpop.f32.mrb[0].mxu0
    %v3514 = vadd.f32 %v3393, %v3513
    %v3515 = vpop.f32.mrb[0].mxu0
    %v3516 = vpop.f32.mrb[0].mxu0
    %v3517 = vadd.f32 %v3396, %v3516
    %v3518 = vpop.f32.mrb[0].mxu0
    %3519 = vmatprep.mubr.bf16.mxu0 0
    %3520 = vmatmul.mubr.bf16.gmra.mrb[0].mxu0 %v3439
    %v3521 = vpop.f32.mrb[0].mxu0
    %v3522 = vadd.f32 %v3401, %v3521
    %v3523 = vpop.f32.mrb[0].mxu0
    %v3524 = vpop.f32.mrb[0].mxu0
    %v3525 = vadd.f32 %v3404, %v3524
    %v3526 = vpop.f32.mrb[0].mxu0
    %3527 = vmatprep.mubr.bf16.mxu0 0
    %3528 = vmatmul.mubr.bf16.gmra.mrb[0].mxu0 %v3442
    %v3529 = vpop.f32.mrb[0].mxu0
    %v3530 = vadd.f32 %v3409, %v3529
    %v3531 = vpop.f32.mrb[0].mxu0
    %v3532 = vpop.f32.mrb[0].mxu0
    %v3533 = vadd.f32 %v3412, %v3532
    %v3534 = vpop.f32.mrb[0].mxu0
    %3535 = vmatprep.mubr.bf16.mxu0 0
    %3536 = vmatmul.mubr.bf16.gmra.mrb[0].mxu0 %v3445
    %v3537 = vpop.f32.mrb[0].mxu0
    %v3538 = vadd.f32 %v3417, %v3537
    %v3539 = vpop.f32.mrb[0].mxu0
    %v3540 = vpop.f32.mrb[0].mxu0
    %v3541 = vadd.f32 %v3420, %v3540
    %v3542 = vpop.f32.mrb[0].mxu0
    %3543 = vdwg.mxu0
    %v3544 = vadd.f32 %v3482, %v3050
    %v3545 = vadd.f32 %v3485, %v3050
    %v3546 = vadd.f32 %v3490, %v3050
    %v3547 = vadd.f32 %v3493, %v3050
    %v3548 = vadd.f32 %v3498, %v3050
    %v3549 = vadd.f32 %v3501, %v3050
    %v3550 = vadd.f32 %v3506, %v3050
    %v3551 = vadd.f32 %v3509, %v3050
    %v3552 = vadd.f32 %v3514, %v3050
    %v3553 = vadd.f32 %v3517, %v3050
    %v3554 = vadd.f32 %v3522, %v3050
    %v3555 = vadd.f32 %v3525, %v3050
    %v3556 = vadd.f32 %v3530, %v3050
    %v3557 = vadd.f32 %v3533, %v3050
    %v3558 = vadd.f32 %v3538, %v3050
    %v3559 = vadd.f32 %v3541, %v3050
    %3560 = vst.msk [vmem:[%s8 + $0x80] sm:$0xff] %vm2455, %v3544
    %3561 = vst.msk [vmem:[%s8 + $0x88] sm:$0xff] %vm2455, %v3545
    %3562 = vst.msk [vmem:[%s8 + $0x90] sm:$0xff] %vm2455, %v3546
    %3563 = vst.msk [vmem:[%s8 + $0x98] sm:$0xff] %vm2455, %v3547
    %3564 = vst.msk [vmem:[%s8 + $0xa0] sm:$0xff] %vm2455, %v3548
    %3565 = vst.msk [vmem:[%s8 + $0xa8] sm:$0xff] %vm2455, %v3549
    %3566 = vst.msk [vmem:[%s8 + $0xb0] sm:$0xff] %vm2455, %v3550
    %3567 = vst.msk [vmem:[%s8 + $0xb8] sm:$0xff] %vm2455, %v3551
    %3568 = vst.msk [vmem:[%s8 + $0xc0] sm:$0xff] %vm2455, %v3552
    %3569 = vst.msk [vmem:[%s8 + $0xc8] sm:$0xff] %vm2455, %v3553
    %3570 = vst.msk [vmem:[%s8 + $0xd0] sm:$0xff] %vm2455, %v3554
    %3571 = vst.msk [vmem:[%s8 + $0xd8] sm:$0xff] %vm2455, %v3555
    %3572 = vst.msk [vmem:[%s8 + $0xe0] sm:$0xff] %vm2455, %v3556
    %3573 = vst.msk [vmem:[%s8 + $0xe8] sm:$0xff] %vm2455, %v3557
    %3574 = vst.msk [vmem:[%s8 + $0xf0] sm:$0xff] %vm2455, %v3558
    %3575 = vst.msk [vmem:[%s8 + $0xf8] sm:$0xff] %vm2455, %v3559
    // Predicated region
    $region38: #{onnx_net_forward.1} parent=1 // pred_check
      _
    $region39: #{onnx_net_forward.1} parent=1 // pred_check_branch
      %3577 = sbr.rel (0) target = $region41
    $region40: #{onnx_net_forward.1} parent=1 // pred_region
      _
    $region41: #{onnx_net_forward.1} parent=1 // pred_fallthru
      _
    // Predicated region
    $region42: #{onnx_net_forward.1} parent=1 // pred_check
      _
    $region43: #{onnx_net_forward.1} parent=1 // pred_check_branch
      %3579 = sbr.rel (0) target = $region45
    $region44: #{onnx_net_forward.1} parent=1 // pred_region
      _
    $region45: #{onnx_net_forward.1} parent=1 // pred_fallthru
      _
    %3580 = vsyncpa [#allocation3], 1

</llo_original>
